<compile_context>
chip_gen: v6e
topology: v6e:2x2x1
jax: 0.10.0
libtpu: 0.0.40
codegen_flags: <defaults>
</compile_context>

<pallas_src>
import functools

import jax
import jax.numpy as jnp
from jax import lax
from jax.experimental import pallas as pl
from jax.experimental.pallas import tpu as pltpu

LANE = 128  # channel padding (lane multiple) used throughout the backbone


def _round_up(x, m):
    return (x + m - 1) // m * m


def _vmem_limit(est_bytes):
    # Cover the estimated resident bytes with 2x headroom; stay well below the
    # smallest physical VMEM (v7x: 64 MiB) and never below a safe floor.
    return int(min(max(2 * est_bytes + (4 << 20), 16 << 20), 56 << 20))


# --------------------------------------------------------------------------
# Conv kernel: in-kernel im2col via shifted row-slices of a tile of the
# flattened, spatially padded feature map.  The flattened "phase" arrays live
# in HBM; each grid step DMAs rows [m*tm, m*tm + tm + halo_p) of every phase
# into a double-buffered VMEM scratch (prefetching the next tile), then runs
# kh*kw (tm, Cin_p) @ (Cin_p, Cout_p) bf16 MXU matmuls accumulated into an f32
# VMEM scratch with bias/ReLU fused.
# --------------------------------------------------------------------------

def _conv_halo_kernel(x_hbm, w_ref, b_ref, o_ref, buf, sem, acc_ref,
                      *, taps, rows, tm, relu):
    # x_hbm : (B, n_ph, L, Cin_p) bf16, HBM (pl.ANY)
    # w_ref : (T, Cin_p, Cout_p)  bf16, VMEM
    # b_ref : (1, Cout_p)         f32,  VMEM
    # o_ref : (tm, Cout_p)              VMEM (auto-pipelined output block)
    # buf   : (2, n_ph, rows_max, Cin_p) bf16 VMEM scratch (double buffer)
    # sem   : DMA semaphores (2, n_ph)
    # acc_ref: (tm, Cout_p) f32 VMEM scratch accumulator
    b = pl.program_id(0)
    m = pl.program_id(1)
    nm = pl.num_programs(1)
    n_ph = len(rows)

    def copies(row0, slot):
        cps = []
        for p in range(n_ph):
            cps.append(pltpu.make_async_copy(
                x_hbm.at[b, p, pl.ds(row0, rows[p]), :],
                buf.at[slot, p, pl.ds(0, rows[p]), :],
                sem.at[slot, p]))
        return cps

    # prime the first tile of this image (grid order: all m for a given b)
    @pl.when(m == 0)
    def _():
        for cp in copies(0, 0):
            cp.start()

    slot = m & 1
    for cp in copies(0, slot):          # wait for the current tile's rows
        cp.wait()

    @pl.when(m + 1 < nm)                # prefetch the next tile's rows
    def _():
        for cp in copies((m + 1) * tm, 1 - slot):
            cp.start()

    # tap matmuls: contiguous static-offset slices of the scratch buffer
    for t, (p, off) in enumerate(taps):
        lhs = buf[slot, p, pl.ds(off, tm), :]                     # (tm, Cin_p)
        d = jnp.dot(lhs, w_ref[t], preferred_element_type=jnp.float32)
        if t == 0:
            acc_ref[...] = d
        else:
            acc_ref[...] += d

    out = acc_ref[...] + b_ref[...]
    if relu:
        out = jnp.maximum(out, 0.0)
    o_ref[...] = out.astype(o_ref.dtype)


def conv_pallas(x, w_packed, b_packed, *, kh, kw, stride, padding, relu,
                out_dtype=jnp.bfloat16, tm_max=512, pre_padded=False):
    """x: (B, H, W, Cin_p) channel-padded NHWC bf16 activation (if
    pre_padded=True the spatial dims already include `padding` on each side).
    w_packed: (kh*kw, Cin_p, Cout_p) bf16; b_packed: (1, Cout_p) f32.
    Returns (B, Ho, Wo, Cout_p)."""
    x = x.astype(jnp.bfloat16)
    s = stride
    if pre_padded:
        B, Hp0, Wp0, Cin_p = x.shape
        H, W = Hp0 - 2 * padding, Wp0 - 2 * padding
    else:
        B, H, W, Cin_p = x.shape
    T, wc_in, Cout_p = w_packed.shape
    assert T == kh * kw and wc_in == Cin_p
    Ho = (H + 2 * padding - kh) // s + 1
    Wo = (W + 2 * padding - kw) // s + 1

    # spatial pad; make padded extents divisible by the stride so all phases
    # share one (Hh, Wh) shape.
    Hp = H + 2 * padding
    Wp = W + 2 * padding
    eh = (-Hp) % s
    ew = (-Wp) % s
    Hp += eh
    Wp += ew
    if pre_padded:
        xp = jnp.pad(x, ((0, 0), (0, eh), (0, ew), (0, 0))) if (eh or ew) else x
    else:
        xp = jnp.pad(x, ((0, 0), (padding, padding + eh),
                         (padding, padding + ew), (0, 0)))
    Hh, Wh = Hp // s, Wp // s
    M_ext = Ho * Wh                       # extended output rows (garbage cols kept)
    tm = min(tm_max, _round_up(M_ext, 8))
    Mp = _round_up(M_ext, tm)

    # taps + per-phase halo (tight per-phase DMA, not the max over all phases)
    taps = []
    halo = [0] * (s * s)
    for ki in range(kh):
        for kj in range(kw):
            p = (ki % s) * s + (kj % s)
            off = (ki // s) * Wh + (kj // s)
            taps.append((p, off))
            halo[p] = max(halo[p], off)
    rows = tuple(tm + _round_up(h, 8) for h in halo)
    rows_max = max(rows)
    L_req = Mp + max(_round_up(h, 8) for h in halo)

    # phase extraction + stack (one HBM pass).  TODO(synk): let the DMA do the
    # stride-s de-interleave via a free reshape + squeezed phase dims instead.
    phases = []
    for p in range(s):
        for q in range(s):
            ph = xp[:, p::s, q::s, :].reshape(B, Hh * Wh, Cin_p)
            pad_rows = L_req - Hh * Wh
            if pad_rows > 0:
                ph = jnp.pad(ph, ((0, 0), (0, pad_rows), (0, 0)))
            elif pad_rows < 0:
                ph = ph[:, :L_req, :]
            phases.append(ph)
    xph = jnp.stack(phases, axis=1)       # (B, n_ph, L_req, Cin_p) bf16, HBM
    n_ph = s * s

    itemsize_out = jnp.dtype(out_dtype).itemsize
    est = (2 * n_ph * rows_max * Cin_p * 2      # input double buffer (bf16)
           + tm * Cout_p * 4                    # f32 accumulator
           + 2 * T * Cin_p * Cout_p * 2         # weights (double buffered)
           + 2 * Cout_p * 4                     # bias
           + 2 * tm * Cout_p * itemsize_out     # output blocks
           + 2 * tm * max(Cin_p, Cout_p) * 4)   # matmul / relu temporaries

    kernel = functools.partial(_conv_halo_kernel, taps=tuple(taps),
                               rows=rows, tm=tm, relu=relu)
    out = pl.pallas_call(
        kernel,
        out_shape=jax.ShapeDtypeStruct((B, Mp, Cout_p), out_dtype),
        grid=(B, Mp // tm),
        in_specs=[pl.BlockSpec(memory_space=pl.ANY),        # phases stay in HBM
                  pl.BlockSpec((T, Cin_p, Cout_p), lambda b, m: (0, 0, 0)),
                  pl.BlockSpec((1, Cout_p), lambda b, m: (0, 0))],
        out_specs=pl.BlockSpec((None, tm, Cout_p), lambda b, m: (b, m, 0)),
        scratch_shapes=[pltpu.VMEM((2, n_ph, rows_max, Cin_p), jnp.bfloat16),
                        pltpu.SemaphoreType.DMA((2, n_ph)),
                        pltpu.VMEM((tm, Cout_p), jnp.float32)],
        compiler_params=pltpu.CompilerParams(
            # m must stay "arbitrary": the manual prefetch chain is sequential
            # per image.  TODO(synk): for B == 1 one TensorCore idles; re-prime
            # the prefetch per core to make m parallel as well.
            dimension_semantics=("parallel", "arbitrary"),
            vmem_limit_bytes=_vmem_limit(est)),
    )(xph, w_packed, b_packed)
    # drop padded rows / garbage columns of the extended layout.  NOTE: the
    # extended output is never fed to the next layer directly (its Wo..Wh-1
    # columns hold garbage, not zeros).
    out = out[:, :M_ext, :].reshape(B, Ho, Wh, Cout_p)[:, :, :Wo, :]
    return out


# --------------------------------------------------------------------------
# grid_sample (align_corners=True, zeros padding) + optional F.normalize.
# One-hot bilinear weights (bf16) built against a precomputed flat index plane
# (one compare + select per tap), contracted with the bf16 feature tile on the
# MXU with f32 accumulation; H*W is a tiled reduction grid axis accumulated in
# a VMEM f32 scratch.
# --------------------------------------------------------------------------

def _grid_sample_kernel(coord_ref, idx_ref, feat_ref, o_ref, acc_ref,
                        *, H, W, do_norm):
    k = pl.program_id(2)

    @pl.when(k == 0)
    def _():
        acc_ref[...] = jnp.zeros_like(acc_ref)

    coord = coord_ref[0]                                   # (tn, 128) f32
    ix = (coord[:, 0:1] + 1.0) * 0.5 * (W - 1)             # align_corners=True
    iy = (coord[:, 1:2] + 1.0) * 0.5 * (H - 1)
    x0f = jnp.floor(ix)
    y0f = jnp.floor(iy)
    wx1 = ix - x0f
    wx0 = 1.0 - wx1
    wy1 = iy - y0f
    wy0 = 1.0 - wy1
    x0 = x0f.astype(jnp.int32)
    y0 = y0f.astype(jnp.int32)
    idx = idx_ref[...]                                     # (1, thw) int32

    zero_b = jnp.zeros((), jnp.bfloat16)

    def tap(yi, xi, wgt):
        # Out-of-range taps get the sentinel -2**30 which never matches a plane
        # entry (valid entries are >= 0, padded HW columns carry -1), so zeros
        # padding does NOT rely on the padded feature rows being zero.
        valid = (xi >= 0) & (xi < W) & (yi >= 0) & (yi < H)        # (tn, 1)
        tgt = jnp.where(valid, yi * W + xi, jnp.int32(-2 ** 30))   # (tn, 1)
        return jnp.where(idx == tgt, wgt.astype(jnp.bfloat16), zero_b)

    wmat = (tap(y0, x0, wy0 * wx0) + tap(y0, x0 + 1, wy0 * wx1)
            + tap(y0 + 1, x0, wy1 * wx0) + tap(y0 + 1, x0 + 1, wy1 * wx1))
    acc_ref[...] += jnp.dot(wmat, feat_ref[0],
                            preferred_element_type=jnp.float32)

    @pl.when(k == pl.num_programs(2) - 1)
    def _():
        out = acc_ref[...]
        if do_norm:                                        # F.normalize, eps=1e-12
            ss = jnp.sum(out * out, axis=-1, keepdims=True)
            out = out * lax.rsqrt(jnp.maximum(ss, 1e-24))
        o_ref[0] = out


def pallas_sample_feat_by_coord(x_nchw, coord_n, norm=False, *,
                                tn_max=256, thw_max=4096):
    """F.grid_sample(x, coord.unsqueeze(2), align_corners=True).squeeze(-1)
    [+ F.normalize] then transpose(1, 2)  ->  (B, N, C).
    TODO(synk): for HW >> N switch to a scalar-prefetch row-gather path instead
    of the one-hot contraction.  TODO(synk): accept the conv-native padded NHWC
    layout directly to skip the transposes / re-pad."""
    B, C, H, W = x_nchw.shape
    _, N, _ = coord_n.shape
    HW = H * W
    feat = jnp.transpose(x_nchw, (0, 2, 3, 1)).reshape(B, HW, C)
    Cp = _round_up(C, LANE)
    tn = min(tn_max, _round_up(N, 8))
    Np = _round_up(N, tn)
    thw = min(thw_max, _round_up(HW, LANE))
    HWp = _round_up(HW, thw)

    coord_p = (jnp.zeros((B, Np, LANE), jnp.float32)
               .at[:, :N, 0].set(coord_n[..., 0].astype(jnp.float32))
               .at[:, :N, 1].set(coord_n[..., 1].astype(jnp.float32)))
    # bf16 feature matrix (f32 accumulation happens in the MXU / acc scratch).
    # TODO(synk): validate bf16 tolerance vs. the f32 PyTorch reference.
    feat_p = jnp.zeros((B, HWp, Cp), jnp.bfloat16).at[:, :HW, :C].set(
        feat.astype(jnp.bfloat16))
    # fused flat index plane: entry k = k for valid columns, -1 for padding.
    idx = jnp.arange(HWp, dtype=jnp.int32)
    idx_plane = jnp.where(idx < HW, idx, -1).reshape(1, HWp)

    est = (2 * tn * LANE * 4          # coord blocks
           + 2 * thw * 4              # index plane blocks
           + 2 * thw * Cp * 2         # feature blocks (bf16)
           + 2 * tn * Cp * 4          # output blocks
           + tn * Cp * 4              # accumulator scratch
           + 6 * tn * thw * 2)        # one-hot weight temporaries (bf16)

    out = pl.pallas_call(
        functools.partial(_grid_sample_kernel, H=H, W=W, do_norm=norm),
        out_shape=jax.ShapeDtypeStruct((B, Np, Cp), jnp.float32),
        grid=(B, Np // tn, HWp // thw),
        in_specs=[pl.BlockSpec((1, tn, LANE), lambda b, n, k: (b, n, 0)),
                  pl.BlockSpec((1, thw), lambda b, n, k: (0, k)),
                  pl.BlockSpec((1, thw, Cp), lambda b, n, k: (b, k, 0))],
        out_specs=pl.BlockSpec((1, tn, Cp), lambda b, n, k: (b, n, 0)),
        scratch_shapes=[pltpu.VMEM((tn, Cp), jnp.float32)],
        compiler_params=pltpu.CompilerParams(
            dimension_semantics=("parallel", "parallel", "arbitrary"),
            vmem_limit_bytes=_vmem_limit(est)),
    )(coord_p, idx_plane, feat_p)
    return out[:, :N, :C]


# ------------------------------- model glue ---------------------------------

def _conv_init(key, kh, kw, cin, cout):
    std = (2.0 / (kh * kw * cin)) ** 0.5
    w = std * jax.random.normal(key, (kh, kw, cin, cout), jnp.float32)
    b = jnp.zeros((cout,), jnp.float32)
    return w, b


def _pack_conv(w, b, cin_p=LANE, cout_p=LANE):
    """Pack (kh, kw, cin, cout) weights ONCE: tap-major, channel-padded, bf16.
    TODO(synk): add a paired-tap (K=256) packing variant for v6e/v7x MXUs."""
    kh, kw, cin, cout = w.shape
    wp = jnp.zeros((kh * kw, cin_p, cout_p), jnp.bfloat16)
    wp = wp.at[:, :cin, :cout].set(
        w.reshape(kh * kw, cin, cout).astype(jnp.bfloat16))
    bp = jnp.zeros((1, cout_p), jnp.float32).at[0, :cout].set(
        b.astype(jnp.float32))
    return wp, bp


class CAPSnetPallas:
    """Pallas/TPU forward of CAPSnet = ResUNet(image) -> (coarse, fine) features.
    # TODO(synk): the ResUNet backbone source is not part of the provided module;
    # a small deterministic residual encoder/decoder (coarse head at 1/4 res,
    # fine head at 1/2 res) stands in for it (pretrained=False, synthetic weights).
    """

    def __init__(self, cfg, key):
        self.cfg = cfg
        cdim = cfg['coarse_feat_dim']
        fdim = cfg['coarse_feat_dim']   # module wires coarse_feat_dim into fine_out_ch too
        self.cdim, self.fdim = cdim, fdim
        keys = jax.random.split(key, 8)
        c0, c1, c2 = 16, 32, 64
        self.c0 = c0
        conv0_w, conv0_b = _conv_init(keys[0], 3, 3, 3, c0)
        down1 = _conv_init(keys[1], 3, 3, c0, c1)
        res1a = _conv_init(keys[2], 3, 3, c1, c1)
        res1b = _conv_init(keys[3], 3, 3, c1, c1)
        down2 = _conv_init(keys[4], 3, 3, c1, c2)
        res2a = _conv_init(keys[5], 3, 3, c2, c2)
        res2b = _conv_init(keys[6], 3, 3, c2, c2)
        up1_w, up1_b = _conv_init(keys[7], 3, 3, c2 + c1, c1)
        kk = jax.random.split(jax.random.fold_in(key, 123), 2)
        coarse = _conv_init(kk[0], 1, 1, c2, cdim)
        fine = _conv_init(kk[1], 1, 1, c1, fdim)

        # conv0 stays a plain XLA conv (Cin=3: padding K to a lane multiple at
        # full resolution wastes HBM traffic).
        self.conv0_w, self.conv0_b = conv0_w, conv0_b
        # all other conv weights packed ONCE (no per-call weight padding).
        self.p = {
            'down1': _pack_conv(*down1),
            'res1a': _pack_conv(*res1a),
            'res1b': _pack_conv(*res1b),
            'down2': _pack_conv(*down2),
            'res2a': _pack_conv(*res2a),
            'res2b': _pack_conv(*res2b),
            # conv(concat([up(x2), x1])) == conv(up(x2), W[:, :, :c2]) +
            # conv(x1, W[:, :, c2:]): split by linearity so the (c2+c1)-channel
            # concat tensor is never materialized in HBM.
            'up1_a': _pack_conv(up1_w[:, :, :c2, :], up1_b),
            'up1_b': _pack_conv(up1_w[:, :, c2:, :], jnp.zeros_like(up1_b)),
            'coarse': _pack_conv(*coarse),
            'fine': _pack_conv(*fine),
        }

    def __call__(self, image_nchw):
        p = self.p
        x = jnp.transpose(image_nchw, (0, 2, 3, 1)).astype(jnp.float32)   # NHWC
        B, H, W, _ = x.shape
        x0 = lax.conv_general_dilated(
            x, self.conv0_w, window_strides=(1, 1), padding=((1, 1), (1, 1)),
            dimension_numbers=('NHWC', 'HWIO', 'NHWC'))
        x0 = jnp.maximum(x0 + self.conv0_b, 0.0)
        # channel pad to 128 lanes + bf16 cast + down1's spatial pad in ONE
        # scatter into a pre-padded zero buffer (one full-res HBM pass instead
        # of two before the first Pallas conv).
        x0p = (jnp.zeros((B, H + 2, W + 2, LANE), jnp.bfloat16)
               .at[:, 1:H + 1, 1:W + 1, :self.c0].set(x0.astype(jnp.bfloat16)))

        conv3 = functools.partial(conv_pallas, kh=3, kw=3, padding=1)
        conv1 = functools.partial(conv_pallas, kh=1, kw=1, padding=0, stride=1)

        x1 = conv3(x0p, *p['down1'], stride=2, relu=True, pre_padded=True)  # H/2
        y = conv3(x1, *p['res1a'], stride=1, relu=True)
        z = conv3(y, *p['res1b'], stride=1, relu=False)
        # TODO(synk): fuse residual add + ReLU into the conv kernel (needs the
        # residual presented in the kernel's extended row layout); XLA fuses
        # the add/relu/cast into one elementwise pass today.
        x1 = jnp.maximum(z + x1, 0.0).astype(jnp.bfloat16)                 # residual
        x2 = conv3(x1, *p['down2'], stride=2, relu=True)                   # H/4
        y = conv3(x2, *p['res2a'], stride=1, relu=True)
        z = conv3(y, *p['res2b'], stride=1, relu=False)
        x2 = jnp.maximum(z + x2, 0.0).astype(jnp.bfloat16)                 # residual

        xc = conv1(x2, *p['coarse'], relu=False, out_dtype=jnp.float32)[..., :self.cdim]

        # decoder: nearest x2 upsample; the channel concat is replaced by the
        # two-conv split above.
        # TODO(synk): fold the i//2 upsample read into the up1_a conv (4-phase
        # transposed-conv taps) so `up` is never materialized.
        up = jnp.repeat(jnp.repeat(x2, 2, axis=1), 2, axis=2)
        fa = conv3(up, *p['up1_a'], stride=1, relu=False)
        fb = conv3(x1, *p['up1_b'], stride=1, relu=False)
        xf = jnp.maximum(fa + fb, 0.0).astype(jnp.bfloat16)
        xf = conv1(xf, *p['fine'], relu=False, out_dtype=jnp.float32)[..., :self.fdim]

        xc = jnp.transpose(xc, (0, 3, 1, 2))                               # NHWC -> NCHW
        xf = jnp.transpose(xf, (0, 3, 1, 2))
        return xc, xf

    @staticmethod
    def normalize(coord, h, w):
        c = jnp.array([(w - 1) / 2.0, (h - 1) / 2.0], dtype=coord.dtype)
        return (coord - c) / c

    def sample_feat_by_coord(self, x, coord_n, norm=False):
        return pallas_sample_feat_by_coord(x, coord_n, norm=norm)


if __name__ == "__main__":
    key = jax.random.PRNGKey(0)
    k_img, k_coord, k_param = jax.random.split(key, 3)
    cfg = {'backbone': 'resnet18', 'coarse_feat_dim': 32}
    model = CAPSnetPallas(cfg, k_param)

    image = jax.random.normal(k_img, (2, 3, 16, 16), jnp.float32)   # NCHW input
    xc, xf = model(image)
    jax.block_until_ready((xc, xf))
    assert xc.shape == (2, 32, 4, 4), xc.shape
    assert xf.shape == (2, 32, 8, 8), xf.shape

    # exercise the grid_sample (sample_feat_by_coord) Pallas kernel too
    coord_n = jax.random.uniform(k_coord, (2, 8, 2), jnp.float32, -1.0, 1.0)
    feat = model.sample_feat_by_coord(xc, coord_n, norm=True)
    jax.block_until_ready(feat)
    assert feat.shape == (2, 8, 32), feat.shape

    print("KERNEL_OK")
</pallas_src>

<mosaic_0001>
module attributes {stable_mosaic.version = 11 : i64} {
  func.func @_conv_halo_kernel(%arg0: i32, %arg1: i32, %arg2: memref<2x4x88x128xbf16, #tpu.memory_space<any>>, %arg3: memref<9x128x128xbf16, #tpu.memory_space<vmem>>, %arg4: memref<1x128xf32, #tpu.memory_space<vmem>>, %arg5: memref<1x72x128xbf16, #tpu.memory_space<vmem>>, %arg6: memref<2x4x88x128xbf16, #tpu.memory_space<vmem>>, %arg7: memref<2x4x!tpu.dma_semaphore, #tpu.memory_space<semaphore_mem>>, %arg8: memref<72x128xf32, #tpu.memory_space<vmem>>) attributes {dimension_semantics = [#tpu.dimension_semantics<parallel>, #tpu.dimension_semantics<arbitrary>], iteration_bounds = array<i64: 2, 1>, scalar_prefetch = 0 : i64, scratch_operands = 3 : i64, tpu.core_type = #tpu.core_type<tc>, window_params = [{}, {pipeline_mode = #tpu.pipeline_mode<synchronous>, transform_indices = @transform_1, window_bounds = array<i64: 9, 128, 128>}, {pipeline_mode = #tpu.pipeline_mode<synchronous>, transform_indices = @transform_2, window_bounds = array<i64: 1, 128>}, {transform_indices = @transform_3, window_bounds = array<i64: 1, 72, 128>}]} {
    %c0_i32 = arith.constant 0 : i32
    %0 = arith.cmpi eq, %arg1, %c0_i32 : i32
    %1 = arith.extui %0 : i1 to i32
    %c0_i32_0 = arith.constant 0 : i32
    %2 = arith.cmpi ne, %1, %c0_i32_0 : i32
    scf.if %2 {
      %c0_i32_123 = arith.constant 0 : i32
      %c0_i32_124 = arith.constant 0 : i32
      %c0_i32_125 = arith.constant 0 : i32
      %c0_i32_126 = arith.constant 0 : i32
      %c0_i32_127 = arith.constant 0 : i32
      %c0_i32_128 = arith.constant 0 : i32
      %c0_i32_129 = arith.constant 0 : i32
      %121 = tpu.memref_slice %arg2[%arg0, %c0_i32_123, %c0_i32_128, %c0_i32_129] : memref<2x4x88x128xbf16, #tpu.memory_space<any>> -> memref<1x1x88x128xbf16, #tpu.memory_space<any>>
      %122 = tpu.memref_squeeze %121 : memref<1x1x88x128xbf16, #tpu.memory_space<any>> -> memref<88x128xbf16, #tpu.memory_space<any>>
      %c0_i32_130 = arith.constant 0 : i32
      %c0_i32_131 = arith.constant 0 : i32
      %123 = tpu.memref_slice %arg6[%c0_i32_124, %c0_i32_125, %c0_i32_130, %c0_i32_131] : memref<2x4x88x128xbf16, #tpu.memory_space<vmem>> -> memref<1x1x88x128xbf16, #tpu.memory_space<vmem>>
      %124 = tpu.memref_squeeze %123 : memref<1x1x88x128xbf16, #tpu.memory_space<vmem>> -> memref<88x128xbf16, #tpu.memory_space<vmem>>
      %125 = tpu.memref_slice %arg7[%c0_i32_126, %c0_i32_127] : memref<2x4x!tpu.dma_semaphore, #tpu.memory_space<semaphore_mem>> -> memref<1x1x!tpu.dma_semaphore, #tpu.memory_space<semaphore_mem>>
      %126 = tpu.memref_squeeze %125 : memref<1x1x!tpu.dma_semaphore, #tpu.memory_space<semaphore_mem>> -> memref<!tpu.dma_semaphore, #tpu.memory_space<semaphore_mem>>
      tpu.enqueue_dma source(%122 : memref<88x128xbf16, #tpu.memory_space<any>>) target(%124 : memref<88x128xbf16, #tpu.memory_space<vmem>>) target_semaphore(%126 : memref<!tpu.dma_semaphore, #tpu.memory_space<semaphore_mem>>)
      %c1_i32_132 = arith.constant 1 : i32
      %c0_i32_133 = arith.constant 0 : i32
      %c1_i32_134 = arith.constant 1 : i32
      %c0_i32_135 = arith.constant 0 : i32
      %c1_i32_136 = arith.constant 1 : i32
      %c0_i32_137 = arith.constant 0 : i32
      %c0_i32_138 = arith.constant 0 : i32
      %127 = tpu.memref_slice %arg2[%arg0, %c1_i32_132, %c0_i32_137, %c0_i32_138] : memref<2x4x88x128xbf16, #tpu.memory_space<any>> -> memref<1x1x88x128xbf16, #tpu.memory_space<any>>
      %128 = tpu.memref_squeeze %127 : memref<1x1x88x128xbf16, #tpu.memory_space<any>> -> memref<88x128xbf16, #tpu.memory_space<any>>
      %c0_i32_139 = arith.constant 0 : i32
      %c0_i32_140 = arith.constant 0 : i32
      %129 = tpu.memref_slice %arg6[%c0_i32_133, %c1_i32_134, %c0_i32_139, %c0_i32_140] : memref<2x4x88x128xbf16, #tpu.memory_space<vmem>> -> memref<1x1x88x128xbf16, #tpu.memory_space<vmem>>
      %130 = tpu.memref_squeeze %129 : memref<1x1x88x128xbf16, #tpu.memory_space<vmem>> -> memref<88x128xbf16, #tpu.memory_space<vmem>>
      %131 = tpu.memref_slice %arg7[%c0_i32_135, %c1_i32_136] : memref<2x4x!tpu.dma_semaphore, #tpu.memory_space<semaphore_mem>> -> memref<1x1x!tpu.dma_semaphore, #tpu.memory_space<semaphore_mem>>
      %132 = tpu.memref_squeeze %131 : memref<1x1x!tpu.dma_semaphore, #tpu.memory_space<semaphore_mem>> -> memref<!tpu.dma_semaphore, #tpu.memory_space<semaphore_mem>>
      tpu.enqueue_dma source(%128 : memref<88x128xbf16, #tpu.memory_space<any>>) target(%130 : memref<88x128xbf16, #tpu.memory_space<vmem>>) target_semaphore(%132 : memref<!tpu.dma_semaphore, #tpu.memory_space<semaphore_mem>>)
      %c2_i32_141 = arith.constant 2 : i32
      %c0_i32_142 = arith.constant 0 : i32
      %c2_i32_143 = arith.constant 2 : i32
      %c0_i32_144 = arith.constant 0 : i32
      %c2_i32_145 = arith.constant 2 : i32
      %c0_i32_146 = arith.constant 0 : i32
      %c0_i32_147 = arith.constant 0 : i32
      %133 = tpu.memref_slice %arg2[%arg0, %c2_i32_141, %c0_i32_146, %c0_i32_147] : memref<2x4x88x128xbf16, #tpu.memory_space<any>> -> memref<1x1x80x128xbf16, #tpu.memory_space<any>>
      %134 = tpu.memref_squeeze %133 : memref<1x1x80x128xbf16, #tpu.memory_space<any>> -> memref<80x128xbf16, #tpu.memory_space<any>>
      %c0_i32_148 = arith.constant 0 : i32
      %c0_i32_149 = arith.constant 0 : i32
      %135 = tpu.memref_slice %arg6[%c0_i32_142, %c2_i32_143, %c0_i32_148, %c0_i32_149] : memref<2x4x88x128xbf16, #tpu.memory_space<vmem>> -> memref<1x1x80x128xbf16, #tpu.memory_space<vmem>>
      %136 = tpu.memref_squeeze %135 : memref<1x1x80x128xbf16, #tpu.memory_space<vmem>> -> memref<80x128xbf16, #tpu.memory_space<vmem>>
      %137 = tpu.memref_slice %arg7[%c0_i32_144, %c2_i32_145] : memref<2x4x!tpu.dma_semaphore, #tpu.memory_space<semaphore_mem>> -> memref<1x1x!tpu.dma_semaphore, #tpu.memory_space<semaphore_mem>>
      %138 = tpu.memref_squeeze %137 : memref<1x1x!tpu.dma_semaphore, #tpu.memory_space<semaphore_mem>> -> memref<!tpu.dma_semaphore, #tpu.memory_space<semaphore_mem>>
      tpu.enqueue_dma source(%134 : memref<80x128xbf16, #tpu.memory_space<any>>) target(%136 : memref<80x128xbf16, #tpu.memory_space<vmem>>) target_semaphore(%138 : memref<!tpu.dma_semaphore, #tpu.memory_space<semaphore_mem>>)
      %c3_i32_150 = arith.constant 3 : i32
      %c0_i32_151 = arith.constant 0 : i32
      %c3_i32_152 = arith.constant 3 : i32
      %c0_i32_153 = arith.constant 0 : i32
      %c3_i32_154 = arith.constant 3 : i32
      %c0_i32_155 = arith.constant 0 : i32
      %c0_i32_156 = arith.constant 0 : i32
      %139 = tpu.memref_slice %arg2[%arg0, %c3_i32_150, %c0_i32_155, %c0_i32_156] : memref<2x4x88x128xbf16, #tpu.memory_space<any>> -> memref<1x1x72x128xbf16, #tpu.memory_space<any>>
      %140 = tpu.memref_squeeze %139 : memref<1x1x72x128xbf16, #tpu.memory_space<any>> -> memref<72x128xbf16, #tpu.memory_space<any>>
      %c0_i32_157 = arith.constant 0 : i32
      %c0_i32_158 = arith.constant 0 : i32
      %141 = tpu.memref_slice %arg6[%c0_i32_151, %c3_i32_152, %c0_i32_157, %c0_i32_158] : memref<2x4x88x128xbf16, #tpu.memory_space<vmem>> -> memref<1x1x72x128xbf16, #tpu.memory_space<vmem>>
      %142 = tpu.memref_squeeze %141 : memref<1x1x72x128xbf16, #tpu.memory_space<vmem>> -> memref<72x128xbf16, #tpu.memory_space<vmem>>
      %143 = tpu.memref_slice %arg7[%c0_i32_153, %c3_i32_154] : memref<2x4x!tpu.dma_semaphore, #tpu.memory_space<semaphore_mem>> -> memref<1x1x!tpu.dma_semaphore, #tpu.memory_space<semaphore_mem>>
      %144 = tpu.memref_squeeze %143 : memref<1x1x!tpu.dma_semaphore, #tpu.memory_space<semaphore_mem>> -> memref<!tpu.dma_semaphore, #tpu.memory_space<semaphore_mem>>
      tpu.enqueue_dma source(%140 : memref<72x128xbf16, #tpu.memory_space<any>>) target(%142 : memref<72x128xbf16, #tpu.memory_space<vmem>>) target_semaphore(%144 : memref<!tpu.dma_semaphore, #tpu.memory_space<semaphore_mem>>)
    } else {
    }
    %c1_i32 = arith.constant 1 : i32
    %3 = arith.andi %arg1, %c1_i32 : i32
    %c0_i32_1 = arith.constant 0 : i32
    %c0_i32_2 = arith.constant 0 : i32
    %c0_i32_3 = arith.constant 0 : i32
    %c0_i32_4 = arith.constant 0 : i32
    %c0_i32_5 = arith.constant 0 : i32
    %4 = tpu.memref_slice %arg2[%arg0, %c0_i32_1, %c0_i32_4, %c0_i32_5] : memref<2x4x88x128xbf16, #tpu.memory_space<any>> -> memref<1x1x88x128xbf16, #tpu.memory_space<any>>
    %5 = tpu.memref_squeeze %4 : memref<1x1x88x128xbf16, #tpu.memory_space<any>> -> memref<88x128xbf16, #tpu.memory_space<any>>
    %c0_i32_6 = arith.constant 0 : i32
    %c0_i32_7 = arith.constant 0 : i32
    %6 = tpu.memref_slice %arg6[%3, %c0_i32_2, %c0_i32_6, %c0_i32_7] : memref<2x4x88x128xbf16, #tpu.memory_space<vmem>> -> memref<1x1x88x128xbf16, #tpu.memory_space<vmem>>
    %7 = tpu.memref_squeeze %6 : memref<1x1x88x128xbf16, #tpu.memory_space<vmem>> -> memref<88x128xbf16, #tpu.memory_space<vmem>>
    %8 = tpu.memref_slice %arg7[%3, %c0_i32_3] : memref<2x4x!tpu.dma_semaphore, #tpu.memory_space<semaphore_mem>> -> memref<1x1x!tpu.dma_semaphore, #tpu.memory_space<semaphore_mem>>
    %9 = tpu.memref_squeeze %8 : memref<1x1x!tpu.dma_semaphore, #tpu.memory_space<semaphore_mem>> -> memref<!tpu.dma_semaphore, #tpu.memory_space<semaphore_mem>>
    tpu.wait_dma2 semaphore(%9 : memref<!tpu.dma_semaphore, #tpu.memory_space<semaphore_mem>>) src(%5 : memref<88x128xbf16, #tpu.memory_space<any>>) dst(%7 : memref<88x128xbf16, #tpu.memory_space<vmem>>)
    %c1_i32_8 = arith.constant 1 : i32
    %c1_i32_9 = arith.constant 1 : i32
    %c1_i32_10 = arith.constant 1 : i32
    %c0_i32_11 = arith.constant 0 : i32
    %c0_i32_12 = arith.constant 0 : i32
    %10 = tpu.memref_slice %arg2[%arg0, %c1_i32_8, %c0_i32_11, %c0_i32_12] : memref<2x4x88x128xbf16, #tpu.memory_space<any>> -> memref<1x1x88x128xbf16, #tpu.memory_space<any>>
    %11 = tpu.memref_squeeze %10 : memref<1x1x88x128xbf16, #tpu.memory_space<any>> -> memref<88x128xbf16, #tpu.memory_space<any>>
    %c0_i32_13 = arith.constant 0 : i32
    %c0_i32_14 = arith.constant 0 : i32
    %12 = tpu.memref_slice %arg6[%3, %c1_i32_9, %c0_i32_13, %c0_i32_14] : memref<2x4x88x128xbf16, #tpu.memory_space<vmem>> -> memref<1x1x88x128xbf16, #tpu.memory_space<vmem>>
    %13 = tpu.memref_squeeze %12 : memref<1x1x88x128xbf16, #tpu.memory_space<vmem>> -> memref<88x128xbf16, #tpu.memory_space<vmem>>
    %14 = tpu.memref_slice %arg7[%3, %c1_i32_10] : memref<2x4x!tpu.dma_semaphore, #tpu.memory_space<semaphore_mem>> -> memref<1x1x!tpu.dma_semaphore, #tpu.memory_space<semaphore_mem>>
    %15 = tpu.memref_squeeze %14 : memref<1x1x!tpu.dma_semaphore, #tpu.memory_space<semaphore_mem>> -> memref<!tpu.dma_semaphore, #tpu.memory_space<semaphore_mem>>
    tpu.wait_dma2 semaphore(%15 : memref<!tpu.dma_semaphore, #tpu.memory_space<semaphore_mem>>) src(%11 : memref<88x128xbf16, #tpu.memory_space<any>>) dst(%13 : memref<88x128xbf16, #tpu.memory_space<vmem>>)
    %c2_i32 = arith.constant 2 : i32
    %c2_i32_15 = arith.constant 2 : i32
    %c2_i32_16 = arith.constant 2 : i32
    %c0_i32_17 = arith.constant 0 : i32
    %c0_i32_18 = arith.constant 0 : i32
    %16 = tpu.memref_slice %arg2[%arg0, %c2_i32, %c0_i32_17, %c0_i32_18] : memref<2x4x88x128xbf16, #tpu.memory_space<any>> -> memref<1x1x80x128xbf16, #tpu.memory_space<any>>
    %17 = tpu.memref_squeeze %16 : memref<1x1x80x128xbf16, #tpu.memory_space<any>> -> memref<80x128xbf16, #tpu.memory_space<any>>
    %c0_i32_19 = arith.constant 0 : i32
    %c0_i32_20 = arith.constant 0 : i32
    %18 = tpu.memref_slice %arg6[%3, %c2_i32_15, %c0_i32_19, %c0_i32_20] : memref<2x4x88x128xbf16, #tpu.memory_space<vmem>> -> memref<1x1x80x128xbf16, #tpu.memory_space<vmem>>
    %19 = tpu.memref_squeeze %18 : memref<1x1x80x128xbf16, #tpu.memory_space<vmem>> -> memref<80x128xbf16, #tpu.memory_space<vmem>>
    %20 = tpu.memref_slice %arg7[%3, %c2_i32_16] : memref<2x4x!tpu.dma_semaphore, #tpu.memory_space<semaphore_mem>> -> memref<1x1x!tpu.dma_semaphore, #tpu.memory_space<semaphore_mem>>
    %21 = tpu.memref_squeeze %20 : memref<1x1x!tpu.dma_semaphore, #tpu.memory_space<semaphore_mem>> -> memref<!tpu.dma_semaphore, #tpu.memory_space<semaphore_mem>>
    tpu.wait_dma2 semaphore(%21 : memref<!tpu.dma_semaphore, #tpu.memory_space<semaphore_mem>>) src(%17 : memref<80x128xbf16, #tpu.memory_space<any>>) dst(%19 : memref<80x128xbf16, #tpu.memory_space<vmem>>)
    %c3_i32 = arith.constant 3 : i32
    %c3_i32_21 = arith.constant 3 : i32
    %c3_i32_22 = arith.constant 3 : i32
    %c0_i32_23 = arith.constant 0 : i32
    %c0_i32_24 = arith.constant 0 : i32
    %22 = tpu.memref_slice %arg2[%arg0, %c3_i32, %c0_i32_23, %c0_i32_24] : memref<2x4x88x128xbf16, #tpu.memory_space<any>> -> memref<1x1x72x128xbf16, #tpu.memory_space<any>>
    %23 = tpu.memref_squeeze %22 : memref<1x1x72x128xbf16, #tpu.memory_space<any>> -> memref<72x128xbf16, #tpu.memory_space<any>>
    %c0_i32_25 = arith.constant 0 : i32
    %c0_i32_26 = arith.constant 0 : i32
    %24 = tpu.memref_slice %arg6[%3, %c3_i32_21, %c0_i32_25, %c0_i32_26] : memref<2x4x88x128xbf16, #tpu.memory_space<vmem>> -> memref<1x1x72x128xbf16, #tpu.memory_space<vmem>>
    %25 = tpu.memref_squeeze %24 : memref<1x1x72x128xbf16, #tpu.memory_space<vmem>> -> memref<72x128xbf16, #tpu.memory_space<vmem>>
    %26 = tpu.memref_slice %arg7[%3, %c3_i32_22] : memref<2x4x!tpu.dma_semaphore, #tpu.memory_space<semaphore_mem>> -> memref<1x1x!tpu.dma_semaphore, #tpu.memory_space<semaphore_mem>>
    %27 = tpu.memref_squeeze %26 : memref<1x1x!tpu.dma_semaphore, #tpu.memory_space<semaphore_mem>> -> memref<!tpu.dma_semaphore, #tpu.memory_space<semaphore_mem>>
    tpu.wait_dma2 semaphore(%27 : memref<!tpu.dma_semaphore, #tpu.memory_space<semaphore_mem>>) src(%23 : memref<72x128xbf16, #tpu.memory_space<any>>) dst(%25 : memref<72x128xbf16, #tpu.memory_space<vmem>>)
    %c1_i32_27 = arith.constant 1 : i32
    %28 = arith.addi %arg1, %c1_i32_27 : i32
    %c1_i32_28 = arith.constant 1 : i32
    %29 = arith.cmpi slt, %28, %c1_i32_28 : i32
    %30 = arith.extui %29 : i1 to i32
    %c0_i32_29 = arith.constant 0 : i32
    %31 = arith.cmpi ne, %30, %c0_i32_29 : i32
    scf.if %31 {
      %c1_i32_123 = arith.constant 1 : i32
      %121 = arith.addi %arg1, %c1_i32_123 : i32
      %c72_i32 = arith.constant 72 : i32
      %122 = arith.muli %121, %c72_i32 : i32
      %c1_i32_124 = arith.constant 1 : i32
      %123 = arith.subi %c1_i32_124, %3 : i32
      %c0_i32_125 = arith.constant 0 : i32
      %c0_i32_126 = arith.constant 0 : i32
      %c0_i32_127 = arith.constant 0 : i32
      %c0_i32_128 = arith.constant 0 : i32
      %124 = tpu.memref_slice %arg2[%arg0, %c0_i32_125, %122, %c0_i32_128] : memref<2x4x88x128xbf16, #tpu.memory_space<any>> -> memref<1x1x88x128xbf16, #tpu.memory_space<any>>
      %125 = tpu.memref_squeeze %124 : memref<1x1x88x128xbf16, #tpu.memory_space<any>> -> memref<88x128xbf16, #tpu.memory_space<any>>
      %c0_i32_129 = arith.constant 0 : i32
      %c0_i32_130 = arith.constant 0 : i32
      %126 = tpu.memref_slice %arg6[%123, %c0_i32_126, %c0_i32_129, %c0_i32_130] : memref<2x4x88x128xbf16, #tpu.memory_space<vmem>> -> memref<1x1x88x128xbf16, #tpu.memory_space<vmem>>
      %127 = tpu.memref_squeeze %126 : memref<1x1x88x128xbf16, #tpu.memory_space<vmem>> -> memref<88x128xbf16, #tpu.memory_space<vmem>>
      %128 = tpu.memref_slice %arg7[%123, %c0_i32_127] : memref<2x4x!tpu.dma_semaphore, #tpu.memory_space<semaphore_mem>> -> memref<1x1x!tpu.dma_semaphore, #tpu.memory_space<semaphore_mem>>
      %129 = tpu.memref_squeeze %128 : memref<1x1x!tpu.dma_semaphore, #tpu.memory_space<semaphore_mem>> -> memref<!tpu.dma_semaphore, #tpu.memory_space<semaphore_mem>>
      tpu.enqueue_dma source(%125 : memref<88x128xbf16, #tpu.memory_space<any>>) target(%127 : memref<88x128xbf16, #tpu.memory_space<vmem>>) target_semaphore(%129 : memref<!tpu.dma_semaphore, #tpu.memory_space<semaphore_mem>>)
      %c1_i32_131 = arith.constant 1 : i32
      %c1_i32_132 = arith.constant 1 : i32
      %c1_i32_133 = arith.constant 1 : i32
      %c0_i32_134 = arith.constant 0 : i32
      %130 = tpu.memref_slice %arg2[%arg0, %c1_i32_131, %122, %c0_i32_134] : memref<2x4x88x128xbf16, #tpu.memory_space<any>> -> memref<1x1x88x128xbf16, #tpu.memory_space<any>>
      %131 = tpu.memref_squeeze %130 : memref<1x1x88x128xbf16, #tpu.memory_space<any>> -> memref<88x128xbf16, #tpu.memory_space<any>>
      %c0_i32_135 = arith.constant 0 : i32
      %c0_i32_136 = arith.constant 0 : i32
      %132 = tpu.memref_slice %arg6[%123, %c1_i32_132, %c0_i32_135, %c0_i32_136] : memref<2x4x88x128xbf16, #tpu.memory_space<vmem>> -> memref<1x1x88x128xbf16, #tpu.memory_space<vmem>>
      %133 = tpu.memref_squeeze %132 : memref<1x1x88x128xbf16, #tpu.memory_space<vmem>> -> memref<88x128xbf16, #tpu.memory_space<vmem>>
      %134 = tpu.memref_slice %arg7[%123, %c1_i32_133] : memref<2x4x!tpu.dma_semaphore, #tpu.memory_space<semaphore_mem>> -> memref<1x1x!tpu.dma_semaphore, #tpu.memory_space<semaphore_mem>>
      %135 = tpu.memref_squeeze %134 : memref<1x1x!tpu.dma_semaphore, #tpu.memory_space<semaphore_mem>> -> memref<!tpu.dma_semaphore, #tpu.memory_space<semaphore_mem>>
      tpu.enqueue_dma source(%131 : memref<88x128xbf16, #tpu.memory_space<any>>) target(%133 : memref<88x128xbf16, #tpu.memory_space<vmem>>) target_semaphore(%135 : memref<!tpu.dma_semaphore, #tpu.memory_space<semaphore_mem>>)
      %c2_i32_137 = arith.constant 2 : i32
      %c2_i32_138 = arith.constant 2 : i32
      %c2_i32_139 = arith.constant 2 : i32
      %c0_i32_140 = arith.constant 0 : i32
      %136 = tpu.memref_slice %arg2[%arg0, %c2_i32_137, %122, %c0_i32_140] : memref<2x4x88x128xbf16, #tpu.memory_space<any>> -> memref<1x1x80x128xbf16, #tpu.memory_space<any>>
      %137 = tpu.memref_squeeze %136 : memref<1x1x80x128xbf16, #tpu.memory_space<any>> -> memref<80x128xbf16, #tpu.memory_space<any>>
      %c0_i32_141 = arith.constant 0 : i32
      %c0_i32_142 = arith.constant 0 : i32
      %138 = tpu.memref_slice %arg6[%123, %c2_i32_138, %c0_i32_141, %c0_i32_142] : memref<2x4x88x128xbf16, #tpu.memory_space<vmem>> -> memref<1x1x80x128xbf16, #tpu.memory_space<vmem>>
      %139 = tpu.memref_squeeze %138 : memref<1x1x80x128xbf16, #tpu.memory_space<vmem>> -> memref<80x128xbf16, #tpu.memory_space<vmem>>
      %140 = tpu.memref_slice %arg7[%123, %c2_i32_139] : memref<2x4x!tpu.dma_semaphore, #tpu.memory_space<semaphore_mem>> -> memref<1x1x!tpu.dma_semaphore, #tpu.memory_space<semaphore_mem>>
      %141 = tpu.memref_squeeze %140 : memref<1x1x!tpu.dma_semaphore, #tpu.memory_space<semaphore_mem>> -> memref<!tpu.dma_semaphore, #tpu.memory_space<semaphore_mem>>
      tpu.enqueue_dma source(%137 : memref<80x128xbf16, #tpu.memory_space<any>>) target(%139 : memref<80x128xbf16, #tpu.memory_space<vmem>>) target_semaphore(%141 : memref<!tpu.dma_semaphore, #tpu.memory_space<semaphore_mem>>)
      %c3_i32_143 = arith.constant 3 : i32
      %c3_i32_144 = arith.constant 3 : i32
      %c3_i32_145 = arith.constant 3 : i32
      %c0_i32_146 = arith.constant 0 : i32
      %142 = tpu.memref_slice %arg2[%arg0, %c3_i32_143, %122, %c0_i32_146] : memref<2x4x88x128xbf16, #tpu.memory_space<any>> -> memref<1x1x72x128xbf16, #tpu.memory_space<any>>
      %143 = tpu.memref_squeeze %142 : memref<1x1x72x128xbf16, #tpu.memory_space<any>> -> memref<72x128xbf16, #tpu.memory_space<any>>
      %c0_i32_147 = arith.constant 0 : i32
      %c0_i32_148 = arith.constant 0 : i32
      %144 = tpu.memref_slice %arg6[%123, %c3_i32_144, %c0_i32_147, %c0_i32_148] : memref<2x4x88x128xbf16, #tpu.memory_space<vmem>> -> memref<1x1x72x128xbf16, #tpu.memory_space<vmem>>
      %145 = tpu.memref_squeeze %144 : memref<1x1x72x128xbf16, #tpu.memory_space<vmem>> -> memref<72x128xbf16, #tpu.memory_space<vmem>>
      %146 = tpu.memref_slice %arg7[%123, %c3_i32_145] : memref<2x4x!tpu.dma_semaphore, #tpu.memory_space<semaphore_mem>> -> memref<1x1x!tpu.dma_semaphore, #tpu.memory_space<semaphore_mem>>
      %147 = tpu.memref_squeeze %146 : memref<1x1x!tpu.dma_semaphore, #tpu.memory_space<semaphore_mem>> -> memref<!tpu.dma_semaphore, #tpu.memory_space<semaphore_mem>>
      tpu.enqueue_dma source(%143 : memref<72x128xbf16, #tpu.memory_space<any>>) target(%145 : memref<72x128xbf16, #tpu.memory_space<vmem>>) target_semaphore(%147 : memref<!tpu.dma_semaphore, #tpu.memory_space<semaphore_mem>>)
    } else {
    }
    %32 = arith.index_cast %3 : i32 to index
    %c0 = arith.constant 0 : index
    %c0_30 = arith.constant 0 : index
    %c0_31 = arith.constant 0 : index
    %33 = vector.load %arg6[%32, %c0, %c0_30, %c0_31] : memref<2x4x88x128xbf16, #tpu.memory_space<vmem>>, vector<1x1x72x128xbf16>
    %34 = vector.shape_cast %33 : vector<1x1x72x128xbf16> to vector<72x128xbf16>
    %c0_32 = arith.constant 0 : index
    %c0_33 = arith.constant 0 : index
    %c0_34 = arith.constant 0 : index
    %35 = vector.load %arg3[%c0_32, %c0_33, %c0_34] : memref<9x128x128xbf16, #tpu.memory_space<vmem>>, vector<1x128x128xbf16>
    %36 = vector.shape_cast %35 : vector<1x128x128xbf16> to vector<128x128xbf16>
    %cst = arith.constant dense<0.000000e+00> : vector<72x128xf32>
    %37 = tpu.matmul %34, %36, %cst {dimension_numbers = #tpu.dot_dimension_numbers<[1], [0], [0], [1], [0, 0, 1, 1], [], []>} : vector<72x128xbf16>, vector<128x128xbf16>, vector<72x128xf32> -> vector<72x128xf32>
    %c0_35 = arith.constant 0 : index
    %c0_36 = arith.constant 0 : index
    %38 = vector.load %arg8[%c0_35, %c0_36] : memref<72x128xf32, #tpu.memory_space<vmem>>, vector<72x128xf32>
    tpu.vector_store %arg8[%c0_35, %c0_36], %37 {strides = array<i32>} : memref<72x128xf32, #tpu.memory_space<vmem>>, vector<72x128xf32>,
    %39 = arith.index_cast %3 : i32 to index
    %c1 = arith.constant 1 : index
    %c0_37 = arith.constant 0 : index
    %c0_38 = arith.constant 0 : index
    %40 = vector.load %arg6[%39, %c1, %c0_37, %c0_38] : memref<2x4x88x128xbf16, #tpu.memory_space<vmem>>, vector<1x1x72x128xbf16>
    %41 = vector.shape_cast %40 : vector<1x1x72x128xbf16> to vector<72x128xbf16>
    %c1_39 = arith.constant 1 : index
    %c0_40 = arith.constant 0 : index
    %c0_41 = arith.constant 0 : index
    %42 = vector.load %arg3[%c1_39, %c0_40, %c0_41] : memref<9x128x128xbf16, #tpu.memory_space<vmem>>, vector<1x128x128xbf16>
    %43 = vector.shape_cast %42 : vector<1x128x128xbf16> to vector<128x128xbf16>
    %cst_42 = arith.constant dense<0.000000e+00> : vector<72x128xf32>
    %44 = tpu.matmul %41, %43, %cst_42 {dimension_numbers = #tpu.dot_dimension_numbers<[1], [0], [0], [1], [0, 0, 1, 1], [], []>} : vector<72x128xbf16>, vector<128x128xbf16>, vector<72x128xf32> -> vector<72x128xf32>
    %c0_43 = arith.constant 0 : index
    %c0_44 = arith.constant 0 : index
    %45 = vector.load %arg8[%c0_43, %c0_44] : memref<72x128xf32, #tpu.memory_space<vmem>>, vector<72x128xf32>
    %46 = arith.addf %45, %44 : vector<72x128xf32>
    %c0_45 = arith.constant 0 : index
    %c0_46 = arith.constant 0 : index
    %47 = vector.load %arg8[%c0_45, %c0_46] : memref<72x128xf32, #tpu.memory_space<vmem>>, vector<72x128xf32>
    tpu.vector_store %arg8[%c0_45, %c0_46], %46 {strides = array<i32>} : memref<72x128xf32, #tpu.memory_space<vmem>>, vector<72x128xf32>,
    %48 = arith.index_cast %3 : i32 to index
    %c0_47 = arith.constant 0 : index
    %c1_48 = arith.constant 1 : index
    %c0_49 = arith.constant 0 : index
    %49 = vector.load %arg6[%48, %c0_47, %c1_48, %c0_49] : memref<2x4x88x128xbf16, #tpu.memory_space<vmem>>, vector<1x1x72x128xbf16>
    %50 = vector.shape_cast %49 : vector<1x1x72x128xbf16> to vector<72x128xbf16>
    %c2 = arith.constant 2 : index
    %c0_50 = arith.constant 0 : index
    %c0_51 = arith.constant 0 : index
    %51 = vector.load %arg3[%c2, %c0_50, %c0_51] : memref<9x128x128xbf16, #tpu.memory_space<vmem>>, vector<1x128x128xbf16>
    %52 = vector.shape_cast %51 : vector<1x128x128xbf16> to vector<128x128xbf16>
    %cst_52 = arith.constant dense<0.000000e+00> : vector<72x128xf32>
    %53 = tpu.matmul %50, %52, %cst_52 {dimension_numbers = #tpu.dot_dimension_numbers<[1], [0], [0], [1], [0, 0, 1, 1], [], []>} : vector<72x128xbf16>, vector<128x128xbf16>, vector<72x128xf32> -> vector<72x128xf32>
    %c0_53 = arith.constant 0 : index
    %c0_54 = arith.constant 0 : index
    %54 = vector.load %arg8[%c0_53, %c0_54] : memref<72x128xf32, #tpu.memory_space<vmem>>, vector<72x128xf32>
    %55 = arith.addf %54, %53 : vector<72x128xf32>
    %c0_55 = arith.constant 0 : index
    %c0_56 = arith.constant 0 : index
    %56 = vector.load %arg8[%c0_55, %c0_56] : memref<72x128xf32, #tpu.memory_space<vmem>>, vector<72x128xf32>
    tpu.vector_store %arg8[%c0_55, %c0_56], %55 {strides = array<i32>} : memref<72x128xf32, #tpu.memory_space<vmem>>, vector<72x128xf32>,
    %57 = arith.index_cast %3 : i32 to index
    %c2_57 = arith.constant 2 : index
    %c0_58 = arith.constant 0 : index
    %c0_59 = arith.constant 0 : index
    %58 = vector.load %arg6[%57, %c2_57, %c0_58, %c0_59] : memref<2x4x88x128xbf16, #tpu.memory_space<vmem>>, vector<1x1x72x128xbf16>
    %59 = vector.shape_cast %58 : vector<1x1x72x128xbf16> to vector<72x128xbf16>
    %c3 = arith.constant 3 : index
    %c0_60 = arith.constant 0 : index
    %c0_61 = arith.constant 0 : index
    %60 = vector.load %arg3[%c3, %c0_60, %c0_61] : memref<9x128x128xbf16, #tpu.memory_space<vmem>>, vector<1x128x128xbf16>
    %61 = vector.shape_cast %60 : vector<1x128x128xbf16> to vector<128x128xbf16>
    %cst_62 = arith.constant dense<0.000000e+00> : vector<72x128xf32>
    %62 = tpu.matmul %59, %61, %cst_62 {dimension_numbers = #tpu.dot_dimension_numbers<[1], [0], [0], [1], [0, 0, 1, 1], [], []>} : vector<72x128xbf16>, vector<128x128xbf16>, vector<72x128xf32> -> vector<72x128xf32>
    %c0_63 = arith.constant 0 : index
    %c0_64 = arith.constant 0 : index
    %63 = vector.load %arg8[%c0_63, %c0_64] : memref<72x128xf32, #tpu.memory_space<vmem>>, vector<72x128xf32>
    %64 = arith.addf %63, %62 : vector<72x128xf32>
    %c0_65 = arith.constant 0 : index
    %c0_66 = arith.constant 0 : index
    %65 = vector.load %arg8[%c0_65, %c0_66] : memref<72x128xf32, #tpu.memory_space<vmem>>, vector<72x128xf32>
    tpu.vector_store %arg8[%c0_65, %c0_66], %64 {strides = array<i32>} : memref<72x128xf32, #tpu.memory_space<vmem>>, vector<72x128xf32>,
    %66 = arith.index_cast %3 : i32 to index
    %c3_67 = arith.constant 3 : index
    %c0_68 = arith.constant 0 : index
    %c0_69 = arith.constant 0 : index
    %67 = vector.load %arg6[%66, %c3_67, %c0_68, %c0_69] : memref<2x4x88x128xbf16, #tpu.memory_space<vmem>>, vector<1x1x72x128xbf16>
    %68 = vector.shape_cast %67 : vector<1x1x72x128xbf16> to vector<72x128xbf16>
    %c4 = arith.constant 4 : index
    %c0_70 = arith.constant 0 : index
    %c0_71 = arith.constant 0 : index
    %69 = vector.load %arg3[%c4, %c0_70, %c0_71] : memref<9x128x128xbf16, #tpu.memory_space<vmem>>, vector<1x128x128xbf16>
    %70 = vector.shape_cast %69 : vector<1x128x128xbf16> to vector<128x128xbf16>
    %cst_72 = arith.constant dense<0.000000e+00> : vector<72x128xf32>
    %71 = tpu.matmul %68, %70, %cst_72 {dimension_numbers = #tpu.dot_dimension_numbers<[1], [0], [0], [1], [0, 0, 1, 1], [], []>} : vector<72x128xbf16>, vector<128x128xbf16>, vector<72x128xf32> -> vector<72x128xf32>
    %c0_73 = arith.constant 0 : index
    %c0_74 = arith.constant 0 : index
    %72 = vector.load %arg8[%c0_73, %c0_74] : memref<72x128xf32, #tpu.memory_space<vmem>>, vector<72x128xf32>
    %73 = arith.addf %72, %71 : vector<72x128xf32>
    %c0_75 = arith.constant 0 : index
    %c0_76 = arith.constant 0 : index
    %74 = vector.load %arg8[%c0_75, %c0_76] : memref<72x128xf32, #tpu.memory_space<vmem>>, vector<72x128xf32>
    tpu.vector_store %arg8[%c0_75, %c0_76], %73 {strides = array<i32>} : memref<72x128xf32, #tpu.memory_space<vmem>>, vector<72x128xf32>,
    %75 = arith.index_cast %3 : i32 to index
    %c2_77 = arith.constant 2 : index
    %c1_78 = arith.constant 1 : index
    %c0_79 = arith.constant 0 : index
    %76 = vector.load %arg6[%75, %c2_77, %c1_78, %c0_79] : memref<2x4x88x128xbf16, #tpu.memory_space<vmem>>, vector<1x1x72x128xbf16>
    %77 = vector.shape_cast %76 : vector<1x1x72x128xbf16> to vector<72x128xbf16>
    %c5 = arith.constant 5 : index
    %c0_80 = arith.constant 0 : index
    %c0_81 = arith.constant 0 : index
    %78 = vector.load %arg3[%c5, %c0_80, %c0_81] : memref<9x128x128xbf16, #tpu.memory_space<vmem>>, vector<1x128x128xbf16>
    %79 = vector.shape_cast %78 : vector<1x128x128xbf16> to vector<128x128xbf16>
    %cst_82 = arith.constant dense<0.000000e+00> : vector<72x128xf32>
    %80 = tpu.matmul %77, %79, %cst_82 {dimension_numbers = #tpu.dot_dimension_numbers<[1], [0], [0], [1], [0, 0, 1, 1], [], []>} : vector<72x128xbf16>, vector<128x128xbf16>, vector<72x128xf32> -> vector<72x128xf32>
    %c0_83 = arith.constant 0 : index
    %c0_84 = arith.constant 0 : index
    %81 = vector.load %arg8[%c0_83, %c0_84] : memref<72x128xf32, #tpu.memory_space<vmem>>, vector<72x128xf32>
    %82 = arith.addf %81, %80 : vector<72x128xf32>
    %c0_85 = arith.constant 0 : index
    %c0_86 = arith.constant 0 : index
    %83 = vector.load %arg8[%c0_85, %c0_86] : memref<72x128xf32, #tpu.memory_space<vmem>>, vector<72x128xf32>
    tpu.vector_store %arg8[%c0_85, %c0_86], %82 {strides = array<i32>} : memref<72x128xf32, #tpu.memory_space<vmem>>, vector<72x128xf32>,
    %84 = arith.index_cast %3 : i32 to index
    %c0_87 = arith.constant 0 : index
    %c9 = arith.constant 9 : index
    %c0_88 = arith.constant 0 : index
    %85 = vector.load %arg6[%84, %c0_87, %c9, %c0_88] : memref<2x4x88x128xbf16, #tpu.memory_space<vmem>>, vector<1x1x72x128xbf16>
    %86 = vector.shape_cast %85 : vector<1x1x72x128xbf16> to vector<72x128xbf16>
    %c6 = arith.constant 6 : index
    %c0_89 = arith.constant 0 : index
    %c0_90 = arith.constant 0 : index
    %87 = vector.load %arg3[%c6, %c0_89, %c0_90] : memref<9x128x128xbf16, #tpu.memory_space<vmem>>, vector<1x128x128xbf16>
    %88 = vector.shape_cast %87 : vector<1x128x128xbf16> to vector<128x128xbf16>
    %cst_91 = arith.constant dense<0.000000e+00> : vector<72x128xf32>
    %89 = tpu.matmul %86, %88, %cst_91 {dimension_numbers = #tpu.dot_dimension_numbers<[1], [0], [0], [1], [0, 0, 1, 1], [], []>} : vector<72x128xbf16>, vector<128x128xbf16>, vector<72x128xf32> -> vector<72x128xf32>
    %c0_92 = arith.constant 0 : index
    %c0_93 = arith.constant 0 : index
    %90 = vector.load %arg8[%c0_92, %c0_93] : memref<72x128xf32, #tpu.memory_space<vmem>>, vector<72x128xf32>
    %91 = arith.addf %90, %89 : vector<72x128xf32>
    %c0_94 = arith.constant 0 : index
    %c0_95 = arith.constant 0 : index
    %92 = vector.load %arg8[%c0_94, %c0_95] : memref<72x128xf32, #tpu.memory_space<vmem>>, vector<72x128xf32>
    tpu.vector_store %arg8[%c0_94, %c0_95], %91 {strides = array<i32>} : memref<72x128xf32, #tpu.memory_space<vmem>>, vector<72x128xf32>,
    %93 = arith.index_cast %3 : i32 to index
    %c1_96 = arith.constant 1 : index
    %c9_97 = arith.constant 9 : index
    %c0_98 = arith.constant 0 : index
    %94 = vector.load %arg6[%93, %c1_96, %c9_97, %c0_98] : memref<2x4x88x128xbf16, #tpu.memory_space<vmem>>, vector<1x1x72x128xbf16>
    %95 = vector.shape_cast %94 : vector<1x1x72x128xbf16> to vector<72x128xbf16>
    %c7 = arith.constant 7 : index
    %c0_99 = arith.constant 0 : index
    %c0_100 = arith.constant 0 : index
    %96 = vector.load %arg3[%c7, %c0_99, %c0_100] : memref<9x128x128xbf16, #tpu.memory_space<vmem>>, vector<1x128x128xbf16>
    %97 = vector.shape_cast %96 : vector<1x128x128xbf16> to vector<128x128xbf16>
    %cst_101 = arith.constant dense<0.000000e+00> : vector<72x128xf32>
    %98 = tpu.matmul %95, %97, %cst_101 {dimension_numbers = #tpu.dot_dimension_numbers<[1], [0], [0], [1], [0, 0, 1, 1], [], []>} : vector<72x128xbf16>, vector<128x128xbf16>, vector<72x128xf32> -> vector<72x128xf32>
    %c0_102 = arith.constant 0 : index
    %c0_103 = arith.constant 0 : index
    %99 = vector.load %arg8[%c0_102, %c0_103] : memref<72x128xf32, #tpu.memory_space<vmem>>, vector<72x128xf32>
    %100 = arith.addf %99, %98 : vector<72x128xf32>
    %c0_104 = arith.constant 0 : index
    %c0_105 = arith.constant 0 : index
    %101 = vector.load %arg8[%c0_104, %c0_105] : memref<72x128xf32, #tpu.memory_space<vmem>>, vector<72x128xf32>
    tpu.vector_store %arg8[%c0_104, %c0_105], %100 {strides = array<i32>} : memref<72x128xf32, #tpu.memory_space<vmem>>, vector<72x128xf32>,
    %102 = arith.index_cast %3 : i32 to index
    %c0_106 = arith.constant 0 : index
    %c10 = arith.constant 10 : index
    %c0_107 = arith.constant 0 : index
    %103 = vector.load %arg6[%102, %c0_106, %c10, %c0_107] : memref<2x4x88x128xbf16, #tpu.memory_space<vmem>>, vector<1x1x72x128xbf16>
    %104 = vector.shape_cast %103 : vector<1x1x72x128xbf16> to vector<72x128xbf16>
    %c8 = arith.constant 8 : index
    %c0_108 = arith.constant 0 : index
    %c0_109 = arith.constant 0 : index
    %105 = vector.load %arg3[%c8, %c0_108, %c0_109] : memref<9x128x128xbf16, #tpu.memory_space<vmem>>, vector<1x128x128xbf16>
    %106 = vector.shape_cast %105 : vector<1x128x128xbf16> to vector<128x128xbf16>
    %cst_110 = arith.constant dense<0.000000e+00> : vector<72x128xf32>
    %107 = tpu.matmul %104, %106, %cst_110 {dimension_numbers = #tpu.dot_dimension_numbers<[1], [0], [0], [1], [0, 0, 1, 1], [], []>} : vector<72x128xbf16>, vector<128x128xbf16>, vector<72x128xf32> -> vector<72x128xf32>
    %c0_111 = arith.constant 0 : index
    %c0_112 = arith.constant 0 : index
    %108 = vector.load %arg8[%c0_111, %c0_112] : memref<72x128xf32, #tpu.memory_space<vmem>>, vector<72x128xf32>
    %109 = arith.addf %108, %107 : vector<72x128xf32>
    %c0_113 = arith.constant 0 : index
    %c0_114 = arith.constant 0 : index
    %110 = vector.load %arg8[%c0_113, %c0_114] : memref<72x128xf32, #tpu.memory_space<vmem>>, vector<72x128xf32>
    tpu.vector_store %arg8[%c0_113, %c0_114], %109 {strides = array<i32>} : memref<72x128xf32, #tpu.memory_space<vmem>>, vector<72x128xf32>,
    %c0_115 = arith.constant 0 : index
    %c0_116 = arith.constant 0 : index
    %111 = vector.load %arg8[%c0_115, %c0_116] : memref<72x128xf32, #tpu.memory_space<vmem>>, vector<72x128xf32>
    %c0_117 = arith.constant 0 : index
    %c0_118 = arith.constant 0 : index
    %112 = vector.load %arg4[%c0_117, %c0_118] : memref<1x128xf32, #tpu.memory_space<vmem>>, vector<1x128xf32>
    %113 = vector.broadcast %112 : vector<1x128xf32> to vector<72x128xf32>
    %114 = arith.addf %111, %113 : vector<72x128xf32>
    %cst_119 = arith.constant 0.000000e+00 : f32
    %115 = vector.broadcast %cst_119 : f32 to vector<72x128xf32>
    %116 = arith.maximumf %114, %115 : vector<72x128xf32>
    %117 = arith.truncf %116 : vector<72x128xf32> to vector<72x128xbf16>
    %c0_120 = arith.constant 0 : index
    %c0_121 = arith.constant 0 : index
    %c0_122 = arith.constant 0 : index
    %118 = vector.load %arg5[%c0_120, %c0_121, %c0_122] : memref<1x72x128xbf16, #tpu.memory_space<vmem>>, vector<1x72x128xbf16>
    %119 = vector.shape_cast %118 : vector<1x72x128xbf16> to vector<72x128xbf16>
    %120 = vector.shape_cast %117 : vector<72x128xbf16> to vector<1x72x128xbf16>
    tpu.vector_store %arg5[%c0_120, %c0_121, %c0_122], %120 {strides = array<i32>} : memref<1x72x128xbf16, #tpu.memory_space<vmem>>, vector<1x72x128xbf16>,
    return
  }
  func.func @transform_1(%arg0: i32, %arg1: i32) -> (i32, i32, i32) {
    %c0_i32 = arith.constant 0 : i32
    %c0_i32_0 = arith.constant 0 : i32
    %c0_i32_1 = arith.constant 0 : i32
    %c0_i32_2 = arith.constant 0 : i32
    return %c0_i32, %c0_i32_0, %c0_i32_1 : i32, i32, i32
  }
  func.func @transform_2(%arg0: i32, %arg1: i32) -> (i32, i32) {
    %c0_i32 = arith.constant 0 : i32
    %c0_i32_0 = arith.constant 0 : i32
    %c0_i32_1 = arith.constant 0 : i32
    return %c0_i32, %c0_i32_0 : i32, i32
  }
  func.func @transform_3(%arg0: i32, %arg1: i32) -> (i32, i32, i32) {
    %c0_i32 = arith.constant 0 : i32
    %c0_i32_0 = arith.constant 0 : i32
    return %arg0, %arg1, %c0_i32 : i32, i32, i32
  }
}

</mosaic_0001>

<llo_original>
// kernel: tpu_custom_call.1
$region0: #{tpu_custom_call.1}
  #allocation0 [shape = 'u32[]', space=smem, size = 0x4, offset = 0x4, fixed_abs, tag = 'smem constant byte address 0x4 - core index']
  #allocation1 [shape = 'u32[144,128]{1,0:T(1,128)}', space=vmem, size = 0x12000, scoped, tag = 'internal scratch']
  #allocation2 [shape = 'bf16[2,4,88,128]{3,2,1,0:T(8,128)(2,1)}', space=vmem, size = 0x2c000, scoped, tag = 'scratch operand']
  #allocation3 [shape = 's32[8]{0}', space=sflag, size = 0x20, scoped, tag = 'scratch operand']
  #allocation4 [shape = 'f32[72,128]{1,0:T(8,128)}', space=vmem, size = 0x9000, scoped, tag = 'scratch operand']
  #allocation9 [shape = 's32[]', space=sflag, size = 0x4, offset = 0, fixed_abs, tag = 'sflag constant byte address 0x0 - dummy sync flag']
  #allocation10 [shape = 's32[]', space=sflag, size = 0x4, offset = 0, fixed_abs, tag = 'sflag constant byte address 0x0 - dummy sync flag']
  #allocation11 [shape = 'u32[]', space=smem, size = 0x4, offset = 0x44, fixed_abs, tag = 'smem constant byte address 0x44 - assertion arg 0']
  #allocation12 [shape = 'u32[]', space=smem, size = 0x4, offset = 0x48, fixed_abs, tag = 'smem constant byte address 0x48 - assertion arg 1']
  #allocation13 [shape = 's32[]', space=sflag, size = 0x4, offset = 0, fixed_abs, tag = 'sflag constant byte address 0x0 - dummy sync flag']
  #allocation14 [shape = 's32[]', space=sflag, size = 0x4, offset = 0, fixed_abs, tag = 'sflag constant byte address 0x0 - dummy sync flag']
  #allocation15 [shape = 's32[]', space=sflag, size = 0x4, offset = 0, fixed_abs, tag = 'sflag constant byte address 0x0 - dummy sync flag']
  #allocation16 [shape = 's32[]', space=sflag, size = 0x4, offset = 0, fixed_abs, tag = 'sflag constant byte address 0x0 - dummy sync flag']
  #allocation17 [shape = 's32[]', space=sflag, size = 0x4, offset = 0, fixed_abs, tag = 'sflag constant byte address 0x0 - dummy sync flag']
  #allocation18 [shape = 's32[]', space=sflag, size = 0x4, offset = 0, fixed_abs, tag = 'sflag constant byte address 0x0 - dummy sync flag']
  #allocation19 [shape = 's32[]', space=sflag, size = 0x4, offset = 0, fixed_abs, tag = 'sflag constant byte address 0x0 - dummy sync flag']
  #allocation20 [shape = 's32[]', space=sflag, size = 0x4, offset = 0, fixed_abs, tag = 'sflag constant byte address 0x0 - dummy sync flag']
  #allocation21 [shape = 's32[]', space=sflag, size = 0x4, offset = 0, fixed_abs, tag = 'sflag constant byte address 0x0 - dummy sync flag']
  #allocation22 [shape = 's32[]', space=sflag, size = 0x4, offset = 0, fixed_abs, tag = 'sflag constant byte address 0x0 - dummy sync flag']
  #allocation23 [shape = 's32[]', space=sflag, size = 0x4, offset = 0, fixed_abs, tag = 'sflag constant byte address 0x0 - dummy sync flag']
  #allocation24 [shape = 's32[]', space=sflag, size = 0x4, offset = 0, fixed_abs, tag = 'sflag constant byte address 0x0 - dummy sync flag']
  #allocation25 [shape = 's32[]', space=sflag, size = 0x4, offset = 0, fixed_abs, tag = 'sflag constant byte address 0x0 - dummy sync flag']
  #allocation26 [shape = 's32[]', space=sflag, size = 0x4, offset = 0, fixed_abs, tag = 'sflag constant byte address 0x0 - dummy sync flag']
  %s0 = inlined_call_operand.hbm [shape: bf16[2,4,88,128], index: 0, kind: input, shape index: {}]
  %s1 = inlined_call_operand.hbm [shape: bf16[9,128,128], index: 1, kind: input, shape index: {}]
  %s2 = inlined_call_operand.vmem [shape: f32[1,128], index: 2, kind: input, shape index: {}]
  %s3 = inlined_call_operand.hbm [shape: bf16[2,72,128], index: 3, kind: output, shape index: {}]
  %s4 = sld [smem:[#allocation0]]
  $region85: #{tpu_custom_call.1} parent=0
    _
  %s6 = ssub.s32 1, %s4
  %s7 = scalar_select 0, %s6, %s4
  $region1: #{tpu_custom_call.1} parent=0
    #allocation5 [shape = 'u8[294912]{0}', space=vmem, size = 0x48000, scoped, tag = 'input window, operand 1, single buffered']
    #allocation6 [shape = 's32[2]{0}', space=sflag, size = 0x8, scoped, tag = 'scoped memory for tpu_custom_call.1']
    #allocation7 [shape = 's32[2]{0}', space=sflag, size = 0x8, scoped, tag = 'scoped memory for tpu_custom_call.1']
    #allocation8 [shape = 'u8[36864]{0}', space=vmem, size = 0x9000, scoped, tag = 'output window, operand 0']
    %8 = vsyncpa [#allocation6], 0
    %9 = vsyncpa [#allocation7], 0
    %s10 = scalar_lea.sflag [#allocation7], 1
    %11 = vsyncpa %s10, 0
    loop: start=0, step=1, limit=4
    $region2: #{tpu_custom_call.1} parent=1 // loop_pre_header
      _
    $region3: #{tpu_custom_call.1} parent=1 // loop_header
      %s13 = sphi 0, %s17
      %p14 = scmp.ge.s32.totalorder %s13, 4
      %s20 = sphi 0, %s32
      %s21 = sphi 0, %s28
      %s22 = sphi 0, %s20
      %s23 = sphi 0, %s21
      %s24 = sphi 0, %s22
      %s25 = sphi 0, %s23
      %s33 = sphi 0, %s33
      %s35 = sphi 0, %s33
      %s36 = sphi 0, %s35
      %s50 = sphi 0, %s36
      %s54 = sphi 0, %s54
      %s56 = sphi 0, %s54
      %s57 = sphi 0, %s56
      %s71 = sphi 0, %s57
      %s79 = sphi 0, %s81
      %s82 = sphi 0, %s79
      %s83 = sphi 0, %s82
      %s99 = sphi 0, %s83
    $region4: #{tpu_custom_call.1} parent=1 // loop_header_branch
      %16 = sbr.rel (%p14) target = $region8
    $region5: #{tpu_custom_call.1} parent=1 // loop_body
      %s18 = ssub.s32 %s13, 1
      %s19 = ssub.s32 %s13, 2
      %s26 = sadd.s32 1, %s21
      %p27 = scmp.ge.s32.totalorder %s26, 1
      %s28 = scalar_select %p27, 0, %s26
      %s29 = sadd.s32 1, %s20
      %s30 = scalar_select %p27, %s29, %s20
      %p31 = scmp.ge.s32.totalorder %s30, 2
      %s32 = scalar_select %p31, 0, %s30
      %s34 = sadd.s32 %s33, 1
      %p37 = scmp.eq.s32.totalorder %s13, 1
      %p38 = scmp.ne.s32.totalorder %s33, %s35
      %p39 = scmp.eq.s32.totalorder %s13, 0
      %p40 = por %p38, %p39
      %p41 = scmp.ne.s32.totalorder %s33, %s35
      %p42 = scmp.eq.s32.totalorder %s18, 1
      %p43 = por %p41, %p42
      %p44 = scmp.ne.s32.totalorder %s35, %s36
      %p45 = scmp.eq.s32.totalorder %s18, 0
      %p46 = por %p44, %p45
      %p47 = scmp.ne.s32.totalorder %s35, %s36
      %p48 = scmp.eq.s32.totalorder %s19, 1
      %p49 = por %p47, %p48
      %p51 = scmp.ne.s32.totalorder %s36, %s50
      %p52 = scmp.eq.s32.totalorder %s19, 0
      %p53 = por %p51, %p52
      %s55 = sadd.s32 %s54, 1
      %p58 = scmp.eq.s32.totalorder %s13, 1
      %p59 = scmp.ne.s32.totalorder %s54, %s56
      %p60 = scmp.eq.s32.totalorder %s13, 0
      %p61 = por %p59, %p60
      %p62 = scmp.ne.s32.totalorder %s54, %s56
      %p63 = scmp.eq.s32.totalorder %s18, 1
      %p64 = por %p62, %p63
      %p65 = scmp.ne.s32.totalorder %s56, %s57
      %p66 = scmp.eq.s32.totalorder %s18, 0
      %p67 = por %p65, %p66
      %p68 = scmp.ne.s32.totalorder %s56, %s57
      %p69 = scmp.eq.s32.totalorder %s19, 1
      %p70 = por %p68, %p69
      %p72 = scmp.ne.s32.totalorder %s57, %s71
      %p73 = scmp.eq.s32.totalorder %s19, 0
      %p74 = por %p72, %p73
      %s75 = ssub.s32 %s20, %s32
      %s76 = ssub.s32 %s21, %s28
      %s77 = sor.u32 %s75, %s76
      %p78 = scmp.eq.s32.totalorder %s77, 0
      %s80 = sadd.s32 %s79, 1
      %s81 = scalar_select %p78, %s79, %s80
      %p84 = pneg %p78
      %p85 = scmp.eq.s32.totalorder %s13, 1
      %p86 = por %p84, %p85
      %p87 = scmp.ne.s32.totalorder %s79, %s82
      %p88 = scmp.eq.s32.totalorder %s13, 0
      %p89 = por %p87, %p88
      %p90 = scmp.ne.s32.totalorder %s79, %s82
      %p91 = scmp.eq.s32.totalorder %s18, 1
      %p92 = por %p90, %p91
      %p93 = scmp.ne.s32.totalorder %s82, %s83
      %p94 = scmp.eq.s32.totalorder %s18, 0
      %p95 = por %p93, %p94
      %p96 = scmp.ne.s32.totalorder %s82, %s83
      %p97 = scmp.eq.s32.totalorder %s19, 1
      %p98 = por %p96, %p97
      %p100 = scmp.ne.s32.totalorder %s83, %s99
      %p101 = scmp.eq.s32.totalorder %s19, 0
      %p102 = por %p100, %p101
      %p103 = scmp.le.s32.totalorder 1, %s13
      %p104 = scmp.lt.s32.totalorder %s13, 3
      %p105 = pnand %p103, %p104
      %p106 = pneg %p105
      // Predicated region
      $region9: #{tpu_custom_call.1} parent=5 // pred_check
        _
      $region10: #{tpu_custom_call.1} parent=5 // pred_check_branch
        %108 = sbr.rel (%p105) target = $region12
      $region11: #{tpu_custom_call.1} parent=5 // pred_region
        %s109 = ssub.s32 %s13, 1
        // Predicated region
        $region13: #{tpu_custom_call.1} parent=11 // pred_check
          %p110 = pneg %p46
        $region14: #{tpu_custom_call.1} parent=11 // pred_check_branch
          %112 = sbr.rel (%p110) target = $region16
        $region15: #{tpu_custom_call.1} parent=11 // pred_region
          %s114 = ssub.s32 9216, 9216
          %115 = vsyncadd [#allocation6], %s114
          %s116 = sshll.u32 [#allocation5], 4
          %s117 = int_to_ptr.vmem [resolvable:$true] %s116
          %122 = dma.hbm_to_vmem [thread:$0]  %s1, 9216, %s117, [#allocation6], 64, 64, 4
        $region16: #{tpu_custom_call.1} parent=11 // pred_fallthru
          _
        // Predicated region
        $region17: #{tpu_custom_call.1} parent=11 // pred_check
          %p123 = pneg %p67
        $region18: #{tpu_custom_call.1} parent=11 // pred_check_branch
          %125 = sbr.rel (%p123) target = $region20
        $region19: #{tpu_custom_call.1} parent=11 // pred_region
          _
        $region20: #{tpu_custom_call.1} parent=11 // pred_fallthru
          _
      $region12: #{tpu_custom_call.1} parent=5 // pred_fallthru
        _
      %p126 = scmp.lt.s32.totalorder %s13, 2
      // Predicated region
      $region21: #{tpu_custom_call.1} parent=5 // pred_check
        %p127 = pneg %p126
      $region22: #{tpu_custom_call.1} parent=5 // pred_check_branch
        %129 = sbr.rel (%p127) target = $region24
      $region23: #{tpu_custom_call.1} parent=5 // pred_region
        _
      $region24: #{tpu_custom_call.1} parent=5 // pred_fallthru
        _
      %p130 = scmp.le.s32.totalorder 1, %s13
      %p131 = scmp.lt.s32.totalorder %s13, 3
      %p132 = pnand %p130, %p131
      %p133 = pneg %p132
      // Predicated region
      $region25: #{tpu_custom_call.1} parent=5 // pred_check
        _
      $region26: #{tpu_custom_call.1} parent=5 // pred_check_branch
        %135 = sbr.rel (%p132) target = $region28
      $region27: #{tpu_custom_call.1} parent=5 // pred_region
        %s136 = ssub.s32 %s13, 1
        // Predicated region
        $region29: #{tpu_custom_call.1} parent=27 // pred_check
          %p137 = pneg %p46
        $region30: #{tpu_custom_call.1} parent=27 // pred_check_branch
          %139 = sbr.rel (%p137) target = $region32
        $region31: #{tpu_custom_call.1} parent=27 // pred_region
          %140 = dma.done [#allocation6], 9216
        $region32: #{tpu_custom_call.1} parent=27 // pred_fallthru
          _
        %p141 = pneg %p46
        %p142 = pneg %p43
        %p143 = pneg %p67
        %p144 = pneg %p64
        %p145 = pneg %p95
        %p146 = pneg %p92
        %s147 = sand.u32 %s82, 1
        %s148 = scalar_lea.sflag [#allocation7], %s147
        %s149 = sand.u32 %s82, 1
        %s150 = smul.addr %s149, 36
        %s151 = scalar_lea.vmem [#allocation8], %s150
        %s152 = smul.u32 9, %s23
        %p154 = scmp.eq.s32.totalorder %s23, 0
        // Predicated region
        $region33: #{tpu_custom_call.1} parent=27 // pred_check
          %p155 = pneg %p154
        $region34: #{tpu_custom_call.1} parent=27 // pred_check_branch
          %157 = sbr.rel (%p155) target = $region36
        $region35: #{tpu_custom_call.1} parent=27 // pred_region
          %s158 = smul.u32 %s22, 44
          %s159 = smul.addr %s158, 64
          %s160 = scalar_lea.hbm %s0, %s159
          // Predicated region
          $region37: #{tpu_custom_call.1} parent=35 // pred_check
            _
          $region38: #{tpu_custom_call.1} parent=35 // pred_check_branch
            %162 = sbr.rel target = $region40
          $region39: #{tpu_custom_call.1} parent=35 // pred_region
            %163 = sst [smem:[#allocation11]] [#allocation10]
            %164 = sst [smem:[#allocation12]] [#allocation9]
          $region40: #{tpu_custom_call.1} parent=35 // pred_fallthru
            _
          %166 = shalt.err (0)
          %s168 = sshll.u32 [#allocation2], 4
          %s169 = int_to_ptr.vmem [resolvable:$true] %s168
          %171 = dma.hbm_to_vmem [thread:$0]  %s160, 704, %s169, [#allocation3]
          %s172 = sadd.s32 11, %s158
          %s173 = smul.addr %s172, 64
          %s174 = scalar_lea.hbm %s0, %s173
          %s175 = scalar_lea.vmem [#allocation2], 44
          %s176 = scalar_lea.sflag [#allocation3], 1
          // Predicated region
          $region41: #{tpu_custom_call.1} parent=35 // pred_check
            _
          $region42: #{tpu_custom_call.1} parent=35 // pred_check_branch
            %178 = sbr.rel target = $region44
          $region43: #{tpu_custom_call.1} parent=35 // pred_region
            %179 = sst [smem:[#allocation11]] [#allocation14]
            %180 = sst [smem:[#allocation12]] [#allocation13]
          $region44: #{tpu_custom_call.1} parent=35 // pred_fallthru
            _
          %182 = shalt.err (0)
          %s184 = sshll.u32 %s175, 4
          %s185 = int_to_ptr.vmem [resolvable:$true] %s184
          %187 = dma.hbm_to_vmem [thread:$0]  %s174, 704, %s185, %s176
          %s188 = sadd.s32 22, %s158
          %s189 = smul.addr %s188, 64
          %s190 = scalar_lea.hbm %s0, %s189
          %s191 = scalar_lea.vmem [#allocation2], 88
          %s192 = scalar_lea.sflag [#allocation3], 2
          // Predicated region
          $region45: #{tpu_custom_call.1} parent=35 // pred_check
            _
          $region46: #{tpu_custom_call.1} parent=35 // pred_check_branch
            %194 = sbr.rel target = $region48
          $region47: #{tpu_custom_call.1} parent=35 // pred_region
            %195 = sst [smem:[#allocation11]] [#allocation16]
            %196 = sst [smem:[#allocation12]] [#allocation15]
          $region48: #{tpu_custom_call.1} parent=35 // pred_fallthru
            _
          %198 = shalt.err (0)
          %s200 = sshll.u32 %s191, 4
          %s201 = int_to_ptr.vmem [resolvable:$true] %s200
          %203 = dma.hbm_to_vmem [thread:$0]  %s190, 640, %s201, %s192
          %s204 = sadd.s32 33, %s158
          %s205 = smul.addr %s204, 64
          %s206 = scalar_lea.hbm %s0, %s205
          %s207 = scalar_lea.vmem [#allocation2], 132
          %s208 = scalar_lea.sflag [#allocation3], 3
          // Predicated region
          $region49: #{tpu_custom_call.1} parent=35 // pred_check
            _
          $region50: #{tpu_custom_call.1} parent=35 // pred_check_branch
            %210 = sbr.rel target = $region52
          $region51: #{tpu_custom_call.1} parent=35 // pred_region
            %211 = sst [smem:[#allocation11]] [#allocation18]
            %212 = sst [smem:[#allocation12]] [#allocation17]
          $region52: #{tpu_custom_call.1} parent=35 // pred_fallthru
            _
          %214 = shalt.err (0)
          %s216 = sshll.u32 %s207, 4
          %s217 = int_to_ptr.vmem [resolvable:$true] %s216
          %219 = dma.hbm_to_vmem [thread:$0]  %s206, 576, %s217, %s208
        $region36: #{tpu_custom_call.1} parent=27 // pred_fallthru
          _
        %s220 = sand.u32 %s23, 1
        %s221 = smul.u32 %s220, 44
        %s222 = smul.addr %s221, 4
        %s223 = scalar_lea.vmem [#allocation2], %s222
        %s224 = smul.u32 %s220, 4
        %s225 = scalar_lea.sflag [#allocation3], %s224
        %s226 = smul.u32 4, 11
        %s227 = smul.u32 %s226, 1
        %s228 = sshll.u32 %s227, 4
        %229 = dma.done %s225, %s228
        %s230 = sadd.s32 11, %s221
        %s231 = smul.addr %s230, 4
        %s232 = scalar_lea.vmem [#allocation2], %s231
        %s233 = sadd.s32 1, %s224
        %s234 = scalar_lea.sflag [#allocation3], %s233
        %s235 = sshll.u32 %s227, 4
        %236 = dma.done %s234, %s235
        %s237 = sadd.s32 22, %s221
        %s238 = smul.addr %s237, 4
        %s239 = scalar_lea.vmem [#allocation2], %s238
        %s240 = sadd.s32 2, %s224
        %s241 = scalar_lea.sflag [#allocation3], %s240
        %s242 = smul.u32 4, 10
        %s243 = smul.u32 %s242, 1
        %s244 = sshll.u32 %s243, 4
        %245 = dma.done %s241, %s244
        %s246 = sadd.s32 33, %s221
        %s247 = smul.addr %s246, 4
        %s248 = scalar_lea.vmem [#allocation2], %s247
        %s249 = sadd.s32 3, %s224
        %s250 = scalar_lea.sflag [#allocation3], %s249
        %s251 = smul.u32 4, 9
        %s252 = smul.u32 %s251, 1
        %s253 = sshll.u32 %s252, 4
        %254 = dma.done %s250, %s253
        %s255 = sadd.s32 %s23, 1
        %p256 = scmp.lt.s32.totalorder %s255, 1
        // Predicated region
        $region53: #{tpu_custom_call.1} parent=27 // pred_check
          %p257 = pneg %p256
        $region54: #{tpu_custom_call.1} parent=27 // pred_check_branch
          %259 = sbr.rel (%p257) target = $region56
        $region55: #{tpu_custom_call.1} parent=27 // pred_region
          %s260 = smul.u32 %s255, 72
          %s261 = ssub.s32 1, %s220
          %s262 = sshra.s32 %s260, 3
          %s263 = sand.u32 %s260, 7
          %s264 = smul.u32 %s22, 44
          %s265 = sadd.s32 %s262, %s264
          %s266 = smul.addr %s265, 64
          %s267 = scalar_lea.hbm %s0, %s266
          %s268 = smul.u32 %s261, 44
          %s269 = smul.addr %s268, 4
          %s270 = scalar_lea.vmem [#allocation2], %s269
          %s271 = smul.u32 %s261, 4
          %s272 = scalar_lea.sflag [#allocation3], %s271
          // Predicated region
          $region57: #{tpu_custom_call.1} parent=55 // pred_check
            _
          $region58: #{tpu_custom_call.1} parent=55 // pred_check_branch
            %274 = sbr.rel target = $region60
          $region59: #{tpu_custom_call.1} parent=55 // pred_region
            %275 = sst [smem:[#allocation11]] [#allocation20]
            %276 = sst [smem:[#allocation12]] [#allocation19]
          $region60: #{tpu_custom_call.1} parent=55 // pred_fallthru
            _
          %278 = shalt.err (0)
          %s280 = sshll.u32 %s270, 4
          %s281 = int_to_ptr.vmem [resolvable:$true] %s280
          %283 = dma.hbm_to_vmem [thread:$0]  %s267, 704, %s281, %s272
          %s284 = sadd.s32 %s262, 11
          %s285 = sadd.s32 %s284, %s264
          %s286 = smul.addr %s285, 64
          %s287 = scalar_lea.hbm %s0, %s286
          %s288 = sadd.s32 11, %s268
          %s289 = smul.addr %s288, 4
          %s290 = scalar_lea.vmem [#allocation2], %s289
          %s291 = sadd.s32 1, %s271
          %s292 = scalar_lea.sflag [#allocation3], %s291
          // Predicated region
          $region61: #{tpu_custom_call.1} parent=55 // pred_check
            _
          $region62: #{tpu_custom_call.1} parent=55 // pred_check_branch
            %294 = sbr.rel target = $region64
          $region63: #{tpu_custom_call.1} parent=55 // pred_region
            %295 = sst [smem:[#allocation11]] [#allocation22]
            %296 = sst [smem:[#allocation12]] [#allocation21]
          $region64: #{tpu_custom_call.1} parent=55 // pred_fallthru
            _
          %298 = shalt.err (0)
          %s300 = sshll.u32 %s290, 4
          %s301 = int_to_ptr.vmem [resolvable:$true] %s300
          %303 = dma.hbm_to_vmem [thread:$0]  %s287, 704, %s301, %s292
          %s304 = sadd.s32 %s262, 22
          %s305 = sadd.s32 %s304, %s264
          %s306 = smul.addr %s305, 64
          %s307 = scalar_lea.hbm %s0, %s306
          %s308 = sadd.s32 22, %s268
          %s309 = smul.addr %s308, 4
          %s310 = scalar_lea.vmem [#allocation2], %s309
          %s311 = sadd.s32 2, %s271
          %s312 = scalar_lea.sflag [#allocation3], %s311
          // Predicated region
          $region65: #{tpu_custom_call.1} parent=55 // pred_check
            _
          $region66: #{tpu_custom_call.1} parent=55 // pred_check_branch
            %314 = sbr.rel target = $region68
          $region67: #{tpu_custom_call.1} parent=55 // pred_region
            %315 = sst [smem:[#allocation11]] [#allocation24]
            %316 = sst [smem:[#allocation12]] [#allocation23]
          $region68: #{tpu_custom_call.1} parent=55 // pred_fallthru
            _
          %318 = shalt.err (0)
          %s320 = sshll.u32 %s310, 4
          %s321 = int_to_ptr.vmem [resolvable:$true] %s320
          %323 = dma.hbm_to_vmem [thread:$0]  %s307, 640, %s321, %s312
          %s324 = sadd.s32 %s262, 33
          %s325 = sadd.s32 %s324, %s264
          %s326 = smul.addr %s325, 64
          %s327 = scalar_lea.hbm %s0, %s326
          %s328 = sadd.s32 33, %s268
          %s329 = smul.addr %s328, 4
          %s330 = scalar_lea.vmem [#allocation2], %s329
          %s331 = sadd.s32 3, %s271
          %s332 = scalar_lea.sflag [#allocation3], %s331
          // Predicated region
          $region69: #{tpu_custom_call.1} parent=55 // pred_check
            _
          $region70: #{tpu_custom_call.1} parent=55 // pred_check_branch
            %334 = sbr.rel target = $region72
          $region71: #{tpu_custom_call.1} parent=55 // pred_region
            %335 = sst [smem:[#allocation11]] [#allocation26]
            %336 = sst [smem:[#allocation12]] [#allocation25]
          $region72: #{tpu_custom_call.1} parent=55 // pred_fallthru
            _
          %338 = shalt.err (0)
          %s340 = sshll.u32 %s330, 4
          %s341 = int_to_ptr.vmem [resolvable:$true] %s340
          %343 = dma.hbm_to_vmem [thread:$0]  %s327, 576, %s341, %s332
        $region56: #{tpu_custom_call.1} parent=27 // pred_fallthru
          _
        %v344 = vld [vmem:[%s223] sm:$0xf]
        %v345 = vld [vmem:[%s223 + $0x4] sm:$0xf]
        %v346 = vld [vmem:[%s223 + $0x8] sm:$0xf]
        %v347 = vld [vmem:[%s223 + $0xc] sm:$0xf]
        %v348 = vld [vmem:[%s223 + $0x10] sm:$0xf]
        %v349 = vld [vmem:[%s223 + $0x14] sm:$0xf]
        %v350 = vld [vmem:[%s223 + $0x18] sm:$0xf]
        %v351 = vld [vmem:[%s223 + $0x1c] sm:$0xf]
        %v352 = vld [vmem:[%s223 + $0x20] sm:$0xf]
        %v353 = vld [vmem:[#allocation5] sm:$0xf]
        %v354 = vld [vmem:[#allocation5 + $0x4] sm:$0xf]
        %v355 = vld [vmem:[#allocation5 + $0x8] sm:$0xf]
        %v356 = vld [vmem:[#allocation5 + $0xc] sm:$0xf]
        %v357 = vld [vmem:[#allocation5 + $0x10] sm:$0xf]
        %v358 = vld [vmem:[#allocation5 + $0x14] sm:$0xf]
        %v359 = vld [vmem:[#allocation5 + $0x18] sm:$0xf]
        %v360 = vld [vmem:[#allocation5 + $0x1c] sm:$0xf]
        %v361 = vld [vmem:[#allocation5 + $0x20] sm:$0xf]
        %v362 = vld [vmem:[#allocation5 + $0x24] sm:$0xf]
        %v363 = vld [vmem:[#allocation5 + $0x28] sm:$0xf]
        %v364 = vld [vmem:[#allocation5 + $0x2c] sm:$0xf]
        %v365 = vld [vmem:[#allocation5 + $0x30] sm:$0xf]
        %v366 = vld [vmem:[#allocation5 + $0x34] sm:$0xf]
        %v367 = vld [vmem:[#allocation5 + $0x38] sm:$0xf]
        %v368 = vld [vmem:[#allocation5 + $0x3c] sm:$0xf]
        %v378 = vunpack.c.l.b16 %v344
        %v379 = vunpack.c.l.b16 %v345
        %v380 = vunpack.c.l.b16 %v346
        %v381 = vunpack.c.l.b16 %v347
        %v382 = vunpack.c.l.b16 %v348
        %v383 = vunpack.c.l.b16 %v349
        %v384 = vunpack.c.l.b16 %v350
        %v385 = vunpack.c.l.b16 %v351
        %v386 = vunpack.c.l.b16 %v352
        %v387 = vpack.c.b16 %v379, %v378
        %v388 = vpack.c.b16 %v381, %v380
        %v389 = vpack.c.b16 %v383, %v382
        %v390 = vpack.c.b16 %v385, %v384
        %v391 = vpack.c.b16 %v386, %v386
        %v413 = vunpack.c.l.b16 %v353
        %v414 = vunpack.c.l.b16 %v354
        %v415 = vunpack.c.l.b16 %v355
        %v416 = vunpack.c.l.b16 %v356
        %v417 = vunpack.c.l.b16 %v357
        %v418 = vunpack.c.l.b16 %v358
        %v419 = vunpack.c.l.b16 %v359
        %v420 = vunpack.c.l.b16 %v360
        %v421 = vunpack.c.l.b16 %v361
        %v422 = vunpack.c.l.b16 %v362
        %v423 = vunpack.c.l.b16 %v363
        %v424 = vunpack.c.l.b16 %v364
        %v425 = vunpack.c.l.b16 %v365
        %v426 = vunpack.c.l.b16 %v366
        %v427 = vunpack.c.l.b16 %v367
        %v428 = vunpack.c.l.b16 %v368
        %v429 = vpack.c.b16 %v414, %v413
        %v430 = vpack.c.b16 %v416, %v415
        %v431 = vpack.c.b16 %v418, %v417
        %v432 = vpack.c.b16 %v420, %v419
        %v433 = vpack.c.b16 %v422, %v421
        %v434 = vpack.c.b16 %v424, %v423
        %v435 = vpack.c.b16 %v426, %v425
        %v436 = vpack.c.b16 %v428, %v427
        %445 = vmatprep.subr.bf16.mxu0 0
        %446 = vmatpush1.bf16.msra.mxu0 %v436
        %447 = vmatprep.subr.bf16.mxu0 0
        %448 = vmatpush1.bf16.msra.mxu0 %v435
        %449 = vmatprep.subr.bf16.mxu0 0
        %450 = vmatpush1.bf16.msra.mxu0 %v434
        %451 = vmatprep.subr.bf16.mxu0 0
        %452 = vmatpush1.bf16.msra.mxu0 %v433
        %453 = vmatprep.subr.bf16.mxu0 0
        %454 = vmatpush1.bf16.msra.mxu0 %v432
        %455 = vmatprep.subr.bf16.mxu0 0
        %456 = vmatpush1.bf16.msra.mxu0 %v431
        %457 = vmatprep.subr.bf16.mxu0 0
        %458 = vmatpush1.bf16.msra.mxu0 %v430
        %459 = vmatprep.subr.bf16.mxu0 0
        %460 = vmatpush1.bf16.msra.mxu0 %v429
        %461 = vmatprep.subr.bf16.mxu0 0
        %462 = vmatpush2.bf16.msra.mxu0 0
        %463 = vmatprep.subr.bf16.mxu0 0
        %464 = vmatpush2.bf16.msra.mxu0 0
        %465 = vmatprep.subr.bf16.mxu0 0
        %466 = vmatpush2.bf16.msra.mxu0 0
        %467 = vmatprep.subr.bf16.mxu0 0
        %468 = vmatpush2.bf16.msra.mxu0 0
        %469 = vmatprep.subr.bf16.mxu0 0
        %470 = vmatpush2.bf16.msra.mxu0 0
        %471 = vmatprep.subr.bf16.mxu0 0
        %472 = vmatpush2.bf16.msra.mxu0 0
        %473 = vmatprep.subr.bf16.mxu0 0
        %474 = vmatpush2.bf16.msra.mxu0 0
        %475 = vmatprep.subr.bf16.mxu0 0
        %476 = vmatpush2.bf16.msra.mxu0 0
        %477 = vmatprep.mubr.bf16.mxu0 0
        %478 = vmatmul.mubr.bf16.gmra.mxu0 %v387
        %v479 = vpop.f32.mrf.mxu0
        %v480 = vadd.f32 0.0, %v479
        %v481 = vpop.f32.mrf.mxu0
        %v482 = vpop.f32.mrf.mxu0
        %v483 = vadd.f32 0.0, %v482
        %v484 = vpop.f32.mrf.mxu0
        %485 = vmatprep.mubr.bf16.mxu0 0
        %486 = vmatmul.mubr.bf16.gmra.mxu0 %v388
        %v487 = vpop.f32.mrf.mxu0
        %v488 = vadd.f32 0.0, %v487
        %v489 = vpop.f32.mrf.mxu0
        %v490 = vpop.f32.mrf.mxu0
        %v491 = vadd.f32 0.0, %v490
        %v492 = vpop.f32.mrf.mxu0
        %493 = vmatprep.mubr.bf16.mxu0 0
        %494 = vmatmul.mubr.bf16.gmra.mxu0 %v389
        %v495 = vpop.f32.mrf.mxu0
        %v496 = vadd.f32 0.0, %v495
        %v497 = vpop.f32.mrf.mxu0
        %v498 = vpop.f32.mrf.mxu0
        %v499 = vadd.f32 0.0, %v498
        %v500 = vpop.f32.mrf.mxu0
        %501 = vmatprep.mubr.bf16.mxu0 0
        %502 = vmatmul.mubr.bf16.gmra.mxu0 %v390
        %v503 = vpop.f32.mrf.mxu0
        %v504 = vadd.f32 0.0, %v503
        %v505 = vpop.f32.mrf.mxu0
        %v506 = vpop.f32.mrf.mxu0
        %v507 = vadd.f32 0.0, %v506
        %v508 = vpop.f32.mrf.mxu0
        %509 = vmatprep.mubr.bf16.mxu0 0
        %510 = vmatmul.mubr.bf16.gmra.mxu0 %v391
        %v511 = vpop.f32.mrf.mxu0
        %v512 = vadd.f32 0.0, %v511
        %v513 = vpop.f32.mrf.mxu0
        %v514 = vpop.f32.mrf.mxu0
        %v515 = vpop.f32.mrf.mxu0
        %516 = vdwg.mxu0
        %517 = vst [vmem:[#allocation4] sm:$0xff] %v480
        %518 = vst [vmem:[#allocation4 + $0x8] sm:$0xff] %v483
        %519 = vst [vmem:[#allocation4 + $0x10] sm:$0xff] %v488
        %520 = vst [vmem:[#allocation4 + $0x18] sm:$0xff] %v491
        %521 = vst [vmem:[#allocation4 + $0x20] sm:$0xff] %v496
        %522 = vst [vmem:[#allocation4 + $0x28] sm:$0xff] %v499
        %523 = vst [vmem:[#allocation4 + $0x30] sm:$0xff] %v504
        %524 = vst [vmem:[#allocation4 + $0x38] sm:$0xff] %v507
        %525 = vst [vmem:[#allocation4 + $0x40] sm:$0xff] %v512
        %v526 = vld [vmem:[%s232] sm:$0xf]
        %v527 = vld [vmem:[%s232 + $0x4] sm:$0xf]
        %v528 = vld [vmem:[%s232 + $0x8] sm:$0xf]
        %v529 = vld [vmem:[%s232 + $0xc] sm:$0xf]
        %v530 = vld [vmem:[%s232 + $0x10] sm:$0xf]
        %v531 = vld [vmem:[%s232 + $0x14] sm:$0xf]
        %v532 = vld [vmem:[%s232 + $0x18] sm:$0xf]
        %v533 = vld [vmem:[%s232 + $0x1c] sm:$0xf]
        %v534 = vld [vmem:[%s232 + $0x20] sm:$0xf]
        %s535 = scalar_lea.vmem [#allocation5], 64
        %v536 = vld [vmem:[%s535] sm:$0xf]
        %v537 = vld [vmem:[%s535 + $0x4] sm:$0xf]
        %v538 = vld [vmem:[%s535 + $0x8] sm:$0xf]
        %v539 = vld [vmem:[%s535 + $0xc] sm:$0xf]
        %v540 = vld [vmem:[%s535 + $0x10] sm:$0xf]
        %v541 = vld [vmem:[%s535 + $0x14] sm:$0xf]
        %v542 = vld [vmem:[%s535 + $0x18] sm:$0xf]
        %v543 = vld [vmem:[%s535 + $0x1c] sm:$0xf]
        %v544 = vld [vmem:[%s535 + $0x20] sm:$0xf]
        %v545 = vld [vmem:[%s535 + $0x24] sm:$0xf]
        %v546 = vld [vmem:[%s535 + $0x28] sm:$0xf]
        %v547 = vld [vmem:[%s535 + $0x2c] sm:$0xf]
        %v548 = vld [vmem:[%s535 + $0x30] sm:$0xf]
        %v549 = vld [vmem:[%s535 + $0x34] sm:$0xf]
        %v550 = vld [vmem:[%s535 + $0x38] sm:$0xf]
        %v551 = vld [vmem:[%s535 + $0x3c] sm:$0xf]
        %v561 = vunpack.c.l.b16 %v526
        %v562 = vunpack.c.l.b16 %v527
        %v563 = vunpack.c.l.b16 %v528
        %v564 = vunpack.c.l.b16 %v529
        %v565 = vunpack.c.l.b16 %v530
        %v566 = vunpack.c.l.b16 %v531
        %v567 = vunpack.c.l.b16 %v532
        %v568 = vunpack.c.l.b16 %v533
        %v569 = vunpack.c.l.b16 %v534
        %v570 = vpack.c.b16 %v562, %v561
        %v571 = vpack.c.b16 %v564, %v563
        %v572 = vpack.c.b16 %v566, %v565
        %v573 = vpack.c.b16 %v568, %v567
        %v574 = vpack.c.b16 %v569, %v569
        %v596 = vunpack.c.l.b16 %v536
        %v597 = vunpack.c.l.b16 %v537
        %v598 = vunpack.c.l.b16 %v538
        %v599 = vunpack.c.l.b16 %v539
        %v600 = vunpack.c.l.b16 %v540
        %v601 = vunpack.c.l.b16 %v541
        %v602 = vunpack.c.l.b16 %v542
        %v603 = vunpack.c.l.b16 %v543
        %v604 = vunpack.c.l.b16 %v544
        %v605 = vunpack.c.l.b16 %v545
        %v606 = vunpack.c.l.b16 %v546
        %v607 = vunpack.c.l.b16 %v547
        %v608 = vunpack.c.l.b16 %v548
        %v609 = vunpack.c.l.b16 %v549
        %v610 = vunpack.c.l.b16 %v550
        %v611 = vunpack.c.l.b16 %v551
        %v612 = vpack.c.b16 %v597, %v596
        %v613 = vpack.c.b16 %v599, %v598
        %v614 = vpack.c.b16 %v601, %v600
        %v615 = vpack.c.b16 %v603, %v602
        %v616 = vpack.c.b16 %v605, %v604
        %v617 = vpack.c.b16 %v607, %v606
        %v618 = vpack.c.b16 %v609, %v608
        %v619 = vpack.c.b16 %v611, %v610
        %628 = vmatprep.subr.bf16.mxu0 0
        %629 = vmatpush1.bf16.msra.mxu0 %v619
        %630 = vmatprep.subr.bf16.mxu0 0
        %631 = vmatpush1.bf16.msra.mxu0 %v618
        %632 = vmatprep.subr.bf16.mxu0 0
        %633 = vmatpush1.bf16.msra.mxu0 %v617
        %634 = vmatprep.subr.bf16.mxu0 0
        %635 = vmatpush1.bf16.msra.mxu0 %v616
        %636 = vmatprep.subr.bf16.mxu0 0
        %637 = vmatpush1.bf16.msra.mxu0 %v615
        %638 = vmatprep.subr.bf16.mxu0 0
        %639 = vmatpush1.bf16.msra.mxu0 %v614
        %640 = vmatprep.subr.bf16.mxu0 0
        %641 = vmatpush1.bf16.msra.mxu0 %v613
        %642 = vmatprep.subr.bf16.mxu0 0
        %643 = vmatpush1.bf16.msra.mxu0 %v612
        %644 = vmatprep.subr.bf16.mxu0 0
        %645 = vmatpush2.bf16.msra.mxu0 0
        %646 = vmatprep.subr.bf16.mxu0 0
        %647 = vmatpush2.bf16.msra.mxu0 0
        %648 = vmatprep.subr.bf16.mxu0 0
        %649 = vmatpush2.bf16.msra.mxu0 0
        %650 = vmatprep.subr.bf16.mxu0 0
        %651 = vmatpush2.bf16.msra.mxu0 0
        %652 = vmatprep.subr.bf16.mxu0 0
        %653 = vmatpush2.bf16.msra.mxu0 0
        %654 = vmatprep.subr.bf16.mxu0 0
        %655 = vmatpush2.bf16.msra.mxu0 0
        %656 = vmatprep.subr.bf16.mxu0 0
        %657 = vmatpush2.bf16.msra.mxu0 0
        %658 = vmatprep.subr.bf16.mxu0 0
        %659 = vmatpush2.bf16.msra.mxu0 0
        %660 = vmatprep.mubr.bf16.mxu0 0
        %661 = vmatmul.mubr.bf16.gmra.mxu0 %v570
        %v662 = vpop.f32.mrf.mxu0
        %v663 = vadd.f32 0.0, %v662
        %v664 = vpop.f32.mrf.mxu0
        %v665 = vpop.f32.mrf.mxu0
        %v666 = vadd.f32 0.0, %v665
        %v667 = vpop.f32.mrf.mxu0
        %668 = vmatprep.mubr.bf16.mxu0 0
        %669 = vmatmul.mubr.bf16.gmra.mxu0 %v571
        %v670 = vpop.f32.mrf.mxu0
        %v671 = vadd.f32 0.0, %v670
        %v672 = vpop.f32.mrf.mxu0
        %v673 = vpop.f32.mrf.mxu0
        %v674 = vadd.f32 0.0, %v673
        %v675 = vpop.f32.mrf.mxu0
        %676 = vmatprep.mubr.bf16.mxu0 0
        %677 = vmatmul.mubr.bf16.gmra.mxu0 %v572
        %v678 = vpop.f32.mrf.mxu0
        %v679 = vadd.f32 0.0, %v678
        %v680 = vpop.f32.mrf.mxu0
        %v681 = vpop.f32.mrf.mxu0
        %v682 = vadd.f32 0.0, %v681
        %v683 = vpop.f32.mrf.mxu0
        %684 = vmatprep.mubr.bf16.mxu0 0
        %685 = vmatmul.mubr.bf16.gmra.mxu0 %v573
        %v686 = vpop.f32.mrf.mxu0
        %v687 = vadd.f32 0.0, %v686
        %v688 = vpop.f32.mrf.mxu0
        %v689 = vpop.f32.mrf.mxu0
        %v690 = vadd.f32 0.0, %v689
        %v691 = vpop.f32.mrf.mxu0
        %692 = vmatprep.mubr.bf16.mxu0 0
        %693 = vmatmul.mubr.bf16.gmra.mxu0 %v574
        %v694 = vpop.f32.mrf.mxu0
        %v695 = vadd.f32 0.0, %v694
        %v696 = vpop.f32.mrf.mxu0
        %v697 = vpop.f32.mrf.mxu0
        %v698 = vpop.f32.mrf.mxu0
        %699 = vdwg.mxu0
        %v700 = vld [vmem:[#allocation4] sm:$0xff]
        %v701 = vld [vmem:[#allocation4 + $0x8] sm:$0xff]
        %v702 = vld [vmem:[#allocation4 + $0x10] sm:$0xff]
        %v703 = vld [vmem:[#allocation4 + $0x18] sm:$0xff]
        %v704 = vld [vmem:[#allocation4 + $0x20] sm:$0xff]
        %v705 = vld [vmem:[#allocation4 + $0x28] sm:$0xff]
        %v706 = vld [vmem:[#allocation4 + $0x30] sm:$0xff]
        %v707 = vld [vmem:[#allocation4 + $0x38] sm:$0xff]
        %v708 = vld [vmem:[#allocation4 + $0x40] sm:$0xff]
        %v709 = vadd.f32 %v700, %v663
        %v710 = vadd.f32 %v701, %v666
        %v711 = vadd.f32 %v702, %v671
        %v712 = vadd.f32 %v703, %v674
        %v713 = vadd.f32 %v704, %v679
        %v714 = vadd.f32 %v705, %v682
        %v715 = vadd.f32 %v706, %v687
        %v716 = vadd.f32 %v707, %v690
        %v717 = vadd.f32 %v708, %v695
        %718 = vst [vmem:[#allocation4] sm:$0xff] %v709
        %719 = vst [vmem:[#allocation4 + $0x8] sm:$0xff] %v710
        %720 = vst [vmem:[#allocation4 + $0x10] sm:$0xff] %v711
        %721 = vst [vmem:[#allocation4 + $0x18] sm:$0xff] %v712
        %722 = vst [vmem:[#allocation4 + $0x20] sm:$0xff] %v713
        %723 = vst [vmem:[#allocation4 + $0x28] sm:$0xff] %v714
        %724 = vst [vmem:[#allocation4 + $0x30] sm:$0xff] %v715
        %725 = vst [vmem:[#allocation4 + $0x38] sm:$0xff] %v716
        %726 = vst [vmem:[#allocation4 + $0x40] sm:$0xff] %v717
        %v727 = vld [vmem:[%s223] sm:$0xf]
        %v728 = vld [vmem:[%s223 + $0x4] sm:$0xf]
        %v729 = vld [vmem:[%s223 + $0x8] sm:$0xf]
        %v730 = vld [vmem:[%s223 + $0xc] sm:$0xf]
        %v731 = vld [vmem:[%s223 + $0x10] sm:$0xf]
        %v732 = vld [vmem:[%s223 + $0x14] sm:$0xf]
        %v733 = vld [vmem:[%s223 + $0x18] sm:$0xf]
        %v734 = vld [vmem:[%s223 + $0x1c] sm:$0xf]
        %v735 = vld [vmem:[%s223 + $0x20] sm:$0xf]
        %v736 = vld [vmem:[%s223 + $0x24] sm:$0x1]
        %s737 = scalar_lea.vmem [#allocation5], 128
        %v738 = vld [vmem:[%s737] sm:$0xf]
        %v739 = vld [vmem:[%s737 + $0x4] sm:$0xf]
        %v740 = vld [vmem:[%s737 + $0x8] sm:$0xf]
        %v741 = vld [vmem:[%s737 + $0xc] sm:$0xf]
        %v742 = vld [vmem:[%s737 + $0x10] sm:$0xf]
        %v743 = vld [vmem:[%s737 + $0x14] sm:$0xf]
        %v744 = vld [vmem:[%s737 + $0x18] sm:$0xf]
        %v745 = vld [vmem:[%s737 + $0x1c] sm:$0xf]
        %v746 = vld [vmem:[%s737 + $0x20] sm:$0xf]
        %v747 = vld [vmem:[%s737 + $0x24] sm:$0xf]
        %v748 = vld [vmem:[%s737 + $0x28] sm:$0xf]
        %v749 = vld [vmem:[%s737 + $0x2c] sm:$0xf]
        %v750 = vld [vmem:[%s737 + $0x30] sm:$0xf]
        %v751 = vld [vmem:[%s737 + $0x34] sm:$0xf]
        %v752 = vld [vmem:[%s737 + $0x38] sm:$0xf]
        %v753 = vld [vmem:[%s737 + $0x3c] sm:$0xf]
        %v764 = vunpack.c.l.b16 %v727
        %v765 = vunpack.c.l.b16 %v728
        %v766 = vunpack.c.l.b16 %v729
        %v767 = vunpack.c.l.b16 %v730
        %v768 = vunpack.c.l.b16 %v731
        %v769 = vunpack.c.l.b16 %v732
        %v770 = vunpack.c.l.b16 %v733
        %v771 = vunpack.c.l.b16 %v734
        %v772 = vunpack.c.l.b16 %v735
        %v773 = vunpack.c.l.b16 %v736
        %v774 = vpack.c.b16 %v765, %v764
        %v775 = vpack.c.b16 %v767, %v766
        %v776 = vpack.c.b16 %v769, %v768
        %v777 = vpack.c.b16 %v771, %v770
        %v778 = vpack.c.b16 %v773, %v772
        %vm779 = vsmask.f32 7424
        %v781 = vshrl.u32 %v774, 16
        %v783 = vshll.u32 %v774, 16
        %v785 = vrot.slane %v783, 1
        %v786 = vor.u32 %v781, %v785
        %v788 = vshll.u32 %v775, 16
        %v790 = vrot.slane %v788, 1
        %v791 = vsel %vm779, %v786, %v790
        %v792 = vshrl.u32 %v775, 16
        %v794 = vor.u32 %v792, %v790
        %v796 = vshll.u32 %v776, 16
        %v798 = vrot.slane %v796, 1
        %v799 = vsel %vm779, %v794, %v798
        %v800 = vshrl.u32 %v776, 16
        %v802 = vor.u32 %v800, %v798
        %v804 = vshll.u32 %v777, 16
        %v806 = vrot.slane %v804, 1
        %v807 = vsel %vm779, %v802, %v806
        %v808 = vshrl.u32 %v777, 16
        %v810 = vor.u32 %v808, %v806
        %v812 = vshll.u32 %v778, 16
        %v814 = vrot.slane %v812, 1
        %v815 = vsel %vm779, %v810, %v814
        %v816 = vshrl.u32 %v778, 16
        %v818 = vor.u32 %v816, %v814
        %v840 = vunpack.c.l.b16 %v738
        %v841 = vunpack.c.l.b16 %v739
        %v842 = vunpack.c.l.b16 %v740
        %v843 = vunpack.c.l.b16 %v741
        %v844 = vunpack.c.l.b16 %v742
        %v845 = vunpack.c.l.b16 %v743
        %v846 = vunpack.c.l.b16 %v744
        %v847 = vunpack.c.l.b16 %v745
        %v848 = vunpack.c.l.b16 %v746
        %v849 = vunpack.c.l.b16 %v747
        %v850 = vunpack.c.l.b16 %v748
        %v851 = vunpack.c.l.b16 %v749
        %v852 = vunpack.c.l.b16 %v750
        %v853 = vunpack.c.l.b16 %v751
        %v854 = vunpack.c.l.b16 %v752
        %v855 = vunpack.c.l.b16 %v753
        %v856 = vpack.c.b16 %v841, %v840
        %v857 = vpack.c.b16 %v843, %v842
        %v858 = vpack.c.b16 %v845, %v844
        %v859 = vpack.c.b16 %v847, %v846
        %v860 = vpack.c.b16 %v849, %v848
        %v861 = vpack.c.b16 %v851, %v850
        %v862 = vpack.c.b16 %v853, %v852
        %v863 = vpack.c.b16 %v855, %v854
        %872 = vmatprep.subr.bf16.mxu0 0
        %873 = vmatpush1.bf16.msra.mxu0 %v863
        %874 = vmatprep.subr.bf16.mxu0 0
        %875 = vmatpush1.bf16.msra.mxu0 %v862
        %876 = vmatprep.subr.bf16.mxu0 0
        %877 = vmatpush1.bf16.msra.mxu0 %v861
        %878 = vmatprep.subr.bf16.mxu0 0
        %879 = vmatpush1.bf16.msra.mxu0 %v860
        %880 = vmatprep.subr.bf16.mxu0 0
        %881 = vmatpush1.bf16.msra.mxu0 %v859
        %882 = vmatprep.subr.bf16.mxu0 0
        %883 = vmatpush1.bf16.msra.mxu0 %v858
        %884 = vmatprep.subr.bf16.mxu0 0
        %885 = vmatpush1.bf16.msra.mxu0 %v857
        %886 = vmatprep.subr.bf16.mxu0 0
        %887 = vmatpush1.bf16.msra.mxu0 %v856
        %888 = vmatprep.subr.bf16.mxu0 0
        %889 = vmatpush2.bf16.msra.mxu0 0
        %890 = vmatprep.subr.bf16.mxu0 0
        %891 = vmatpush2.bf16.msra.mxu0 0
        %892 = vmatprep.subr.bf16.mxu0 0
        %893 = vmatpush2.bf16.msra.mxu0 0
        %894 = vmatprep.subr.bf16.mxu0 0
        %895 = vmatpush2.bf16.msra.mxu0 0
        %896 = vmatprep.subr.bf16.mxu0 0
        %897 = vmatpush2.bf16.msra.mxu0 0
        %898 = vmatprep.subr.bf16.mxu0 0
        %899 = vmatpush2.bf16.msra.mxu0 0
        %900 = vmatprep.subr.bf16.mxu0 0
        %901 = vmatpush2.bf16.msra.mxu0 0
        %902 = vmatprep.subr.bf16.mxu0 0
        %903 = vmatpush2.bf16.msra.mxu0 0
        %904 = vmatprep.mubr.bf16.mxu0 0
        %905 = vmatmul.mubr.bf16.gmra.mxu0 %v791
        %v906 = vpop.f32.mrf.mxu0
        %v907 = vadd.f32 0.0, %v906
        %v908 = vpop.f32.mrf.mxu0
        %v909 = vpop.f32.mrf.mxu0
        %v910 = vadd.f32 0.0, %v909
        %v911 = vpop.f32.mrf.mxu0
        %912 = vmatprep.mubr.bf16.mxu0 0
        %913 = vmatmul.mubr.bf16.gmra.mxu0 %v799
        %v914 = vpop.f32.mrf.mxu0
        %v915 = vadd.f32 0.0, %v914
        %v916 = vpop.f32.mrf.mxu0
        %v917 = vpop.f32.mrf.mxu0
        %v918 = vadd.f32 0.0, %v917
        %v919 = vpop.f32.mrf.mxu0
        %920 = vmatprep.mubr.bf16.mxu0 0
        %921 = vmatmul.mubr.bf16.gmra.mxu0 %v807
        %v922 = vpop.f32.mrf.mxu0
        %v923 = vadd.f32 0.0, %v922
        %v924 = vpop.f32.mrf.mxu0
        %v925 = vpop.f32.mrf.mxu0
        %v926 = vadd.f32 0.0, %v925
        %v927 = vpop.f32.mrf.mxu0
        %928 = vmatprep.mubr.bf16.mxu0 0
        %929 = vmatmul.mubr.bf16.gmra.mxu0 %v815
        %v930 = vpop.f32.mrf.mxu0
        %v931 = vadd.f32 0.0, %v930
        %v932 = vpop.f32.mrf.mxu0
        %v933 = vpop.f32.mrf.mxu0
        %v934 = vadd.f32 0.0, %v933
        %v935 = vpop.f32.mrf.mxu0
        %936 = vmatprep.mubr.bf16.mxu0 0
        %937 = vmatmul.mubr.bf16.gmra.mxu0 %v818
        %v938 = vpop.f32.mrf.mxu0
        %v939 = vadd.f32 0.0, %v938
        %v940 = vpop.f32.mrf.mxu0
        %v941 = vpop.f32.mrf.mxu0
        %v942 = vpop.f32.mrf.mxu0
        %943 = vdwg.mxu0
        %v944 = vld [vmem:[#allocation4] sm:$0xff]
        %v945 = vld [vmem:[#allocation4 + $0x8] sm:$0xff]
        %v946 = vld [vmem:[#allocation4 + $0x10] sm:$0xff]
        %v947 = vld [vmem:[#allocation4 + $0x18] sm:$0xff]
        %v948 = vld [vmem:[#allocation4 + $0x20] sm:$0xff]
        %v949 = vld [vmem:[#allocation4 + $0x28] sm:$0xff]
        %v950 = vld [vmem:[#allocation4 + $0x30] sm:$0xff]
        %v951 = vld [vmem:[#allocation4 + $0x38] sm:$0xff]
        %v952 = vld [vmem:[#allocation4 + $0x40] sm:$0xff]
        %v953 = vadd.f32 %v944, %v907
        %v954 = vadd.f32 %v945, %v910
        %v955 = vadd.f32 %v946, %v915
        %v956 = vadd.f32 %v947, %v918
        %v957 = vadd.f32 %v948, %v923
        %v958 = vadd.f32 %v949, %v926
        %v959 = vadd.f32 %v950, %v931
        %v960 = vadd.f32 %v951, %v934
        %v961 = vadd.f32 %v952, %v939
        %962 = vst [vmem:[#allocation4] sm:$0xff] %v953
        %963 = vst [vmem:[#allocation4 + $0x8] sm:$0xff] %v954
        %964 = vst [vmem:[#allocation4 + $0x10] sm:$0xff] %v955
        %965 = vst [vmem:[#allocation4 + $0x18] sm:$0xff] %v956
        %966 = vst [vmem:[#allocation4 + $0x20] sm:$0xff] %v957
        %967 = vst [vmem:[#allocation4 + $0x28] sm:$0xff] %v958
        %968 = vst [vmem:[#allocation4 + $0x30] sm:$0xff] %v959
        %969 = vst [vmem:[#allocation4 + $0x38] sm:$0xff] %v960
        %970 = vst [vmem:[#allocation4 + $0x40] sm:$0xff] %v961
        %v971 = vld [vmem:[%s239] sm:$0xf]
        %v972 = vld [vmem:[%s239 + $0x4] sm:$0xf]
        %v973 = vld [vmem:[%s239 + $0x8] sm:$0xf]
        %v974 = vld [vmem:[%s239 + $0xc] sm:$0xf]
        %v975 = vld [vmem:[%s239 + $0x10] sm:$0xf]
        %v976 = vld [vmem:[%s239 + $0x14] sm:$0xf]
        %v977 = vld [vmem:[%s239 + $0x18] sm:$0xf]
        %v978 = vld [vmem:[%s239 + $0x1c] sm:$0xf]
        %v979 = vld [vmem:[%s239 + $0x20] sm:$0xf]
        %s980 = scalar_lea.vmem [#allocation5], 192
        %v981 = vld [vmem:[%s980] sm:$0xf]
        %v982 = vld [vmem:[%s980 + $0x4] sm:$0xf]
        %v983 = vld [vmem:[%s980 + $0x8] sm:$0xf]
        %v984 = vld [vmem:[%s980 + $0xc] sm:$0xf]
        %v985 = vld [vmem:[%s980 + $0x10] sm:$0xf]
        %v986 = vld [vmem:[%s980 + $0x14] sm:$0xf]
        %v987 = vld [vmem:[%s980 + $0x18] sm:$0xf]
        %v988 = vld [vmem:[%s980 + $0x1c] sm:$0xf]
        %v989 = vld [vmem:[%s980 + $0x20] sm:$0xf]
        %v990 = vld [vmem:[%s980 + $0x24] sm:$0xf]
        %v991 = vld [vmem:[%s980 + $0x28] sm:$0xf]
        %v992 = vld [vmem:[%s980 + $0x2c] sm:$0xf]
        %v993 = vld [vmem:[%s980 + $0x30] sm:$0xf]
        %v994 = vld [vmem:[%s980 + $0x34] sm:$0xf]
        %v995 = vld [vmem:[%s980 + $0x38] sm:$0xf]
        %v996 = vld [vmem:[%s980 + $0x3c] sm:$0xf]
        %v1006 = vunpack.c.l.b16 %v971
        %v1007 = vunpack.c.l.b16 %v972
        %v1008 = vunpack.c.l.b16 %v973
        %v1009 = vunpack.c.l.b16 %v974
        %v1010 = vunpack.c.l.b16 %v975
        %v1011 = vunpack.c.l.b16 %v976
        %v1012 = vunpack.c.l.b16 %v977
        %v1013 = vunpack.c.l.b16 %v978
        %v1014 = vunpack.c.l.b16 %v979
        %v1015 = vpack.c.b16 %v1007, %v1006
        %v1016 = vpack.c.b16 %v1009, %v1008
        %v1017 = vpack.c.b16 %v1011, %v1010
        %v1018 = vpack.c.b16 %v1013, %v1012
        %v1019 = vpack.c.b16 %v1014, %v1014
        %v1041 = vunpack.c.l.b16 %v981
        %v1042 = vunpack.c.l.b16 %v982
        %v1043 = vunpack.c.l.b16 %v983
        %v1044 = vunpack.c.l.b16 %v984
        %v1045 = vunpack.c.l.b16 %v985
        %v1046 = vunpack.c.l.b16 %v986
        %v1047 = vunpack.c.l.b16 %v987
        %v1048 = vunpack.c.l.b16 %v988
        %v1049 = vunpack.c.l.b16 %v989
        %v1050 = vunpack.c.l.b16 %v990
        %v1051 = vunpack.c.l.b16 %v991
        %v1052 = vunpack.c.l.b16 %v992
        %v1053 = vunpack.c.l.b16 %v993
        %v1054 = vunpack.c.l.b16 %v994
        %v1055 = vunpack.c.l.b16 %v995
        %v1056 = vunpack.c.l.b16 %v996
        %v1057 = vpack.c.b16 %v1042, %v1041
        %v1058 = vpack.c.b16 %v1044, %v1043
        %v1059 = vpack.c.b16 %v1046, %v1045
        %v1060 = vpack.c.b16 %v1048, %v1047
        %v1061 = vpack.c.b16 %v1050, %v1049
        %v1062 = vpack.c.b16 %v1052, %v1051
        %v1063 = vpack.c.b16 %v1054, %v1053
        %v1064 = vpack.c.b16 %v1056, %v1055
        %1073 = vmatprep.subr.bf16.mxu0 0
        %1074 = vmatpush1.bf16.msra.mxu0 %v1064
        %1075 = vmatprep.subr.bf16.mxu0 0
        %1076 = vmatpush1.bf16.msra.mxu0 %v1063
        %1077 = vmatprep.subr.bf16.mxu0 0
        %1078 = vmatpush1.bf16.msra.mxu0 %v1062
        %1079 = vmatprep.subr.bf16.mxu0 0
        %1080 = vmatpush1.bf16.msra.mxu0 %v1061
        %1081 = vmatprep.subr.bf16.mxu0 0
        %1082 = vmatpush1.bf16.msra.mxu0 %v1060
        %1083 = vmatprep.subr.bf16.mxu0 0
        %1084 = vmatpush1.bf16.msra.mxu0 %v1059
        %1085 = vmatprep.subr.bf16.mxu0 0
        %1086 = vmatpush1.bf16.msra.mxu0 %v1058
        %1087 = vmatprep.subr.bf16.mxu0 0
        %1088 = vmatpush1.bf16.msra.mxu0 %v1057
        %1089 = vmatprep.subr.bf16.mxu0 0
        %1090 = vmatpush2.bf16.msra.mxu0 0
        %1091 = vmatprep.subr.bf16.mxu0 0
        %1092 = vmatpush2.bf16.msra.mxu0 0
        %1093 = vmatprep.subr.bf16.mxu0 0
        %1094 = vmatpush2.bf16.msra.mxu0 0
        %1095 = vmatprep.subr.bf16.mxu0 0
        %1096 = vmatpush2.bf16.msra.mxu0 0
        %1097 = vmatprep.subr.bf16.mxu0 0
        %1098 = vmatpush2.bf16.msra.mxu0 0
        %1099 = vmatprep.subr.bf16.mxu0 0
        %1100 = vmatpush2.bf16.msra.mxu0 0
        %1101 = vmatprep.subr.bf16.mxu0 0
        %1102 = vmatpush2.bf16.msra.mxu0 0
        %1103 = vmatprep.subr.bf16.mxu0 0
        %1104 = vmatpush2.bf16.msra.mxu0 0
        %1105 = vmatprep.mubr.bf16.mxu0 0
        %1106 = vmatmul.mubr.bf16.gmra.mxu0 %v1015
        %v1107 = vpop.f32.mrf.mxu0
        %v1108 = vadd.f32 0.0, %v1107
        %v1109 = vpop.f32.mrf.mxu0
        %v1110 = vpop.f32.mrf.mxu0
        %v1111 = vadd.f32 0.0, %v1110
        %v1112 = vpop.f32.mrf.mxu0
        %1113 = vmatprep.mubr.bf16.mxu0 0
        %1114 = vmatmul.mubr.bf16.gmra.mxu0 %v1016
        %v1115 = vpop.f32.mrf.mxu0
        %v1116 = vadd.f32 0.0, %v1115
        %v1117 = vpop.f32.mrf.mxu0
        %v1118 = vpop.f32.mrf.mxu0
        %v1119 = vadd.f32 0.0, %v1118
        %v1120 = vpop.f32.mrf.mxu0
        %1121 = vmatprep.mubr.bf16.mxu0 0
        %1122 = vmatmul.mubr.bf16.gmra.mxu0 %v1017
        %v1123 = vpop.f32.mrf.mxu0
        %v1124 = vadd.f32 0.0, %v1123
        %v1125 = vpop.f32.mrf.mxu0
        %v1126 = vpop.f32.mrf.mxu0
        %v1127 = vadd.f32 0.0, %v1126
        %v1128 = vpop.f32.mrf.mxu0
        %1129 = vmatprep.mubr.bf16.mxu0 0
        %1130 = vmatmul.mubr.bf16.gmra.mxu0 %v1018
        %v1131 = vpop.f32.mrf.mxu0
        %v1132 = vadd.f32 0.0, %v1131
        %v1133 = vpop.f32.mrf.mxu0
        %v1134 = vpop.f32.mrf.mxu0
        %v1135 = vadd.f32 0.0, %v1134
        %v1136 = vpop.f32.mrf.mxu0
        %1137 = vmatprep.mubr.bf16.mxu0 0
        %1138 = vmatmul.mubr.bf16.gmra.mxu0 %v1019
        %v1139 = vpop.f32.mrf.mxu0
        %v1140 = vadd.f32 0.0, %v1139
        %v1141 = vpop.f32.mrf.mxu0
        %v1142 = vpop.f32.mrf.mxu0
        %v1143 = vpop.f32.mrf.mxu0
        %1144 = vdwg.mxu0
        %v1145 = vld [vmem:[#allocation4] sm:$0xff]
        %v1146 = vld [vmem:[#allocation4 + $0x8] sm:$0xff]
        %v1147 = vld [vmem:[#allocation4 + $0x10] sm:$0xff]
        %v1148 = vld [vmem:[#allocation4 + $0x18] sm:$0xff]
        %v1149 = vld [vmem:[#allocation4 + $0x20] sm:$0xff]
        %v1150 = vld [vmem:[#allocation4 + $0x28] sm:$0xff]
        %v1151 = vld [vmem:[#allocation4 + $0x30] sm:$0xff]
        %v1152 = vld [vmem:[#allocation4 + $0x38] sm:$0xff]
        %v1153 = vld [vmem:[#allocation4 + $0x40] sm:$0xff]
        %v1154 = vadd.f32 %v1145, %v1108
        %v1155 = vadd.f32 %v1146, %v1111
        %v1156 = vadd.f32 %v1147, %v1116
        %v1157 = vadd.f32 %v1148, %v1119
        %v1158 = vadd.f32 %v1149, %v1124
        %v1159 = vadd.f32 %v1150, %v1127
        %v1160 = vadd.f32 %v1151, %v1132
        %v1161 = vadd.f32 %v1152, %v1135
        %v1162 = vadd.f32 %v1153, %v1140
        %1163 = vst [vmem:[#allocation4] sm:$0xff] %v1154
        %1164 = vst [vmem:[#allocation4 + $0x8] sm:$0xff] %v1155
        %1165 = vst [vmem:[#allocation4 + $0x10] sm:$0xff] %v1156
        %1166 = vst [vmem:[#allocation4 + $0x18] sm:$0xff] %v1157
        %1167 = vst [vmem:[#allocation4 + $0x20] sm:$0xff] %v1158
        %1168 = vst [vmem:[#allocation4 + $0x28] sm:$0xff] %v1159
        %1169 = vst [vmem:[#allocation4 + $0x30] sm:$0xff] %v1160
        %1170 = vst [vmem:[#allocation4 + $0x38] sm:$0xff] %v1161
        %1171 = vst [vmem:[#allocation4 + $0x40] sm:$0xff] %v1162
        %v1172 = vld [vmem:[%s248] sm:$0xf]
        %v1173 = vld [vmem:[%s248 + $0x4] sm:$0xf]
        %v1174 = vld [vmem:[%s248 + $0x8] sm:$0xf]
        %v1175 = vld [vmem:[%s248 + $0xc] sm:$0xf]
        %v1176 = vld [vmem:[%s248 + $0x10] sm:$0xf]
        %v1177 = vld [vmem:[%s248 + $0x14] sm:$0xf]
        %v1178 = vld [vmem:[%s248 + $0x18] sm:$0xf]
        %v1179 = vld [vmem:[%s248 + $0x1c] sm:$0xf]
        %v1180 = vld [vmem:[%s248 + $0x20] sm:$0xf]
        %s1181 = scalar_lea.vmem [#allocation5], 256
        %v1182 = vld [vmem:[%s1181] sm:$0xf]
        %v1183 = vld [vmem:[%s1181 + $0x4] sm:$0xf]
        %v1184 = vld [vmem:[%s1181 + $0x8] sm:$0xf]
        %v1185 = vld [vmem:[%s1181 + $0xc] sm:$0xf]
        %v1186 = vld [vmem:[%s1181 + $0x10] sm:$0xf]
        %v1187 = vld [vmem:[%s1181 + $0x14] sm:$0xf]
        %v1188 = vld [vmem:[%s1181 + $0x18] sm:$0xf]
        %v1189 = vld [vmem:[%s1181 + $0x1c] sm:$0xf]
        %v1190 = vld [vmem:[%s1181 + $0x20] sm:$0xf]
        %v1191 = vld [vmem:[%s1181 + $0x24] sm:$0xf]
        %v1192 = vld [vmem:[%s1181 + $0x28] sm:$0xf]
        %v1193 = vld [vmem:[%s1181 + $0x2c] sm:$0xf]
        %v1194 = vld [vmem:[%s1181 + $0x30] sm:$0xf]
        %v1195 = vld [vmem:[%s1181 + $0x34] sm:$0xf]
        %v1196 = vld [vmem:[%s1181 + $0x38] sm:$0xf]
        %v1197 = vld [vmem:[%s1181 + $0x3c] sm:$0xf]
        %v1207 = vunpack.c.l.b16 %v1172
        %v1208 = vunpack.c.l.b16 %v1173
        %v1209 = vunpack.c.l.b16 %v1174
        %v1210 = vunpack.c.l.b16 %v1175
        %v1211 = vunpack.c.l.b16 %v1176
        %v1212 = vunpack.c.l.b16 %v1177
        %v1213 = vunpack.c.l.b16 %v1178
        %v1214 = vunpack.c.l.b16 %v1179
        %v1215 = vunpack.c.l.b16 %v1180
        %v1216 = vpack.c.b16 %v1208, %v1207
        %v1217 = vpack.c.b16 %v1210, %v1209
        %v1218 = vpack.c.b16 %v1212, %v1211
        %v1219 = vpack.c.b16 %v1214, %v1213
        %v1220 = vpack.c.b16 %v1215, %v1215
        %v1242 = vunpack.c.l.b16 %v1182
        %v1243 = vunpack.c.l.b16 %v1183
        %v1244 = vunpack.c.l.b16 %v1184
        %v1245 = vunpack.c.l.b16 %v1185
        %v1246 = vunpack.c.l.b16 %v1186
        %v1247 = vunpack.c.l.b16 %v1187
        %v1248 = vunpack.c.l.b16 %v1188
        %v1249 = vunpack.c.l.b16 %v1189
        %v1250 = vunpack.c.l.b16 %v1190
        %v1251 = vunpack.c.l.b16 %v1191
        %v1252 = vunpack.c.l.b16 %v1192
        %v1253 = vunpack.c.l.b16 %v1193
        %v1254 = vunpack.c.l.b16 %v1194
        %v1255 = vunpack.c.l.b16 %v1195
        %v1256 = vunpack.c.l.b16 %v1196
        %v1257 = vunpack.c.l.b16 %v1197
        %v1258 = vpack.c.b16 %v1243, %v1242
        %v1259 = vpack.c.b16 %v1245, %v1244
        %v1260 = vpack.c.b16 %v1247, %v1246
        %v1261 = vpack.c.b16 %v1249, %v1248
        %v1262 = vpack.c.b16 %v1251, %v1250
        %v1263 = vpack.c.b16 %v1253, %v1252
        %v1264 = vpack.c.b16 %v1255, %v1254
        %v1265 = vpack.c.b16 %v1257, %v1256
        %1274 = vmatprep.subr.bf16.mxu0 0
        %1275 = vmatpush1.bf16.msra.mxu0 %v1265
        %1276 = vmatprep.subr.bf16.mxu0 0
        %1277 = vmatpush1.bf16.msra.mxu0 %v1264
        %1278 = vmatprep.subr.bf16.mxu0 0
        %1279 = vmatpush1.bf16.msra.mxu0 %v1263
        %1280 = vmatprep.subr.bf16.mxu0 0
        %1281 = vmatpush1.bf16.msra.mxu0 %v1262
        %1282 = vmatprep.subr.bf16.mxu0 0
        %1283 = vmatpush1.bf16.msra.mxu0 %v1261
        %1284 = vmatprep.subr.bf16.mxu0 0
        %1285 = vmatpush1.bf16.msra.mxu0 %v1260
        %1286 = vmatprep.subr.bf16.mxu0 0
        %1287 = vmatpush1.bf16.msra.mxu0 %v1259
        %1288 = vmatprep.subr.bf16.mxu0 0
        %1289 = vmatpush1.bf16.msra.mxu0 %v1258
        %1290 = vmatprep.subr.bf16.mxu0 0
        %1291 = vmatpush2.bf16.msra.mxu0 0
        %1292 = vmatprep.subr.bf16.mxu0 0
        %1293 = vmatpush2.bf16.msra.mxu0 0
        %1294 = vmatprep.subr.bf16.mxu0 0
        %1295 = vmatpush2.bf16.msra.mxu0 0
        %1296 = vmatprep.subr.bf16.mxu0 0
        %1297 = vmatpush2.bf16.msra.mxu0 0
        %1298 = vmatprep.subr.bf16.mxu0 0
        %1299 = vmatpush2.bf16.msra.mxu0 0
        %1300 = vmatprep.subr.bf16.mxu0 0
        %1301 = vmatpush2.bf16.msra.mxu0 0
        %1302 = vmatprep.subr.bf16.mxu0 0
        %1303 = vmatpush2.bf16.msra.mxu0 0
        %1304 = vmatprep.subr.bf16.mxu0 0
        %1305 = vmatpush2.bf16.msra.mxu0 0
        %1306 = vmatprep.mubr.bf16.mxu0 0
        %1307 = vmatmul.mubr.bf16.gmra.mxu0 %v1216
        %v1308 = vpop.f32.mrf.mxu0
        %v1309 = vadd.f32 0.0, %v1308
        %v1310 = vpop.f32.mrf.mxu0
        %v1311 = vpop.f32.mrf.mxu0
        %v1312 = vadd.f32 0.0, %v1311
        %v1313 = vpop.f32.mrf.mxu0
        %1314 = vmatprep.mubr.bf16.mxu0 0
        %1315 = vmatmul.mubr.bf16.gmra.mxu0 %v1217
        %v1316 = vpop.f32.mrf.mxu0
        %v1317 = vadd.f32 0.0, %v1316
        %v1318 = vpop.f32.mrf.mxu0
        %v1319 = vpop.f32.mrf.mxu0
        %v1320 = vadd.f32 0.0, %v1319
        %v1321 = vpop.f32.mrf.mxu0
        %1322 = vmatprep.mubr.bf16.mxu0 0
        %1323 = vmatmul.mubr.bf16.gmra.mxu0 %v1218
        %v1324 = vpop.f32.mrf.mxu0
        %v1325 = vadd.f32 0.0, %v1324
        %v1326 = vpop.f32.mrf.mxu0
        %v1327 = vpop.f32.mrf.mxu0
        %v1328 = vadd.f32 0.0, %v1327
        %v1329 = vpop.f32.mrf.mxu0
        %1330 = vmatprep.mubr.bf16.mxu0 0
        %1331 = vmatmul.mubr.bf16.gmra.mxu0 %v1219
        %v1332 = vpop.f32.mrf.mxu0
        %v1333 = vadd.f32 0.0, %v1332
        %v1334 = vpop.f32.mrf.mxu0
        %v1335 = vpop.f32.mrf.mxu0
        %v1336 = vadd.f32 0.0, %v1335
        %v1337 = vpop.f32.mrf.mxu0
        %1338 = vmatprep.mubr.bf16.mxu0 0
        %1339 = vmatmul.mubr.bf16.gmra.mxu0 %v1220
        %v1340 = vpop.f32.mrf.mxu0
        %v1341 = vadd.f32 0.0, %v1340
        %v1342 = vpop.f32.mrf.mxu0
        %v1343 = vpop.f32.mrf.mxu0
        %v1344 = vpop.f32.mrf.mxu0
        %1345 = vdwg.mxu0
        %v1346 = vld [vmem:[#allocation4] sm:$0xff]
        %v1347 = vld [vmem:[#allocation4 + $0x8] sm:$0xff]
        %v1348 = vld [vmem:[#allocation4 + $0x10] sm:$0xff]
        %v1349 = vld [vmem:[#allocation4 + $0x18] sm:$0xff]
        %v1350 = vld [vmem:[#allocation4 + $0x20] sm:$0xff]
        %v1351 = vld [vmem:[#allocation4 + $0x28] sm:$0xff]
        %v1352 = vld [vmem:[#allocation4 + $0x30] sm:$0xff]
        %v1353 = vld [vmem:[#allocation4 + $0x38] sm:$0xff]
        %v1354 = vld [vmem:[#allocation4 + $0x40] sm:$0xff]
        %v1355 = vadd.f32 %v1346, %v1309
        %v1356 = vadd.f32 %v1347, %v1312
        %v1357 = vadd.f32 %v1348, %v1317
        %v1358 = vadd.f32 %v1349, %v1320
        %v1359 = vadd.f32 %v1350, %v1325
        %v1360 = vadd.f32 %v1351, %v1328
        %v1361 = vadd.f32 %v1352, %v1333
        %v1362 = vadd.f32 %v1353, %v1336
        %v1363 = vadd.f32 %v1354, %v1341
        %1364 = vst [vmem:[#allocation4] sm:$0xff] %v1355
        %1365 = vst [vmem:[#allocation4 + $0x8] sm:$0xff] %v1356
        %1366 = vst [vmem:[#allocation4 + $0x10] sm:$0xff] %v1357
        %1367 = vst [vmem:[#allocation4 + $0x18] sm:$0xff] %v1358
        %1368 = vst [vmem:[#allocation4 + $0x20] sm:$0xff] %v1359
        %1369 = vst [vmem:[#allocation4 + $0x28] sm:$0xff] %v1360
        %1370 = vst [vmem:[#allocation4 + $0x30] sm:$0xff] %v1361
        %1371 = vst [vmem:[#allocation4 + $0x38] sm:$0xff] %v1362
        %1372 = vst [vmem:[#allocation4 + $0x40] sm:$0xff] %v1363
        %v1373 = vld [vmem:[%s239] sm:$0xf]
        %v1374 = vld [vmem:[%s239 + $0x4] sm:$0xf]
        %v1375 = vld [vmem:[%s239 + $0x8] sm:$0xf]
        %v1376 = vld [vmem:[%s239 + $0xc] sm:$0xf]
        %v1377 = vld [vmem:[%s239 + $0x10] sm:$0xf]
        %v1378 = vld [vmem:[%s239 + $0x14] sm:$0xf]
        %v1379 = vld [vmem:[%s239 + $0x18] sm:$0xf]
        %v1380 = vld [vmem:[%s239 + $0x1c] sm:$0xf]
        %v1381 = vld [vmem:[%s239 + $0x20] sm:$0xf]
        %v1382 = vld [vmem:[%s239 + $0x24] sm:$0x1]
        %s1383 = scalar_lea.vmem [#allocation5], 320
        %v1384 = vld [vmem:[%s1383] sm:$0xf]
        %v1385 = vld [vmem:[%s1383 + $0x4] sm:$0xf]
        %v1386 = vld [vmem:[%s1383 + $0x8] sm:$0xf]
        %v1387 = vld [vmem:[%s1383 + $0xc] sm:$0xf]
        %v1388 = vld [vmem:[%s1383 + $0x10] sm:$0xf]
        %v1389 = vld [vmem:[%s1383 + $0x14] sm:$0xf]
        %v1390 = vld [vmem:[%s1383 + $0x18] sm:$0xf]
        %v1391 = vld [vmem:[%s1383 + $0x1c] sm:$0xf]
        %v1392 = vld [vmem:[%s1383 + $0x20] sm:$0xf]
        %v1393 = vld [vmem:[%s1383 + $0x24] sm:$0xf]
        %v1394 = vld [vmem:[%s1383 + $0x28] sm:$0xf]
        %v1395 = vld [vmem:[%s1383 + $0x2c] sm:$0xf]
        %v1396 = vld [vmem:[%s1383 + $0x30] sm:$0xf]
        %v1397 = vld [vmem:[%s1383 + $0x34] sm:$0xf]
        %v1398 = vld [vmem:[%s1383 + $0x38] sm:$0xf]
        %v1399 = vld [vmem:[%s1383 + $0x3c] sm:$0xf]
        %v1410 = vunpack.c.l.b16 %v1373
        %v1411 = vunpack.c.l.b16 %v1374
        %v1412 = vunpack.c.l.b16 %v1375
        %v1413 = vunpack.c.l.b16 %v1376
        %v1414 = vunpack.c.l.b16 %v1377
        %v1415 = vunpack.c.l.b16 %v1378
        %v1416 = vunpack.c.l.b16 %v1379
        %v1417 = vunpack.c.l.b16 %v1380
        %v1418 = vunpack.c.l.b16 %v1381
        %v1419 = vunpack.c.l.b16 %v1382
        %v1420 = vpack.c.b16 %v1411, %v1410
        %v1421 = vpack.c.b16 %v1413, %v1412
        %v1422 = vpack.c.b16 %v1415, %v1414
        %v1423 = vpack.c.b16 %v1417, %v1416
        %v1424 = vpack.c.b16 %v1419, %v1418
        %v1426 = vshrl.u32 %v1420, 16
        %v1428 = vshll.u32 %v1420, 16
        %v1430 = vrot.slane %v1428, 1
        %v1431 = vor.u32 %v1426, %v1430
        %v1433 = vshll.u32 %v1421, 16
        %v1435 = vrot.slane %v1433, 1
        %v1436 = vsel %vm779, %v1431, %v1435
        %v1437 = vshrl.u32 %v1421, 16
        %v1439 = vor.u32 %v1437, %v1435
        %v1441 = vshll.u32 %v1422, 16
        %v1443 = vrot.slane %v1441, 1
        %v1444 = vsel %vm779, %v1439, %v1443
        %v1445 = vshrl.u32 %v1422, 16
        %v1447 = vor.u32 %v1445, %v1443
        %v1449 = vshll.u32 %v1423, 16
        %v1451 = vrot.slane %v1449, 1
        %v1452 = vsel %vm779, %v1447, %v1451
        %v1453 = vshrl.u32 %v1423, 16
        %v1455 = vor.u32 %v1453, %v1451
        %v1457 = vshll.u32 %v1424, 16
        %v1459 = vrot.slane %v1457, 1
        %v1460 = vsel %vm779, %v1455, %v1459
        %v1461 = vshrl.u32 %v1424, 16
        %v1463 = vor.u32 %v1461, %v1459
        %v1485 = vunpack.c.l.b16 %v1384
        %v1486 = vunpack.c.l.b16 %v1385
        %v1487 = vunpack.c.l.b16 %v1386
        %v1488 = vunpack.c.l.b16 %v1387
        %v1489 = vunpack.c.l.b16 %v1388
        %v1490 = vunpack.c.l.b16 %v1389
        %v1491 = vunpack.c.l.b16 %v1390
        %v1492 = vunpack.c.l.b16 %v1391
        %v1493 = vunpack.c.l.b16 %v1392
        %v1494 = vunpack.c.l.b16 %v1393
        %v1495 = vunpack.c.l.b16 %v1394
        %v1496 = vunpack.c.l.b16 %v1395
        %v1497 = vunpack.c.l.b16 %v1396
        %v1498 = vunpack.c.l.b16 %v1397
        %v1499 = vunpack.c.l.b16 %v1398
        %v1500 = vunpack.c.l.b16 %v1399
        %v1501 = vpack.c.b16 %v1486, %v1485
        %v1502 = vpack.c.b16 %v1488, %v1487
        %v1503 = vpack.c.b16 %v1490, %v1489
        %v1504 = vpack.c.b16 %v1492, %v1491
        %v1505 = vpack.c.b16 %v1494, %v1493
        %v1506 = vpack.c.b16 %v1496, %v1495
        %v1507 = vpack.c.b16 %v1498, %v1497
        %v1508 = vpack.c.b16 %v1500, %v1499
        %1517 = vmatprep.subr.bf16.mxu0 0
        %1518 = vmatpush1.bf16.msra.mxu0 %v1508
        %1519 = vmatprep.subr.bf16.mxu0 0
        %1520 = vmatpush1.bf16.msra.mxu0 %v1507
        %1521 = vmatprep.subr.bf16.mxu0 0
        %1522 = vmatpush1.bf16.msra.mxu0 %v1506
        %1523 = vmatprep.subr.bf16.mxu0 0
        %1524 = vmatpush1.bf16.msra.mxu0 %v1505
        %1525 = vmatprep.subr.bf16.mxu0 0
        %1526 = vmatpush1.bf16.msra.mxu0 %v1504
        %1527 = vmatprep.subr.bf16.mxu0 0
        %1528 = vmatpush1.bf16.msra.mxu0 %v1503
        %1529 = vmatprep.subr.bf16.mxu0 0
        %1530 = vmatpush1.bf16.msra.mxu0 %v1502
        %1531 = vmatprep.subr.bf16.mxu0 0
        %1532 = vmatpush1.bf16.msra.mxu0 %v1501
        %1533 = vmatprep.subr.bf16.mxu0 0
        %1534 = vmatpush2.bf16.msra.mxu0 0
        %1535 = vmatprep.subr.bf16.mxu0 0
        %1536 = vmatpush2.bf16.msra.mxu0 0
        %1537 = vmatprep.subr.bf16.mxu0 0
        %1538 = vmatpush2.bf16.msra.mxu0 0
        %1539 = vmatprep.subr.bf16.mxu0 0
        %1540 = vmatpush2.bf16.msra.mxu0 0
        %1541 = vmatprep.subr.bf16.mxu0 0
        %1542 = vmatpush2.bf16.msra.mxu0 0
        %1543 = vmatprep.subr.bf16.mxu0 0
        %1544 = vmatpush2.bf16.msra.mxu0 0
        %1545 = vmatprep.subr.bf16.mxu0 0
        %1546 = vmatpush2.bf16.msra.mxu0 0
        %1547 = vmatprep.subr.bf16.mxu0 0
        %1548 = vmatpush2.bf16.msra.mxu0 0
        %1549 = vmatprep.mubr.bf16.mxu0 0
        %1550 = vmatmul.mubr.bf16.gmra.mxu0 %v1436
        %v1551 = vpop.f32.mrf.mxu0
        %v1552 = vadd.f32 0.0, %v1551
        %v1553 = vpop.f32.mrf.mxu0
        %v1554 = vpop.f32.mrf.mxu0
        %v1555 = vadd.f32 0.0, %v1554
        %v1556 = vpop.f32.mrf.mxu0
        %1557 = vmatprep.mubr.bf16.mxu0 0
        %1558 = vmatmul.mubr.bf16.gmra.mxu0 %v1444
        %v1559 = vpop.f32.mrf.mxu0
        %v1560 = vadd.f32 0.0, %v1559
        %v1561 = vpop.f32.mrf.mxu0
        %v1562 = vpop.f32.mrf.mxu0
        %v1563 = vadd.f32 0.0, %v1562
        %v1564 = vpop.f32.mrf.mxu0
        %1565 = vmatprep.mubr.bf16.mxu0 0
        %1566 = vmatmul.mubr.bf16.gmra.mxu0 %v1452
        %v1567 = vpop.f32.mrf.mxu0
        %v1568 = vadd.f32 0.0, %v1567
        %v1569 = vpop.f32.mrf.mxu0
        %v1570 = vpop.f32.mrf.mxu0
        %v1571 = vadd.f32 0.0, %v1570
        %v1572 = vpop.f32.mrf.mxu0
        %1573 = vmatprep.mubr.bf16.mxu0 0
        %1574 = vmatmul.mubr.bf16.gmra.mxu0 %v1460
        %v1575 = vpop.f32.mrf.mxu0
        %v1576 = vadd.f32 0.0, %v1575
        %v1577 = vpop.f32.mrf.mxu0
        %v1578 = vpop.f32.mrf.mxu0
        %v1579 = vadd.f32 0.0, %v1578
        %v1580 = vpop.f32.mrf.mxu0
        %1581 = vmatprep.mubr.bf16.mxu0 0
        %1582 = vmatmul.mubr.bf16.gmra.mxu0 %v1463
        %v1583 = vpop.f32.mrf.mxu0
        %v1584 = vadd.f32 0.0, %v1583
        %v1585 = vpop.f32.mrf.mxu0
        %v1586 = vpop.f32.mrf.mxu0
        %v1587 = vpop.f32.mrf.mxu0
        %1588 = vdwg.mxu0
        %v1589 = vld [vmem:[#allocation4] sm:$0xff]
        %v1590 = vld [vmem:[#allocation4 + $0x8] sm:$0xff]
        %v1591 = vld [vmem:[#allocation4 + $0x10] sm:$0xff]
        %v1592 = vld [vmem:[#allocation4 + $0x18] sm:$0xff]
        %v1593 = vld [vmem:[#allocation4 + $0x20] sm:$0xff]
        %v1594 = vld [vmem:[#allocation4 + $0x28] sm:$0xff]
        %v1595 = vld [vmem:[#allocation4 + $0x30] sm:$0xff]
        %v1596 = vld [vmem:[#allocation4 + $0x38] sm:$0xff]
        %v1597 = vld [vmem:[#allocation4 + $0x40] sm:$0xff]
        %v1598 = vadd.f32 %v1589, %v1552
        %v1599 = vadd.f32 %v1590, %v1555
        %v1600 = vadd.f32 %v1591, %v1560
        %v1601 = vadd.f32 %v1592, %v1563
        %v1602 = vadd.f32 %v1593, %v1568
        %v1603 = vadd.f32 %v1594, %v1571
        %v1604 = vadd.f32 %v1595, %v1576
        %v1605 = vadd.f32 %v1596, %v1579
        %v1606 = vadd.f32 %v1597, %v1584
        %1607 = vst [vmem:[#allocation4] sm:$0xff] %v1598
        %1608 = vst [vmem:[#allocation4 + $0x8] sm:$0xff] %v1599
        %1609 = vst [vmem:[#allocation4 + $0x10] sm:$0xff] %v1600
        %1610 = vst [vmem:[#allocation4 + $0x18] sm:$0xff] %v1601
        %1611 = vst [vmem:[#allocation4 + $0x20] sm:$0xff] %v1602
        %1612 = vst [vmem:[#allocation4 + $0x28] sm:$0xff] %v1603
        %1613 = vst [vmem:[#allocation4 + $0x30] sm:$0xff] %v1604
        %1614 = vst [vmem:[#allocation4 + $0x38] sm:$0xff] %v1605
        %1615 = vst [vmem:[#allocation4 + $0x40] sm:$0xff] %v1606
        %v1616 = vld [vmem:[%s223 + $0x4] sm:$0xf]
        %v1617 = vld [vmem:[%s223 + $0x8] sm:$0xf]
        %v1618 = vld [vmem:[%s223 + $0xc] sm:$0xf]
        %v1619 = vld [vmem:[%s223 + $0x10] sm:$0xf]
        %v1620 = vld [vmem:[%s223 + $0x14] sm:$0xf]
        %v1621 = vld [vmem:[%s223 + $0x18] sm:$0xf]
        %v1622 = vld [vmem:[%s223 + $0x1c] sm:$0xf]
        %v1623 = vld [vmem:[%s223 + $0x20] sm:$0xf]
        %v1624 = vld [vmem:[%s223 + $0x24] sm:$0xf]
        %v1625 = vld [vmem:[%s223 + $0x28] sm:$0x1]
        %s1626 = scalar_lea.vmem [#allocation5], 384
        %v1627 = vld [vmem:[%s1626] sm:$0xf]
        %v1628 = vld [vmem:[%s1626 + $0x4] sm:$0xf]
        %v1629 = vld [vmem:[%s1626 + $0x8] sm:$0xf]
        %v1630 = vld [vmem:[%s1626 + $0xc] sm:$0xf]
        %v1631 = vld [vmem:[%s1626 + $0x10] sm:$0xf]
        %v1632 = vld [vmem:[%s1626 + $0x14] sm:$0xf]
        %v1633 = vld [vmem:[%s1626 + $0x18] sm:$0xf]
        %v1634 = vld [vmem:[%s1626 + $0x1c] sm:$0xf]
        %v1635 = vld [vmem:[%s1626 + $0x20] sm:$0xf]
        %v1636 = vld [vmem:[%s1626 + $0x24] sm:$0xf]
        %v1637 = vld [vmem:[%s1626 + $0x28] sm:$0xf]
        %v1638 = vld [vmem:[%s1626 + $0x2c] sm:$0xf]
        %v1639 = vld [vmem:[%s1626 + $0x30] sm:$0xf]
        %v1640 = vld [vmem:[%s1626 + $0x34] sm:$0xf]
        %v1641 = vld [vmem:[%s1626 + $0x38] sm:$0xf]
        %v1642 = vld [vmem:[%s1626 + $0x3c] sm:$0xf]
        %v1653 = vunpack.c.l.b16 %v1616
        %v1654 = vunpack.c.l.b16 %v1617
        %v1655 = vunpack.c.l.b16 %v1618
        %v1656 = vunpack.c.l.b16 %v1619
        %v1657 = vunpack.c.l.b16 %v1620
        %v1658 = vunpack.c.l.b16 %v1621
        %v1659 = vunpack.c.l.b16 %v1622
        %v1660 = vunpack.c.l.b16 %v1623
        %v1661 = vunpack.c.l.b16 %v1624
        %v1662 = vunpack.c.l.b16 %v1625
        %v1663 = vpack.c.b16 %v1654, %v1653
        %v1664 = vpack.c.b16 %v1656, %v1655
        %v1665 = vpack.c.b16 %v1658, %v1657
        %v1666 = vpack.c.b16 %v1660, %v1659
        %v1667 = vpack.c.b16 %v1662, %v1661
        %v1669 = vshrl.u32 %v1663, 16
        %v1671 = vshll.u32 %v1663, 16
        %v1673 = vrot.slane %v1671, 1
        %v1674 = vor.u32 %v1669, %v1673
        %v1676 = vshll.u32 %v1664, 16
        %v1678 = vrot.slane %v1676, 1
        %v1679 = vsel %vm779, %v1674, %v1678
        %v1680 = vshrl.u32 %v1664, 16
        %v1682 = vor.u32 %v1680, %v1678
        %v1684 = vshll.u32 %v1665, 16
        %v1686 = vrot.slane %v1684, 1
        %v1687 = vsel %vm779, %v1682, %v1686
        %v1688 = vshrl.u32 %v1665, 16
        %v1690 = vor.u32 %v1688, %v1686
        %v1692 = vshll.u32 %v1666, 16
        %v1694 = vrot.slane %v1692, 1
        %v1695 = vsel %vm779, %v1690, %v1694
        %v1696 = vshrl.u32 %v1666, 16
        %v1698 = vor.u32 %v1696, %v1694
        %v1700 = vshll.u32 %v1667, 16
        %v1702 = vrot.slane %v1700, 1
        %v1703 = vsel %vm779, %v1698, %v1702
        %v1704 = vshrl.u32 %v1667, 16
        %v1706 = vor.u32 %v1704, %v1702
        %v1728 = vunpack.c.l.b16 %v1627
        %v1729 = vunpack.c.l.b16 %v1628
        %v1730 = vunpack.c.l.b16 %v1629
        %v1731 = vunpack.c.l.b16 %v1630
        %v1732 = vunpack.c.l.b16 %v1631
        %v1733 = vunpack.c.l.b16 %v1632
        %v1734 = vunpack.c.l.b16 %v1633
        %v1735 = vunpack.c.l.b16 %v1634
        %v1736 = vunpack.c.l.b16 %v1635
        %v1737 = vunpack.c.l.b16 %v1636
        %v1738 = vunpack.c.l.b16 %v1637
        %v1739 = vunpack.c.l.b16 %v1638
        %v1740 = vunpack.c.l.b16 %v1639
        %v1741 = vunpack.c.l.b16 %v1640
        %v1742 = vunpack.c.l.b16 %v1641
        %v1743 = vunpack.c.l.b16 %v1642
        %v1744 = vpack.c.b16 %v1729, %v1728
        %v1745 = vpack.c.b16 %v1731, %v1730
        %v1746 = vpack.c.b16 %v1733, %v1732
        %v1747 = vpack.c.b16 %v1735, %v1734
        %v1748 = vpack.c.b16 %v1737, %v1736
        %v1749 = vpack.c.b16 %v1739, %v1738
        %v1750 = vpack.c.b16 %v1741, %v1740
        %v1751 = vpack.c.b16 %v1743, %v1742
        %1760 = vmatprep.subr.bf16.mxu0 0
        %1761 = vmatpush1.bf16.msra.mxu0 %v1751
        %1762 = vmatprep.subr.bf16.mxu0 0
        %1763 = vmatpush1.bf16.msra.mxu0 %v1750
        %1764 = vmatprep.subr.bf16.mxu0 0
        %1765 = vmatpush1.bf16.msra.mxu0 %v1749
        %1766 = vmatprep.subr.bf16.mxu0 0
        %1767 = vmatpush1.bf16.msra.mxu0 %v1748
        %1768 = vmatprep.subr.bf16.mxu0 0
        %1769 = vmatpush1.bf16.msra.mxu0 %v1747
        %1770 = vmatprep.subr.bf16.mxu0 0
        %1771 = vmatpush1.bf16.msra.mxu0 %v1746
        %1772 = vmatprep.subr.bf16.mxu0 0
        %1773 = vmatpush1.bf16.msra.mxu0 %v1745
        %1774 = vmatprep.subr.bf16.mxu0 0
        %1775 = vmatpush1.bf16.msra.mxu0 %v1744
        %1776 = vmatprep.subr.bf16.mxu0 0
        %1777 = vmatpush2.bf16.msra.mxu0 0
        %1778 = vmatprep.subr.bf16.mxu0 0
        %1779 = vmatpush2.bf16.msra.mxu0 0
        %1780 = vmatprep.subr.bf16.mxu0 0
        %1781 = vmatpush2.bf16.msra.mxu0 0
        %1782 = vmatprep.subr.bf16.mxu0 0
        %1783 = vmatpush2.bf16.msra.mxu0 0
        %1784 = vmatprep.subr.bf16.mxu0 0
        %1785 = vmatpush2.bf16.msra.mxu0 0
        %1786 = vmatprep.subr.bf16.mxu0 0
        %1787 = vmatpush2.bf16.msra.mxu0 0
        %1788 = vmatprep.subr.bf16.mxu0 0
        %1789 = vmatpush2.bf16.msra.mxu0 0
        %1790 = vmatprep.subr.bf16.mxu0 0
        %1791 = vmatpush2.bf16.msra.mxu0 0
        %1792 = vmatprep.mubr.bf16.mxu0 0
        %1793 = vmatmul.mubr.bf16.gmra.mxu0 %v1679
        %v1794 = vpop.f32.mrf.mxu0
        %v1795 = vadd.f32 0.0, %v1794
        %v1796 = vpop.f32.mrf.mxu0
        %v1797 = vpop.f32.mrf.mxu0
        %v1798 = vadd.f32 0.0, %v1797
        %v1799 = vpop.f32.mrf.mxu0
        %1800 = vmatprep.mubr.bf16.mxu0 0
        %1801 = vmatmul.mubr.bf16.gmra.mxu0 %v1687
        %v1802 = vpop.f32.mrf.mxu0
        %v1803 = vadd.f32 0.0, %v1802
        %v1804 = vpop.f32.mrf.mxu0
        %v1805 = vpop.f32.mrf.mxu0
        %v1806 = vadd.f32 0.0, %v1805
        %v1807 = vpop.f32.mrf.mxu0
        %1808 = vmatprep.mubr.bf16.mxu0 0
        %1809 = vmatmul.mubr.bf16.gmra.mxu0 %v1695
        %v1810 = vpop.f32.mrf.mxu0
        %v1811 = vadd.f32 0.0, %v1810
        %v1812 = vpop.f32.mrf.mxu0
        %v1813 = vpop.f32.mrf.mxu0
        %v1814 = vadd.f32 0.0, %v1813
        %v1815 = vpop.f32.mrf.mxu0
        %1816 = vmatprep.mubr.bf16.mxu0 0
        %1817 = vmatmul.mubr.bf16.gmra.mxu0 %v1703
        %v1818 = vpop.f32.mrf.mxu0
        %v1819 = vadd.f32 0.0, %v1818
        %v1820 = vpop.f32.mrf.mxu0
        %v1821 = vpop.f32.mrf.mxu0
        %v1822 = vadd.f32 0.0, %v1821
        %v1823 = vpop.f32.mrf.mxu0
        %1824 = vmatprep.mubr.bf16.mxu0 0
        %1825 = vmatmul.mubr.bf16.gmra.mxu0 %v1706
        %v1826 = vpop.f32.mrf.mxu0
        %v1827 = vadd.f32 0.0, %v1826
        %v1828 = vpop.f32.mrf.mxu0
        %v1829 = vpop.f32.mrf.mxu0
        %v1830 = vpop.f32.mrf.mxu0
        %1831 = vdwg.mxu0
        %v1832 = vld [vmem:[#allocation4] sm:$0xff]
        %v1833 = vld [vmem:[#allocation4 + $0x8] sm:$0xff]
        %v1834 = vld [vmem:[#allocation4 + $0x10] sm:$0xff]
        %v1835 = vld [vmem:[#allocation4 + $0x18] sm:$0xff]
        %v1836 = vld [vmem:[#allocation4 + $0x20] sm:$0xff]
        %v1837 = vld [vmem:[#allocation4 + $0x28] sm:$0xff]
        %v1838 = vld [vmem:[#allocation4 + $0x30] sm:$0xff]
        %v1839 = vld [vmem:[#allocation4 + $0x38] sm:$0xff]
        %v1840 = vld [vmem:[#allocation4 + $0x40] sm:$0xff]
        %v1841 = vadd.f32 %v1832, %v1795
        %v1842 = vadd.f32 %v1833, %v1798
        %v1843 = vadd.f32 %v1834, %v1803
        %v1844 = vadd.f32 %v1835, %v1806
        %v1845 = vadd.f32 %v1836, %v1811
        %v1846 = vadd.f32 %v1837, %v1814
        %v1847 = vadd.f32 %v1838, %v1819
        %v1848 = vadd.f32 %v1839, %v1822
        %v1849 = vadd.f32 %v1840, %v1827
        %1850 = vst [vmem:[#allocation4] sm:$0xff] %v1841
        %1851 = vst [vmem:[#allocation4 + $0x8] sm:$0xff] %v1842
        %1852 = vst [vmem:[#allocation4 + $0x10] sm:$0xff] %v1843
        %1853 = vst [vmem:[#allocation4 + $0x18] sm:$0xff] %v1844
        %1854 = vst [vmem:[#allocation4 + $0x20] sm:$0xff] %v1845
        %1855 = vst [vmem:[#allocation4 + $0x28] sm:$0xff] %v1846
        %1856 = vst [vmem:[#allocation4 + $0x30] sm:$0xff] %v1847
        %1857 = vst [vmem:[#allocation4 + $0x38] sm:$0xff] %v1848
        %1858 = vst [vmem:[#allocation4 + $0x40] sm:$0xff] %v1849
        %v1859 = vld [vmem:[%s232 + $0x4] sm:$0xf]
        %v1860 = vld [vmem:[%s232 + $0x8] sm:$0xf]
        %v1861 = vld [vmem:[%s232 + $0xc] sm:$0xf]
        %v1862 = vld [vmem:[%s232 + $0x10] sm:$0xf]
        %v1863 = vld [vmem:[%s232 + $0x14] sm:$0xf]
        %v1864 = vld [vmem:[%s232 + $0x18] sm:$0xf]
        %v1865 = vld [vmem:[%s232 + $0x1c] sm:$0xf]
        %v1866 = vld [vmem:[%s232 + $0x20] sm:$0xf]
        %v1867 = vld [vmem:[%s232 + $0x24] sm:$0xf]
        %v1868 = vld [vmem:[%s232 + $0x28] sm:$0x1]
        %s1869 = scalar_lea.vmem [#allocation5], 448
        %v1870 = vld [vmem:[%s1869] sm:$0xf]
        %v1871 = vld [vmem:[%s1869 + $0x4] sm:$0xf]
        %v1872 = vld [vmem:[%s1869 + $0x8] sm:$0xf]
        %v1873 = vld [vmem:[%s1869 + $0xc] sm:$0xf]
        %v1874 = vld [vmem:[%s1869 + $0x10] sm:$0xf]
        %v1875 = vld [vmem:[%s1869 + $0x14] sm:$0xf]
        %v1876 = vld [vmem:[%s1869 + $0x18] sm:$0xf]
        %v1877 = vld [vmem:[%s1869 + $0x1c] sm:$0xf]
        %v1878 = vld [vmem:[%s1869 + $0x20] sm:$0xf]
        %v1879 = vld [vmem:[%s1869 + $0x24] sm:$0xf]
        %v1880 = vld [vmem:[%s1869 + $0x28] sm:$0xf]
        %v1881 = vld [vmem:[%s1869 + $0x2c] sm:$0xf]
        %v1882 = vld [vmem:[%s1869 + $0x30] sm:$0xf]
        %v1883 = vld [vmem:[%s1869 + $0x34] sm:$0xf]
        %v1884 = vld [vmem:[%s1869 + $0x38] sm:$0xf]
        %v1885 = vld [vmem:[%s1869 + $0x3c] sm:$0xf]
        %v1896 = vunpack.c.l.b16 %v1859
        %v1897 = vunpack.c.l.b16 %v1860
        %v1898 = vunpack.c.l.b16 %v1861
        %v1899 = vunpack.c.l.b16 %v1862
        %v1900 = vunpack.c.l.b16 %v1863
        %v1901 = vunpack.c.l.b16 %v1864
        %v1902 = vunpack.c.l.b16 %v1865
        %v1903 = vunpack.c.l.b16 %v1866
        %v1904 = vunpack.c.l.b16 %v1867
        %v1905 = vunpack.c.l.b16 %v1868
        %v1906 = vpack.c.b16 %v1897, %v1896
        %v1907 = vpack.c.b16 %v1899, %v1898
        %v1908 = vpack.c.b16 %v1901, %v1900
        %v1909 = vpack.c.b16 %v1903, %v1902
        %v1910 = vpack.c.b16 %v1905, %v1904
        %v1912 = vshrl.u32 %v1906, 16
        %v1914 = vshll.u32 %v1906, 16
        %v1916 = vrot.slane %v1914, 1
        %v1917 = vor.u32 %v1912, %v1916
        %v1919 = vshll.u32 %v1907, 16
        %v1921 = vrot.slane %v1919, 1
        %v1922 = vsel %vm779, %v1917, %v1921
        %v1923 = vshrl.u32 %v1907, 16
        %v1925 = vor.u32 %v1923, %v1921
        %v1927 = vshll.u32 %v1908, 16
        %v1929 = vrot.slane %v1927, 1
        %v1930 = vsel %vm779, %v1925, %v1929
        %v1931 = vshrl.u32 %v1908, 16
        %v1933 = vor.u32 %v1931, %v1929
        %v1935 = vshll.u32 %v1909, 16
        %v1937 = vrot.slane %v1935, 1
        %v1938 = vsel %vm779, %v1933, %v1937
        %v1939 = vshrl.u32 %v1909, 16
        %v1941 = vor.u32 %v1939, %v1937
        %v1943 = vshll.u32 %v1910, 16
        %v1945 = vrot.slane %v1943, 1
        %v1946 = vsel %vm779, %v1941, %v1945
        %v1947 = vshrl.u32 %v1910, 16
        %v1949 = vor.u32 %v1947, %v1945
        %v1971 = vunpack.c.l.b16 %v1870
        %v1972 = vunpack.c.l.b16 %v1871
        %v1973 = vunpack.c.l.b16 %v1872
        %v1974 = vunpack.c.l.b16 %v1873
        %v1975 = vunpack.c.l.b16 %v1874
        %v1976 = vunpack.c.l.b16 %v1875
        %v1977 = vunpack.c.l.b16 %v1876
        %v1978 = vunpack.c.l.b16 %v1877
        %v1979 = vunpack.c.l.b16 %v1878
        %v1980 = vunpack.c.l.b16 %v1879
        %v1981 = vunpack.c.l.b16 %v1880
        %v1982 = vunpack.c.l.b16 %v1881
        %v1983 = vunpack.c.l.b16 %v1882
        %v1984 = vunpack.c.l.b16 %v1883
        %v1985 = vunpack.c.l.b16 %v1884
        %v1986 = vunpack.c.l.b16 %v1885
        %v1987 = vpack.c.b16 %v1972, %v1971
        %v1988 = vpack.c.b16 %v1974, %v1973
        %v1989 = vpack.c.b16 %v1976, %v1975
        %v1990 = vpack.c.b16 %v1978, %v1977
        %v1991 = vpack.c.b16 %v1980, %v1979
        %v1992 = vpack.c.b16 %v1982, %v1981
        %v1993 = vpack.c.b16 %v1984, %v1983
        %v1994 = vpack.c.b16 %v1986, %v1985
        %2003 = vmatprep.subr.bf16.mxu0 0
        %2004 = vmatpush1.bf16.msra.mxu0 %v1994
        %2005 = vmatprep.subr.bf16.mxu0 0
        %2006 = vmatpush1.bf16.msra.mxu0 %v1993
        %2007 = vmatprep.subr.bf16.mxu0 0
        %2008 = vmatpush1.bf16.msra.mxu0 %v1992
        %2009 = vmatprep.subr.bf16.mxu0 0
        %2010 = vmatpush1.bf16.msra.mxu0 %v1991
        %2011 = vmatprep.subr.bf16.mxu0 0
        %2012 = vmatpush1.bf16.msra.mxu0 %v1990
        %2013 = vmatprep.subr.bf16.mxu0 0
        %2014 = vmatpush1.bf16.msra.mxu0 %v1989
        %2015 = vmatprep.subr.bf16.mxu0 0
        %2016 = vmatpush1.bf16.msra.mxu0 %v1988
        %2017 = vmatprep.subr.bf16.mxu0 0
        %2018 = vmatpush1.bf16.msra.mxu0 %v1987
        %2019 = vmatprep.subr.bf16.mxu0 0
        %2020 = vmatpush2.bf16.msra.mxu0 0
        %2021 = vmatprep.subr.bf16.mxu0 0
        %2022 = vmatpush2.bf16.msra.mxu0 0
        %2023 = vmatprep.subr.bf16.mxu0 0
        %2024 = vmatpush2.bf16.msra.mxu0 0
        %2025 = vmatprep.subr.bf16.mxu0 0
        %2026 = vmatpush2.bf16.msra.mxu0 0
        %2027 = vmatprep.subr.bf16.mxu0 0
        %2028 = vmatpush2.bf16.msra.mxu0 0
        %2029 = vmatprep.subr.bf16.mxu0 0
        %2030 = vmatpush2.bf16.msra.mxu0 0
        %2031 = vmatprep.subr.bf16.mxu0 0
        %2032 = vmatpush2.bf16.msra.mxu0 0
        %2033 = vmatprep.subr.bf16.mxu0 0
        %2034 = vmatpush2.bf16.msra.mxu0 0
        %2035 = vmatprep.mubr.bf16.mxu0 0
        %2036 = vmatmul.mubr.bf16.gmra.mxu0 %v1922
        %v2037 = vpop.f32.mrf.mxu0
        %v2038 = vadd.f32 0.0, %v2037
        %v2039 = vpop.f32.mrf.mxu0
        %v2040 = vpop.f32.mrf.mxu0
        %v2041 = vadd.f32 0.0, %v2040
        %v2042 = vpop.f32.mrf.mxu0
        %2043 = vmatprep.mubr.bf16.mxu0 0
        %2044 = vmatmul.mubr.bf16.gmra.mxu0 %v1930
        %v2045 = vpop.f32.mrf.mxu0
        %v2046 = vadd.f32 0.0, %v2045
        %v2047 = vpop.f32.mrf.mxu0
        %v2048 = vpop.f32.mrf.mxu0
        %v2049 = vadd.f32 0.0, %v2048
        %v2050 = vpop.f32.mrf.mxu0
        %2051 = vmatprep.mubr.bf16.mxu0 0
        %2052 = vmatmul.mubr.bf16.gmra.mxu0 %v1938
        %v2053 = vpop.f32.mrf.mxu0
        %v2054 = vadd.f32 0.0, %v2053
        %v2055 = vpop.f32.mrf.mxu0
        %v2056 = vpop.f32.mrf.mxu0
        %v2057 = vadd.f32 0.0, %v2056
        %v2058 = vpop.f32.mrf.mxu0
        %2059 = vmatprep.mubr.bf16.mxu0 0
        %2060 = vmatmul.mubr.bf16.gmra.mxu0 %v1946
        %v2061 = vpop.f32.mrf.mxu0
        %v2062 = vadd.f32 0.0, %v2061
        %v2063 = vpop.f32.mrf.mxu0
        %v2064 = vpop.f32.mrf.mxu0
        %v2065 = vadd.f32 0.0, %v2064
        %v2066 = vpop.f32.mrf.mxu0
        %2067 = vmatprep.mubr.bf16.mxu0 0
        %2068 = vmatmul.mubr.bf16.gmra.mxu0 %v1949
        %v2069 = vpop.f32.mrf.mxu0
        %v2070 = vadd.f32 0.0, %v2069
        %v2071 = vpop.f32.mrf.mxu0
        %v2072 = vpop.f32.mrf.mxu0
        %v2073 = vpop.f32.mrf.mxu0
        %2074 = vdwg.mxu0
        %v2075 = vld [vmem:[#allocation4] sm:$0xff]
        %v2076 = vld [vmem:[#allocation4 + $0x8] sm:$0xff]
        %v2077 = vld [vmem:[#allocation4 + $0x10] sm:$0xff]
        %v2078 = vld [vmem:[#allocation4 + $0x18] sm:$0xff]
        %v2079 = vld [vmem:[#allocation4 + $0x20] sm:$0xff]
        %v2080 = vld [vmem:[#allocation4 + $0x28] sm:$0xff]
        %v2081 = vld [vmem:[#allocation4 + $0x30] sm:$0xff]
        %v2082 = vld [vmem:[#allocation4 + $0x38] sm:$0xff]
        %v2083 = vld [vmem:[#allocation4 + $0x40] sm:$0xff]
        %v2084 = vadd.f32 %v2075, %v2038
        %v2085 = vadd.f32 %v2076, %v2041
        %v2086 = vadd.f32 %v2077, %v2046
        %v2087 = vadd.f32 %v2078, %v2049
        %v2088 = vadd.f32 %v2079, %v2054
        %v2089 = vadd.f32 %v2080, %v2057
        %v2090 = vadd.f32 %v2081, %v2062
        %v2091 = vadd.f32 %v2082, %v2065
        %v2092 = vadd.f32 %v2083, %v2070
        %2093 = vst [vmem:[#allocation4] sm:$0xff] %v2084
        %2094 = vst [vmem:[#allocation4 + $0x8] sm:$0xff] %v2085
        %2095 = vst [vmem:[#allocation4 + $0x10] sm:$0xff] %v2086
        %2096 = vst [vmem:[#allocation4 + $0x18] sm:$0xff] %v2087
        %2097 = vst [vmem:[#allocation4 + $0x20] sm:$0xff] %v2088
        %2098 = vst [vmem:[#allocation4 + $0x28] sm:$0xff] %v2089
        %2099 = vst [vmem:[#allocation4 + $0x30] sm:$0xff] %v2090
        %2100 = vst [vmem:[#allocation4 + $0x38] sm:$0xff] %v2091
        %2101 = vst [vmem:[#allocation4 + $0x40] sm:$0xff] %v2092
        %v2102 = vld [vmem:[%s223 + $0x4] sm:$0xe]
        %v2103 = vld [vmem:[%s223 + $0x8] sm:$0xf]
        %v2104 = vld [vmem:[%s223 + $0xc] sm:$0xf]
        %v2105 = vld [vmem:[%s223 + $0x10] sm:$0xf]
        %v2106 = vld [vmem:[%s223 + $0x14] sm:$0xf]
        %v2107 = vld [vmem:[%s223 + $0x18] sm:$0xf]
        %v2108 = vld [vmem:[%s223 + $0x1c] sm:$0xf]
        %v2109 = vld [vmem:[%s223 + $0x20] sm:$0xf]
        %v2110 = vld [vmem:[%s223 + $0x24] sm:$0xf]
        %v2111 = vld [vmem:[%s223 + $0x28] sm:$0x1]
        %s2112 = scalar_lea.vmem [#allocation5], 512
        %v2113 = vld [vmem:[%s2112] sm:$0xf]
        %v2114 = vld [vmem:[%s2112 + $0x4] sm:$0xf]
        %v2115 = vld [vmem:[%s2112 + $0x8] sm:$0xf]
        %v2116 = vld [vmem:[%s2112 + $0xc] sm:$0xf]
        %v2117 = vld [vmem:[%s2112 + $0x10] sm:$0xf]
        %v2118 = vld [vmem:[%s2112 + $0x14] sm:$0xf]
        %v2119 = vld [vmem:[%s2112 + $0x18] sm:$0xf]
        %v2120 = vld [vmem:[%s2112 + $0x1c] sm:$0xf]
        %v2121 = vld [vmem:[%s2112 + $0x20] sm:$0xf]
        %v2122 = vld [vmem:[%s2112 + $0x24] sm:$0xf]
        %v2123 = vld [vmem:[%s2112 + $0x28] sm:$0xf]
        %v2124 = vld [vmem:[%s2112 + $0x2c] sm:$0xf]
        %v2125 = vld [vmem:[%s2112 + $0x30] sm:$0xf]
        %v2126 = vld [vmem:[%s2112 + $0x34] sm:$0xf]
        %v2127 = vld [vmem:[%s2112 + $0x38] sm:$0xf]
        %v2128 = vld [vmem:[%s2112 + $0x3c] sm:$0xf]
        %v2139 = vunpack.c.l.b16 %v2102
        %v2140 = vunpack.c.l.b16 %v2103
        %v2141 = vunpack.c.l.b16 %v2104
        %v2142 = vunpack.c.l.b16 %v2105
        %v2143 = vunpack.c.l.b16 %v2106
        %v2144 = vunpack.c.l.b16 %v2107
        %v2145 = vunpack.c.l.b16 %v2108
        %v2146 = vunpack.c.l.b16 %v2109
        %v2147 = vunpack.c.l.b16 %v2110
        %v2148 = vunpack.c.l.b16 %v2111
        %v2149 = vpack.c.b16 %v2140, %v2139
        %v2150 = vpack.c.b16 %v2142, %v2141
        %v2151 = vpack.c.b16 %v2144, %v2143
        %v2152 = vpack.c.b16 %v2146, %v2145
        %v2153 = vpack.c.b16 %v2148, %v2147
        %vm2154 = vcmask 1046528
        %v2155 = vrot.slane %v2149, 1
        %v2156 = vrot.slane %v2150, 1
        %v2157 = vsel %vm2154, %v2155, %v2156
        %v2158 = vrot.slane %v2151, 1
        %v2159 = vsel %vm2154, %v2156, %v2158
        %v2160 = vrot.slane %v2152, 1
        %v2161 = vsel %vm2154, %v2158, %v2160
        %v2162 = vrot.slane %v2153, 1
        %v2163 = vsel %vm2154, %v2160, %v2162
        %v2185 = vunpack.c.l.b16 %v2113
        %v2186 = vunpack.c.l.b16 %v2114
        %v2187 = vunpack.c.l.b16 %v2115
        %v2188 = vunpack.c.l.b16 %v2116
        %v2189 = vunpack.c.l.b16 %v2117
        %v2190 = vunpack.c.l.b16 %v2118
        %v2191 = vunpack.c.l.b16 %v2119
        %v2192 = vunpack.c.l.b16 %v2120
        %v2193 = vunpack.c.l.b16 %v2121
        %v2194 = vunpack.c.l.b16 %v2122
        %v2195 = vunpack.c.l.b16 %v2123
        %v2196 = vunpack.c.l.b16 %v2124
        %v2197 = vunpack.c.l.b16 %v2125
        %v2198 = vunpack.c.l.b16 %v2126
        %v2199 = vunpack.c.l.b16 %v2127
        %v2200 = vunpack.c.l.b16 %v2128
        %v2201 = vpack.c.b16 %v2186, %v2185
        %v2202 = vpack.c.b16 %v2188, %v2187
        %v2203 = vpack.c.b16 %v2190, %v2189
        %v2204 = vpack.c.b16 %v2192, %v2191
        %v2205 = vpack.c.b16 %v2194, %v2193
        %v2206 = vpack.c.b16 %v2196, %v2195
        %v2207 = vpack.c.b16 %v2198, %v2197
        %v2208 = vpack.c.b16 %v2200, %v2199
        %2217 = vmatprep.subr.bf16.mxu0 0
        %2218 = vmatpush1.bf16.msra.mxu0 %v2208
        %2219 = vmatprep.subr.bf16.mxu0 0
        %2220 = vmatpush1.bf16.msra.mxu0 %v2207
        %2221 = vmatprep.subr.bf16.mxu0 0
        %2222 = vmatpush1.bf16.msra.mxu0 %v2206
        %2223 = vmatprep.subr.bf16.mxu0 0
        %2224 = vmatpush1.bf16.msra.mxu0 %v2205
        %2225 = vmatprep.subr.bf16.mxu0 0
        %2226 = vmatpush1.bf16.msra.mxu0 %v2204
        %2227 = vmatprep.subr.bf16.mxu0 0
        %2228 = vmatpush1.bf16.msra.mxu0 %v2203
        %2229 = vmatprep.subr.bf16.mxu0 0
        %2230 = vmatpush1.bf16.msra.mxu0 %v2202
        %2231 = vmatprep.subr.bf16.mxu0 0
        %2232 = vmatpush1.bf16.msra.mxu0 %v2201
        %2233 = vmatprep.subr.bf16.mxu0 0
        %2234 = vmatpush2.bf16.msra.mxu0 0
        %2235 = vmatprep.subr.bf16.mxu0 0
        %2236 = vmatpush2.bf16.msra.mxu0 0
        %2237 = vmatprep.subr.bf16.mxu0 0
        %2238 = vmatpush2.bf16.msra.mxu0 0
        %2239 = vmatprep.subr.bf16.mxu0 0
        %2240 = vmatpush2.bf16.msra.mxu0 0
        %2241 = vmatprep.subr.bf16.mxu0 0
        %2242 = vmatpush2.bf16.msra.mxu0 0
        %2243 = vmatprep.subr.bf16.mxu0 0
        %2244 = vmatpush2.bf16.msra.mxu0 0
        %2245 = vmatprep.subr.bf16.mxu0 0
        %2246 = vmatpush2.bf16.msra.mxu0 0
        %2247 = vmatprep.subr.bf16.mxu0 0
        %2248 = vmatpush2.bf16.msra.mxu0 0
        %2249 = vmatprep.mubr.bf16.mxu0 0
        %2250 = vmatmul.mubr.bf16.gmra.mxu0 %v2157
        %v2251 = vpop.f32.mrf.mxu0
        %v2252 = vadd.f32 0.0, %v2251
        %v2253 = vpop.f32.mrf.mxu0
        %v2254 = vpop.f32.mrf.mxu0
        %v2255 = vadd.f32 0.0, %v2254
        %v2256 = vpop.f32.mrf.mxu0
        %2257 = vmatprep.mubr.bf16.mxu0 0
        %2258 = vmatmul.mubr.bf16.gmra.mxu0 %v2159
        %v2259 = vpop.f32.mrf.mxu0
        %v2260 = vadd.f32 0.0, %v2259
        %v2261 = vpop.f32.mrf.mxu0
        %v2262 = vpop.f32.mrf.mxu0
        %v2263 = vadd.f32 0.0, %v2262
        %v2264 = vpop.f32.mrf.mxu0
        %2265 = vmatprep.mubr.bf16.mxu0 0
        %2266 = vmatmul.mubr.bf16.gmra.mxu0 %v2161
        %v2267 = vpop.f32.mrf.mxu0
        %v2268 = vadd.f32 0.0, %v2267
        %v2269 = vpop.f32.mrf.mxu0
        %v2270 = vpop.f32.mrf.mxu0
        %v2271 = vadd.f32 0.0, %v2270
        %v2272 = vpop.f32.mrf.mxu0
        %2273 = vmatprep.mubr.bf16.mxu0 0
        %2274 = vmatmul.mubr.bf16.gmra.mxu0 %v2163
        %v2275 = vpop.f32.mrf.mxu0
        %v2276 = vadd.f32 0.0, %v2275
        %v2277 = vpop.f32.mrf.mxu0
        %v2278 = vpop.f32.mrf.mxu0
        %v2279 = vadd.f32 0.0, %v2278
        %v2280 = vpop.f32.mrf.mxu0
        %2281 = vmatprep.mubr.bf16.mxu0 0
        %2282 = vmatmul.mubr.bf16.gmra.mxu0 %v2162
        %v2283 = vpop.f32.mrf.mxu0
        %v2284 = vadd.f32 0.0, %v2283
        %v2285 = vpop.f32.mrf.mxu0
        %v2286 = vpop.f32.mrf.mxu0
        %v2287 = vpop.f32.mrf.mxu0
        %2288 = vdwg.mxu0
        %v2289 = vld [vmem:[#allocation4] sm:$0xff]
        %v2290 = vld [vmem:[#allocation4 + $0x8] sm:$0xff]
        %v2291 = vld [vmem:[#allocation4 + $0x10] sm:$0xff]
        %v2292 = vld [vmem:[#allocation4 + $0x18] sm:$0xff]
        %v2293 = vld [vmem:[#allocation4 + $0x20] sm:$0xff]
        %v2294 = vld [vmem:[#allocation4 + $0x28] sm:$0xff]
        %v2295 = vld [vmem:[#allocation4 + $0x30] sm:$0xff]
        %v2296 = vld [vmem:[#allocation4 + $0x38] sm:$0xff]
        %v2297 = vld [vmem:[#allocation4 + $0x40] sm:$0xff]
        %v2298 = vadd.f32 %v2289, %v2252
        %v2299 = vadd.f32 %v2290, %v2255
        %v2300 = vadd.f32 %v2291, %v2260
        %v2301 = vadd.f32 %v2292, %v2263
        %v2302 = vadd.f32 %v2293, %v2268
        %v2303 = vadd.f32 %v2294, %v2271
        %v2304 = vadd.f32 %v2295, %v2276
        %v2305 = vadd.f32 %v2296, %v2279
        %v2306 = vadd.f32 %v2297, %v2284
        %2307 = vst [vmem:[#allocation4] sm:$0xff] %v2298
        %2308 = vst [vmem:[#allocation4 + $0x8] sm:$0xff] %v2299
        %2309 = vst [vmem:[#allocation4 + $0x10] sm:$0xff] %v2300
        %2310 = vst [vmem:[#allocation4 + $0x18] sm:$0xff] %v2301
        %2311 = vst [vmem:[#allocation4 + $0x20] sm:$0xff] %v2302
        %2312 = vst [vmem:[#allocation4 + $0x28] sm:$0xff] %v2303
        %2313 = vst [vmem:[#allocation4 + $0x30] sm:$0xff] %v2304
        %2314 = vst [vmem:[#allocation4 + $0x38] sm:$0xff] %v2305
        %2315 = vst [vmem:[#allocation4 + $0x40] sm:$0xff] %v2306
        %v2316 = vld [vmem:[#allocation4] sm:$0xff]
        %v2317 = vld [vmem:[#allocation4 + $0x8] sm:$0xff]
        %v2318 = vld [vmem:[#allocation4 + $0x10] sm:$0xff]
        %v2319 = vld [vmem:[#allocation4 + $0x18] sm:$0xff]
        %v2320 = vld [vmem:[#allocation4 + $0x20] sm:$0xff]
        %v2321 = vld [vmem:[#allocation4 + $0x28] sm:$0xff]
        %v2322 = vld [vmem:[#allocation4 + $0x30] sm:$0xff]
        %v2323 = vld [vmem:[#allocation4 + $0x38] sm:$0xff]
        %v2324 = vld [vmem:[#allocation4 + $0x40] sm:$0xff]
        %v2325 = vld [vmem:[%s2] sm:$0x1]
        %v2327 = vlaneseq
        %v2328 = vshrl.u32 %v2327, 7
        %v2329 = vsub.s32 0, %v2328
        %v2330 = vrot.slane %v2325, %v2329
        %v2332 = vadd.f32 %v2316, %v2330
        %v2333 = vadd.f32 %v2317, %v2330
        %v2334 = vadd.f32 %v2318, %v2330
        %v2335 = vadd.f32 %v2319, %v2330
        %v2336 = vadd.f32 %v2320, %v2330
        %v2337 = vadd.f32 %v2321, %v2330
        %v2338 = vadd.f32 %v2322, %v2330
        %v2339 = vadd.f32 %v2323, %v2330
        %v2340 = vadd.f32 %v2324, %v2330
        %v2341 = vmax.f32 %v2332, 0.0
        %v2342 = vmax.f32 %v2333, 0.0
        %v2343 = vmax.f32 %v2334, 0.0
        %v2344 = vmax.f32 %v2335, 0.0
        %v2345 = vmax.f32 %v2336, 0.0
        %v2346 = vmax.f32 %v2337, 0.0
        %v2347 = vmax.f32 %v2338, 0.0
        %v2348 = vmax.f32 %v2339, 0.0
        %v2349 = vmax.f32 %v2340, 0.0
        %v2350 = vpack.c.bf16 %v2342, %v2341
        %v2351 = vpack.c.bf16 %v2344, %v2343
        %v2352 = vpack.c.bf16 %v2346, %v2345
        %v2353 = vpack.c.bf16 %v2348, %v2347
        %v2354 = vpack.c.bf16 %v2349, %v2349
        %v2360 = vunpack.c.l.b16 %v2350
        %v2361 = vunpack.c.h.b16 %v2350
        %v2362 = vunpack.c.l.b16 %v2351
        %v2363 = vunpack.c.h.b16 %v2351
        %v2364 = vunpack.c.l.b16 %v2352
        %v2365 = vunpack.c.h.b16 %v2352
        %v2366 = vunpack.c.l.b16 %v2353
        %v2367 = vunpack.c.h.b16 %v2353
        %v2368 = vunpack.c.l.b16 %v2354
        %v2369 = vpack.c.b16 %v2360, %v2360
        %v2370 = vpack.c.b16 %v2361, %v2361
        %v2371 = vpack.c.b16 %v2362, %v2362
        %v2372 = vpack.c.b16 %v2363, %v2363
        %v2373 = vpack.c.b16 %v2364, %v2364
        %v2374 = vpack.c.b16 %v2365, %v2365
        %v2375 = vpack.c.b16 %v2366, %v2366
        %v2376 = vpack.c.b16 %v2367, %v2367
        %v2377 = vpack.c.b16 %v2368, %v2368
        %2387 = vst [vmem:[%s151] sm:$0xf] %v2369
        %2388 = vst [vmem:[%s151 + $0x4] sm:$0xf] %v2370
        %2389 = vst [vmem:[%s151 + $0x8] sm:$0xf] %v2371
        %2390 = vst [vmem:[%s151 + $0xc] sm:$0xf] %v2372
        %2391 = vst [vmem:[%s151 + $0x10] sm:$0xf] %v2373
        %2392 = vst [vmem:[%s151 + $0x14] sm:$0xf] %v2374
        %2393 = vst [vmem:[%s151 + $0x18] sm:$0xf] %v2375
        %2394 = vst [vmem:[%s151 + $0x1c] sm:$0xf] %v2376
        %2395 = vst [vmem:[%s151 + $0x20] sm:$0xf] %v2377
        %s2396 = sand.u32 %s82, 1
        %s2397 = scalar_lea.sflag [#allocation7], %s2396
        %s2398 = sand.u32 %s82, 1
        %s2399 = smul.addr %s2398, 36
        %s2400 = scalar_lea.vmem [#allocation8], %s2399
        // Predicated region
        $region73: #{tpu_custom_call.1} parent=27 // pred_check
          %p2401 = pneg %p92
        $region74: #{tpu_custom_call.1} parent=27 // pred_check_branch
          %2403 = sbr.rel (%p2401) target = $region76
        $region75: #{tpu_custom_call.1} parent=27 // pred_region
          %s2404 = smul.u32 9, %s23
          %s2406 = ssub.s32 576, 576
          %2407 = vsyncadd %s2397, %s2406
          %s2408 = smul.addr %s22, 9
          %s2409 = sadd.s32 %s2404, %s2408
          %s2410 = smul.addr %s2409, 64
          %s2411 = scalar_lea.hbm %s3, %s2410
          %s2412 = sshll.u32 %s2400, 4
          %s2413 = int_to_ptr.vmem [resolvable:$true] %s2412
          %2418 = dma.vmem_to_hbm [thread:$0]  %s2413, 576, %s2411, %s2397, 64, 64, 4
        $region76: #{tpu_custom_call.1} parent=27 // pred_fallthru
          _
      $region28: #{tpu_custom_call.1} parent=5 // pred_fallthru
        _
      %p2419 = scmp.le.s32.totalorder 2, %s13
      // Predicated region
      $region77: #{tpu_custom_call.1} parent=5 // pred_check
        %p2420 = pneg %p2419
      $region78: #{tpu_custom_call.1} parent=5 // pred_check_branch
        %2422 = sbr.rel (%p2420) target = $region80
      $region79: #{tpu_custom_call.1} parent=5 // pred_region
        %s2423 = ssub.s32 %s13, 2
        // Predicated region
        $region81: #{tpu_custom_call.1} parent=79 // pred_check
          %p2424 = pneg %p98
        $region82: #{tpu_custom_call.1} parent=79 // pred_check_branch
          %2426 = sbr.rel (%p2424) target = $region84
        $region83: #{tpu_custom_call.1} parent=79 // pred_region
          %s2427 = sand.u32 %s83, 1
          %s2428 = scalar_lea.sflag [#allocation7], %s2427
          %s2429 = sand.u32 %s83, 1
          %s2430 = smul.addr %s2429, 36
          %s2431 = scalar_lea.vmem [#allocation8], %s2430
          %2432 = dma.done %s2428, 576
        $region84: #{tpu_custom_call.1} parent=79 // pred_fallthru
          _
      $region80: #{tpu_custom_call.1} parent=5 // pred_fallthru
        _
    $region6: #{tpu_custom_call.1} parent=1 // loop_footer
      %s17 = sadd.s32 1, %s13
    $region7: #{tpu_custom_call.1} parent=1 // loop_footer_branch
      %12 = sbr.rel target = $region3
    $region8: #{tpu_custom_call.1} parent=1 // loop_exit
      _
    %2433 = vsyncpa [#allocation6], 1
    %s2434 = scalar_lea.sflag [#allocation6], 1
    %2435 = vsyncpa %s2434, 1
    %2436 = vsyncpa [#allocation7], 1
    %s2437 = scalar_lea.sflag [#allocation7], 1
    %2438 = vsyncpa %s2437, 1
  %2439 = vsyncmov [#allocation3]
  %s2440 = vpop.sfrf %2439
  %p2441 = scmp.eq.s32.totalorder %s2440, 0
  %p2442 = pneg %p2441
  %2444 = shalt.err (%p2442)
  %s2445 = scalar_lea.sflag [#allocation3], 1
  %2446 = vsyncmov %s2445
  %s2447 = vpop.sfrf %2446
  %p2448 = scmp.eq.s32.totalorder %s2447, 0
  %p2449 = pneg %p2448
  %2451 = shalt.err (%p2449)
  %s2452 = scalar_lea.sflag [#allocation3], 2
  %2453 = vsyncmov %s2452
  %s2454 = vpop.sfrf %2453
  %p2455 = scmp.eq.s32.totalorder %s2454, 0
  %p2456 = pneg %p2455
  %2458 = shalt.err (%p2456)
  %s2459 = scalar_lea.sflag [#allocation3], 3
  %2460 = vsyncmov %s2459
  %s2461 = vpop.sfrf %2460
  %p2462 = scmp.eq.s32.totalorder %s2461, 0
  %p2463 = pneg %p2462
  %2465 = shalt.err (%p2463)
  %s2466 = scalar_lea.sflag [#allocation3], 4
  %2467 = vsyncmov %s2466
  %s2468 = vpop.sfrf %2467
  %p2469 = scmp.eq.s32.totalorder %s2468, 0
  %p2470 = pneg %p2469
  %2472 = shalt.err (%p2470)
  %s2473 = scalar_lea.sflag [#allocation3], 5
  %2474 = vsyncmov %s2473
  %s2475 = vpop.sfrf %2474
  %p2476 = scmp.eq.s32.totalorder %s2475, 0
  %p2477 = pneg %p2476
  %2479 = shalt.err (%p2477)
  %s2480 = scalar_lea.sflag [#allocation3], 6
  %2481 = vsyncmov %s2480
  %s2482 = vpop.sfrf %2481
  %p2483 = scmp.eq.s32.totalorder %s2482, 0
  %p2484 = pneg %p2483
  %2486 = shalt.err (%p2484)
  %s2487 = scalar_lea.sflag [#allocation3], 7
  %2488 = vsyncmov %s2487
  %s2489 = vpop.sfrf %2488
  %p2490 = scmp.eq.s32.totalorder %s2489, 0
  %p2491 = pneg %p2490
  %2493 = shalt.err (%p2491)

</llo_original>
